<compile_context>
chip_gen: v7x
topology: tpu7x:2x2x1
jax: 0.10.0
libtpu: 0.0.40
codegen_flags: <defaults>
</compile_context>

<pallas_src>
import jax
import jax.numpy as jnp
from jax.experimental import pallas as pl
from jax.experimental.pallas import tpu as pltpu  # noqa: F401  (kept for TPU backend)


# ----------------------------------------------------------------------------- #
# Fused kernel: 2 stacked GRU layers + final Linear, single program (no grid).
# All operands are whole-array VMEM blocks (everything is tiny: < 100 KiB total).
# ----------------------------------------------------------------------------- #
def activity_gru_kernel(x_ref,
                        wih1_ref, whh1_ref, bi1_ref, bhn1_ref,
                        wih2_ref, whh2_ref, bi2_ref, bhn2_ref,
                        wfc_ref, bfc_ref,
                        yseq_ref, yfc_ref):
    B, T, D = x_ref.shape
    H = whh1_ref.shape[0]

    # ---- layer-1 input projections for all timesteps: one wide MXU matmul ------- #
    x_all = x_ref[...].reshape(B * T, D)
    gi1_all = (jnp.dot(x_all, wih1_ref[...], preferred_element_type=jnp.float32)
               + bi1_ref[...])                       # (B*T, 3H), biases folded in
    gi1_all = gi1_all.reshape(B, T, 3 * H)

    # Hoist all loop-invariant loads/broadcasts out of the recurrence.
    whh1 = whh1_ref[...]
    wih2 = wih2_ref[...]
    whh2 = whh2_ref[...]
    bi2 = bi2_ref[...]
    bhn1 = bhn1_ref[...]
    bhn2 = bhn2_ref[...]

    def gru_cell(gi, gh, h, b_hn):
        # gi/gh: (B, 3H) fused (r|z|n) pre-activations; gi already contains the
        # folded biases for r and z (and b_in for n).
        r = jax.nn.sigmoid(gi[:, :H] + gh[:, :H])
        z = jax.nn.sigmoid(gi[:, H:2 * H] + gh[:, H:2 * H])
        n = jnp.tanh(gi[:, 2 * H:] + r * (gh[:, 2 * H:] + b_hn))
        return (1.0 - z) * n + z * h

    h1 = jnp.zeros((B, H), jnp.float32)
    h2 = jnp.zeros((B, H), jnp.float32)
    outs = []
    for t in range(T):  # static, fully-unrolled time loop (T known at trace time)
        # layer 1: only the recurrent matmul is on the critical path
        gh1 = jnp.dot(h1, whh1, preferred_element_type=jnp.float32)
        h1 = gru_cell(gi1_all[:, t, :], gh1, h1, bhn1)
        # layer 2: input projection of h1 + recurrent matmul, both fused (H, 3H)
        gi2 = jnp.dot(h1, wih2, preferred_element_type=jnp.float32) + bi2
        gh2 = jnp.dot(h2, whh2, preferred_element_type=jnp.float32)
        h2 = gru_cell(gi2, gh2, h2, bhn2)
        outs.append(h2)

    # Single lane-dense store of the whole layer-2 sequence output: (B, T*H).
    yseq_ref[...] = jnp.concatenate(outs, axis=1)

    # Final Linear on the last timestep's hidden state.
    yfc_ref[...] = (jnp.dot(h2, wfc_ref[...], preferred_element_type=jnp.float32)
                    + bfc_ref[...])
    # TODO(synk): nn.Dropout(0.5) is defined in __init__ but never applied in the
    # PyTorch forward(); it is therefore (correctly) omitted here.


# ----------------------------------------------------------------------------- #
# Wrapper: one pallas_call, no boundary transposes.
# ----------------------------------------------------------------------------- #
@jax.jit
def activity_gru_forward(x_bf, packed_params):
    """x_bf: (B, T, D) batch-first, like the PyTorch module.
    Returns (x2, out) = ((B, T, H) second-GRU outputs, (B, output_dim))."""
    (wih1, whh1, bi1, bhn1,
     wih2, whh2, bi2, bhn2,
     w_fc, b_fc) = packed_params
    B, T, _ = x_bf.shape
    H = whh1.shape[0]
    O = w_fc.shape[-1]
    y_flat, out = pl.pallas_call(
        activity_gru_kernel,
        out_shape=(jax.ShapeDtypeStruct((B, T * H), jnp.float32),
                   jax.ShapeDtypeStruct((B, O), jnp.float32)),
    )(x_bf, wih1, whh1, bi1, bhn1, wih2, whh2, bi2, bhn2, w_fc, b_fc)
    # (B, T*H) -> (B, T, H) is a pure (row-major) reshape: no data movement.
    return y_flat.reshape(B, T, H), out


# ----------------------------------------------------------------------------- #
# Parameter construction (PyTorch-style uniform init) and kernel-layout packing.
# ----------------------------------------------------------------------------- #
def init_gru_params(key, input_dim, hidden_dim):
    """Unpacked, PyTorch-equivalent params: (3, D, H), (3, H, H), (3, 1, H), (3, 1, H),
    gate order (r, z, n)."""
    k = 1.0 / jnp.sqrt(hidden_dim)
    k1, k2, k3, k4 = jax.random.split(key, 4)
    w_ih = jax.random.uniform(k1, (3, hidden_dim, input_dim), jnp.float32, -k, k)
    w_hh = jax.random.uniform(k2, (3, hidden_dim, hidden_dim), jnp.float32, -k, k)
    b_ih = jax.random.uniform(k3, (3, 1, hidden_dim), jnp.float32, -k, k)
    b_hh = jax.random.uniform(k4, (3, 1, hidden_dim), jnp.float32, -k, k)
    return (
        jnp.transpose(w_ih, (0, 2, 1)),  # (3, D, H)
        jnp.transpose(w_hh, (0, 2, 1)),  # (3, H, H)
        b_ih,                            # (3, 1, H)
        b_hh,                            # (3, 1, H)
    )


def init_linear_params(key, in_dim, out_dim):
    k = 1.0 / jnp.sqrt(in_dim)
    k1, k2 = jax.random.split(key)
    w = jax.random.uniform(k1, (in_dim, out_dim), jnp.float32, -k, k)
    b = jax.random.uniform(k2, (1, out_dim), jnp.float32, -k, k)
    return w, b


def pack_gru_params(w_ih, w_hh, b_ih, b_hh):
    """Pack per-gate params into the fused kernel layout:
       wih (D, 3H), whh (H, 3H), bi (1, 3H) = (b_ir+b_hr | b_iz+b_hz | b_in),
       bhn (1, H)."""
    D, H = w_ih.shape[1], w_ih.shape[2]
    wih = jnp.transpose(w_ih, (1, 0, 2)).reshape(D, 3 * H)
    whh = jnp.transpose(w_hh, (1, 0, 2)).reshape(H, 3 * H)
    bi = jnp.concatenate([b_ih[0] + b_hh[0],   # r
                          b_ih[1] + b_hh[1],   # z
                          b_ih[2]],            # n (input-side only)
                         axis=-1)              # (1, 3H)
    bhn = b_hh[2]                              # (1, H)
    return wih, whh, bi, bhn


# ----------------------------------------------------------------------------- #
# Pure-JAX reference (lax.scan GRU, unpacked params) to validate the fused kernel.
# ----------------------------------------------------------------------------- #
def gru_layer_ref(x_bf, w_ih, w_hh, b_ih, b_hh):
    B = x_bf.shape[0]
    H = w_hh.shape[-1]

    def step(h, x_t):
        gi = jnp.einsum("bd,gdh->gbh", x_t, w_ih) + b_ih
        gh = jnp.einsum("bh,ghk->gbk", h, w_hh) + b_hh
        r = jax.nn.sigmoid(gi[0] + gh[0])
        z = jax.nn.sigmoid(gi[1] + gh[1])
        n = jnp.tanh(gi[2] + r * gh[2])
        h_new = (1.0 - z) * n + z * h
        return h_new, h_new

    x_tm = jnp.transpose(x_bf, (1, 0, 2))
    _, ys = jax.lax.scan(step, jnp.zeros((B, H), jnp.float32), x_tm)
    return jnp.transpose(ys, (1, 0, 2))


def forward_ref(x_bf, raw_params):
    (w_ih1, w_hh1, b_ih1, b_hh1,
     w_ih2, w_hh2, b_ih2, b_hh2,
     w_fc, b_fc) = raw_params
    h1 = gru_layer_ref(x_bf, w_ih1, w_hh1, b_ih1, b_hh1)
    h2 = gru_layer_ref(h1, w_ih2, w_hh2, b_ih2, b_hh2)
    out = h2[:, -1, :] @ w_fc + b_fc
    return h2, out


if __name__ == "__main__":
    # Small shapes consistent with the module: batch=2, seq=8, input_dim=6,
    # hidden_dim=32, output_dim=5.
    B, T, D, H, O = 2, 8, 6, 32, 5

    root = jax.random.PRNGKey(0)
    k_x, k_g1, k_g2, k_fc = jax.random.split(root, 4)

    x = jax.random.normal(k_x, (B, T, D), jnp.float32)

    w_ih1, w_hh1, b_ih1, b_hh1 = init_gru_params(k_g1, D, H)
    w_ih2, w_hh2, b_ih2, b_hh2 = init_gru_params(k_g2, H, H)
    w_fc, b_fc = init_linear_params(k_fc, H, O)

    raw_params = (w_ih1, w_hh1, b_ih1, b_hh1,
                  w_ih2, w_hh2, b_ih2, b_hh2,
                  w_fc, b_fc)

    # One-time packing into the fused kernel layout (done outside the jitted forward).
    packed_params = (*pack_gru_params(w_ih1, w_hh1, b_ih1, b_hh1),
                     *pack_gru_params(w_ih2, w_hh2, b_ih2, b_hh2),
                     w_fc, b_fc)

    x_seq, out = activity_gru_forward(x, packed_params)
    jax.block_until_ready((x_seq, out))

    x_seq_ref, out_ref = forward_ref(x, raw_params)
    assert x_seq.shape == (B, T, H) and out.shape == (B, O)
    assert jnp.allclose(x_seq, x_seq_ref, atol=1e-4, rtol=1e-4)
    assert jnp.allclose(out, out_ref, atol=1e-4, rtol=1e-4)

    print("KERNEL_OK")
</pallas_src>

<mosaic_0001>
module attributes {stable_mosaic.version = 11 : i64} {
  func.func @activity_gru_kernel(%arg0: memref<2x8x6xf32, #tpu.memory_space<vmem>>, %arg1: memref<6x96xf32, #tpu.memory_space<vmem>>, %arg2: memref<32x96xf32, #tpu.memory_space<vmem>>, %arg3: memref<1x96xf32, #tpu.memory_space<vmem>>, %arg4: memref<1x32xf32, #tpu.memory_space<vmem>>, %arg5: memref<32x96xf32, #tpu.memory_space<vmem>>, %arg6: memref<32x96xf32, #tpu.memory_space<vmem>>, %arg7: memref<1x96xf32, #tpu.memory_space<vmem>>, %arg8: memref<1x32xf32, #tpu.memory_space<vmem>>, %arg9: memref<32x5xf32, #tpu.memory_space<vmem>>, %arg10: memref<1x5xf32, #tpu.memory_space<vmem>>, %arg11: memref<2x256xf32, #tpu.memory_space<vmem>>, %arg12: memref<2x5xf32, #tpu.memory_space<vmem>>) attributes {dimension_semantics = [], scalar_prefetch = 0 : i64, scratch_operands = 0 : i64, tpu.core_type = #tpu.core_type<tc>} {
    %c0 = arith.constant 0 : index
    %c0_0 = arith.constant 0 : index
    %c0_1 = arith.constant 0 : index
    %0 = vector.load %arg0[%c0, %c0_0, %c0_1] : memref<2x8x6xf32, #tpu.memory_space<vmem>>, vector<2x8x6xf32>
    %1 = vector.shape_cast %0 : vector<2x8x6xf32> to vector<16x6xf32>
    %c0_2 = arith.constant 0 : index
    %c0_3 = arith.constant 0 : index
    %2 = vector.load %arg1[%c0_2, %c0_3] : memref<6x96xf32, #tpu.memory_space<vmem>>, vector<6x96xf32>
    %cst = arith.constant dense<0.000000e+00> : vector<16x96xf32>
    %3 = tpu.matmul %1, %2, %cst {dimension_numbers = #tpu.dot_dimension_numbers<[1], [0], [0], [1], [0, 0, 1, 1], [], []>} : vector<16x6xf32>, vector<6x96xf32>, vector<16x96xf32> -> vector<16x96xf32>
    %c0_4 = arith.constant 0 : index
    %c0_5 = arith.constant 0 : index
    %4 = vector.load %arg3[%c0_4, %c0_5] : memref<1x96xf32, #tpu.memory_space<vmem>>, vector<1x96xf32>
    %5 = vector.broadcast %4 : vector<1x96xf32> to vector<16x96xf32>
    %6 = arith.addf %3, %5 : vector<16x96xf32>
    %7 = vector.shape_cast %6 : vector<16x96xf32> to vector<2x8x96xf32>
    %c0_6 = arith.constant 0 : index
    %c0_7 = arith.constant 0 : index
    %8 = vector.load %arg2[%c0_6, %c0_7] : memref<32x96xf32, #tpu.memory_space<vmem>>, vector<32x96xf32>
    %c0_8 = arith.constant 0 : index
    %c0_9 = arith.constant 0 : index
    %9 = vector.load %arg5[%c0_8, %c0_9] : memref<32x96xf32, #tpu.memory_space<vmem>>, vector<32x96xf32>
    %c0_10 = arith.constant 0 : index
    %c0_11 = arith.constant 0 : index
    %10 = vector.load %arg6[%c0_10, %c0_11] : memref<32x96xf32, #tpu.memory_space<vmem>>, vector<32x96xf32>
    %c0_12 = arith.constant 0 : index
    %c0_13 = arith.constant 0 : index
    %11 = vector.load %arg7[%c0_12, %c0_13] : memref<1x96xf32, #tpu.memory_space<vmem>>, vector<1x96xf32>
    %c0_14 = arith.constant 0 : index
    %c0_15 = arith.constant 0 : index
    %12 = vector.load %arg4[%c0_14, %c0_15] : memref<1x32xf32, #tpu.memory_space<vmem>>, vector<1x32xf32>
    %c0_16 = arith.constant 0 : index
    %c0_17 = arith.constant 0 : index
    %13 = vector.load %arg8[%c0_16, %c0_17] : memref<1x32xf32, #tpu.memory_space<vmem>>, vector<1x32xf32>
    %cst_18 = arith.constant 0.000000e+00 : f32
    %14 = vector.broadcast %cst_18 : f32 to vector<2x32xf32>
    %cst_19 = arith.constant 0.000000e+00 : f32
    %15 = vector.broadcast %cst_19 : f32 to vector<2x32xf32>
    %cst_20 = arith.constant dense<0.000000e+00> : vector<2x96xf32>
    %16 = tpu.matmul %14, %8, %cst_20 {dimension_numbers = #tpu.dot_dimension_numbers<[1], [0], [0], [1], [0, 0, 1, 1], [], []>} : vector<2x32xf32>, vector<32x96xf32>, vector<2x96xf32> -> vector<2x96xf32>
    %17 = vector.extract_strided_slice %7 {offsets = [0, 0, 0], sizes = [2, 1, 96], strides = [1, 1, 1]} : vector<2x8x96xf32> to vector<2x1x96xf32>
    %18 = vector.shape_cast %17 : vector<2x1x96xf32> to vector<2x96xf32>
    %19 = vector.extract_strided_slice %18 {offsets = [0, 0], sizes = [2, 32], strides = [1, 1]} : vector<2x96xf32> to vector<2x32xf32>
    %20 = vector.extract_strided_slice %16 {offsets = [0, 0], sizes = [2, 32], strides = [1, 1]} : vector<2x96xf32> to vector<2x32xf32>
    %21 = arith.addf %19, %20 : vector<2x32xf32>
    %22 = arith.negf %21 : vector<2x32xf32>
    %23 = math.exp %22 : vector<2x32xf32>
    %cst_21 = arith.constant 1.000000e+00 : f32
    %24 = vector.broadcast %cst_21 : f32 to vector<2x32xf32>
    %25 = arith.addf %24, %23 : vector<2x32xf32>
    %26 = arith.divf %24, %25 : vector<2x32xf32>
    %27 = vector.extract_strided_slice %18 {offsets = [0, 32], sizes = [2, 32], strides = [1, 1]} : vector<2x96xf32> to vector<2x32xf32>
    %28 = vector.extract_strided_slice %16 {offsets = [0, 32], sizes = [2, 32], strides = [1, 1]} : vector<2x96xf32> to vector<2x32xf32>
    %29 = arith.addf %27, %28 : vector<2x32xf32>
    %30 = arith.negf %29 : vector<2x32xf32>
    %31 = math.exp %30 : vector<2x32xf32>
    %cst_22 = arith.constant 1.000000e+00 : f32
    %32 = vector.broadcast %cst_22 : f32 to vector<2x32xf32>
    %33 = arith.addf %32, %31 : vector<2x32xf32>
    %34 = arith.divf %32, %33 : vector<2x32xf32>
    %35 = vector.extract_strided_slice %18 {offsets = [0, 64], sizes = [2, 32], strides = [1, 1]} : vector<2x96xf32> to vector<2x32xf32>
    %36 = vector.extract_strided_slice %16 {offsets = [0, 64], sizes = [2, 32], strides = [1, 1]} : vector<2x96xf32> to vector<2x32xf32>
    %37 = vector.broadcast %12 : vector<1x32xf32> to vector<2x32xf32>
    %38 = arith.addf %36, %37 : vector<2x32xf32>
    %39 = arith.mulf %26, %38 : vector<2x32xf32>
    %40 = arith.addf %35, %39 : vector<2x32xf32>
    %41 = math.tanh %40 : vector<2x32xf32>
    %cst_23 = arith.constant 1.000000e+00 : f32
    %42 = vector.broadcast %cst_23 : f32 to vector<2x32xf32>
    %43 = arith.subf %42, %34 : vector<2x32xf32>
    %44 = arith.mulf %43, %41 : vector<2x32xf32>
    %45 = arith.mulf %34, %14 : vector<2x32xf32>
    %46 = arith.addf %44, %45 : vector<2x32xf32>
    %cst_24 = arith.constant dense<0.000000e+00> : vector<2x96xf32>
    %47 = tpu.matmul %46, %9, %cst_24 {dimension_numbers = #tpu.dot_dimension_numbers<[1], [0], [0], [1], [0, 0, 1, 1], [], []>} : vector<2x32xf32>, vector<32x96xf32>, vector<2x96xf32> -> vector<2x96xf32>
    %48 = vector.broadcast %11 : vector<1x96xf32> to vector<2x96xf32>
    %49 = arith.addf %47, %48 : vector<2x96xf32>
    %cst_25 = arith.constant dense<0.000000e+00> : vector<2x96xf32>
    %50 = tpu.matmul %15, %10, %cst_25 {dimension_numbers = #tpu.dot_dimension_numbers<[1], [0], [0], [1], [0, 0, 1, 1], [], []>} : vector<2x32xf32>, vector<32x96xf32>, vector<2x96xf32> -> vector<2x96xf32>
    %51 = vector.extract_strided_slice %49 {offsets = [0, 0], sizes = [2, 32], strides = [1, 1]} : vector<2x96xf32> to vector<2x32xf32>
    %52 = vector.extract_strided_slice %50 {offsets = [0, 0], sizes = [2, 32], strides = [1, 1]} : vector<2x96xf32> to vector<2x32xf32>
    %53 = arith.addf %51, %52 : vector<2x32xf32>
    %54 = arith.negf %53 : vector<2x32xf32>
    %55 = math.exp %54 : vector<2x32xf32>
    %cst_26 = arith.constant 1.000000e+00 : f32
    %56 = vector.broadcast %cst_26 : f32 to vector<2x32xf32>
    %57 = arith.addf %56, %55 : vector<2x32xf32>
    %58 = arith.divf %56, %57 : vector<2x32xf32>
    %59 = vector.extract_strided_slice %49 {offsets = [0, 32], sizes = [2, 32], strides = [1, 1]} : vector<2x96xf32> to vector<2x32xf32>
    %60 = vector.extract_strided_slice %50 {offsets = [0, 32], sizes = [2, 32], strides = [1, 1]} : vector<2x96xf32> to vector<2x32xf32>
    %61 = arith.addf %59, %60 : vector<2x32xf32>
    %62 = arith.negf %61 : vector<2x32xf32>
    %63 = math.exp %62 : vector<2x32xf32>
    %cst_27 = arith.constant 1.000000e+00 : f32
    %64 = vector.broadcast %cst_27 : f32 to vector<2x32xf32>
    %65 = arith.addf %64, %63 : vector<2x32xf32>
    %66 = arith.divf %64, %65 : vector<2x32xf32>
    %67 = vector.extract_strided_slice %49 {offsets = [0, 64], sizes = [2, 32], strides = [1, 1]} : vector<2x96xf32> to vector<2x32xf32>
    %68 = vector.extract_strided_slice %50 {offsets = [0, 64], sizes = [2, 32], strides = [1, 1]} : vector<2x96xf32> to vector<2x32xf32>
    %69 = vector.broadcast %13 : vector<1x32xf32> to vector<2x32xf32>
    %70 = arith.addf %68, %69 : vector<2x32xf32>
    %71 = arith.mulf %58, %70 : vector<2x32xf32>
    %72 = arith.addf %67, %71 : vector<2x32xf32>
    %73 = math.tanh %72 : vector<2x32xf32>
    %cst_28 = arith.constant 1.000000e+00 : f32
    %74 = vector.broadcast %cst_28 : f32 to vector<2x32xf32>
    %75 = arith.subf %74, %66 : vector<2x32xf32>
    %76 = arith.mulf %75, %73 : vector<2x32xf32>
    %77 = arith.mulf %66, %15 : vector<2x32xf32>
    %78 = arith.addf %76, %77 : vector<2x32xf32>
    %cst_29 = arith.constant dense<0.000000e+00> : vector<2x96xf32>
    %79 = tpu.matmul %46, %8, %cst_29 {dimension_numbers = #tpu.dot_dimension_numbers<[1], [0], [0], [1], [0, 0, 1, 1], [], []>} : vector<2x32xf32>, vector<32x96xf32>, vector<2x96xf32> -> vector<2x96xf32>
    %80 = vector.extract_strided_slice %7 {offsets = [0, 1, 0], sizes = [2, 1, 96], strides = [1, 1, 1]} : vector<2x8x96xf32> to vector<2x1x96xf32>
    %81 = vector.shape_cast %80 : vector<2x1x96xf32> to vector<2x96xf32>
    %82 = vector.extract_strided_slice %81 {offsets = [0, 0], sizes = [2, 32], strides = [1, 1]} : vector<2x96xf32> to vector<2x32xf32>
    %83 = vector.extract_strided_slice %79 {offsets = [0, 0], sizes = [2, 32], strides = [1, 1]} : vector<2x96xf32> to vector<2x32xf32>
    %84 = arith.addf %82, %83 : vector<2x32xf32>
    %85 = arith.negf %84 : vector<2x32xf32>
    %86 = math.exp %85 : vector<2x32xf32>
    %cst_30 = arith.constant 1.000000e+00 : f32
    %87 = vector.broadcast %cst_30 : f32 to vector<2x32xf32>
    %88 = arith.addf %87, %86 : vector<2x32xf32>
    %89 = arith.divf %87, %88 : vector<2x32xf32>
    %90 = vector.extract_strided_slice %81 {offsets = [0, 32], sizes = [2, 32], strides = [1, 1]} : vector<2x96xf32> to vector<2x32xf32>
    %91 = vector.extract_strided_slice %79 {offsets = [0, 32], sizes = [2, 32], strides = [1, 1]} : vector<2x96xf32> to vector<2x32xf32>
    %92 = arith.addf %90, %91 : vector<2x32xf32>
    %93 = arith.negf %92 : vector<2x32xf32>
    %94 = math.exp %93 : vector<2x32xf32>
    %cst_31 = arith.constant 1.000000e+00 : f32
    %95 = vector.broadcast %cst_31 : f32 to vector<2x32xf32>
    %96 = arith.addf %95, %94 : vector<2x32xf32>
    %97 = arith.divf %95, %96 : vector<2x32xf32>
    %98 = vector.extract_strided_slice %81 {offsets = [0, 64], sizes = [2, 32], strides = [1, 1]} : vector<2x96xf32> to vector<2x32xf32>
    %99 = vector.extract_strided_slice %79 {offsets = [0, 64], sizes = [2, 32], strides = [1, 1]} : vector<2x96xf32> to vector<2x32xf32>
    %100 = vector.broadcast %12 : vector<1x32xf32> to vector<2x32xf32>
    %101 = arith.addf %99, %100 : vector<2x32xf32>
    %102 = arith.mulf %89, %101 : vector<2x32xf32>
    %103 = arith.addf %98, %102 : vector<2x32xf32>
    %104 = math.tanh %103 : vector<2x32xf32>
    %cst_32 = arith.constant 1.000000e+00 : f32
    %105 = vector.broadcast %cst_32 : f32 to vector<2x32xf32>
    %106 = arith.subf %105, %97 : vector<2x32xf32>
    %107 = arith.mulf %106, %104 : vector<2x32xf32>
    %108 = arith.mulf %97, %46 : vector<2x32xf32>
    %109 = arith.addf %107, %108 : vector<2x32xf32>
    %cst_33 = arith.constant dense<0.000000e+00> : vector<2x96xf32>
    %110 = tpu.matmul %109, %9, %cst_33 {dimension_numbers = #tpu.dot_dimension_numbers<[1], [0], [0], [1], [0, 0, 1, 1], [], []>} : vector<2x32xf32>, vector<32x96xf32>, vector<2x96xf32> -> vector<2x96xf32>
    %111 = vector.broadcast %11 : vector<1x96xf32> to vector<2x96xf32>
    %112 = arith.addf %110, %111 : vector<2x96xf32>
    %cst_34 = arith.constant dense<0.000000e+00> : vector<2x96xf32>
    %113 = tpu.matmul %78, %10, %cst_34 {dimension_numbers = #tpu.dot_dimension_numbers<[1], [0], [0], [1], [0, 0, 1, 1], [], []>} : vector<2x32xf32>, vector<32x96xf32>, vector<2x96xf32> -> vector<2x96xf32>
    %114 = vector.extract_strided_slice %112 {offsets = [0, 0], sizes = [2, 32], strides = [1, 1]} : vector<2x96xf32> to vector<2x32xf32>
    %115 = vector.extract_strided_slice %113 {offsets = [0, 0], sizes = [2, 32], strides = [1, 1]} : vector<2x96xf32> to vector<2x32xf32>
    %116 = arith.addf %114, %115 : vector<2x32xf32>
    %117 = arith.negf %116 : vector<2x32xf32>
    %118 = math.exp %117 : vector<2x32xf32>
    %cst_35 = arith.constant 1.000000e+00 : f32
    %119 = vector.broadcast %cst_35 : f32 to vector<2x32xf32>
    %120 = arith.addf %119, %118 : vector<2x32xf32>
    %121 = arith.divf %119, %120 : vector<2x32xf32>
    %122 = vector.extract_strided_slice %112 {offsets = [0, 32], sizes = [2, 32], strides = [1, 1]} : vector<2x96xf32> to vector<2x32xf32>
    %123 = vector.extract_strided_slice %113 {offsets = [0, 32], sizes = [2, 32], strides = [1, 1]} : vector<2x96xf32> to vector<2x32xf32>
    %124 = arith.addf %122, %123 : vector<2x32xf32>
    %125 = arith.negf %124 : vector<2x32xf32>
    %126 = math.exp %125 : vector<2x32xf32>
    %cst_36 = arith.constant 1.000000e+00 : f32
    %127 = vector.broadcast %cst_36 : f32 to vector<2x32xf32>
    %128 = arith.addf %127, %126 : vector<2x32xf32>
    %129 = arith.divf %127, %128 : vector<2x32xf32>
    %130 = vector.extract_strided_slice %112 {offsets = [0, 64], sizes = [2, 32], strides = [1, 1]} : vector<2x96xf32> to vector<2x32xf32>
    %131 = vector.extract_strided_slice %113 {offsets = [0, 64], sizes = [2, 32], strides = [1, 1]} : vector<2x96xf32> to vector<2x32xf32>
    %132 = vector.broadcast %13 : vector<1x32xf32> to vector<2x32xf32>
    %133 = arith.addf %131, %132 : vector<2x32xf32>
    %134 = arith.mulf %121, %133 : vector<2x32xf32>
    %135 = arith.addf %130, %134 : vector<2x32xf32>
    %136 = math.tanh %135 : vector<2x32xf32>
    %cst_37 = arith.constant 1.000000e+00 : f32
    %137 = vector.broadcast %cst_37 : f32 to vector<2x32xf32>
    %138 = arith.subf %137, %129 : vector<2x32xf32>
    %139 = arith.mulf %138, %136 : vector<2x32xf32>
    %140 = arith.mulf %129, %78 : vector<2x32xf32>
    %141 = arith.addf %139, %140 : vector<2x32xf32>
    %cst_38 = arith.constant dense<0.000000e+00> : vector<2x96xf32>
    %142 = tpu.matmul %109, %8, %cst_38 {dimension_numbers = #tpu.dot_dimension_numbers<[1], [0], [0], [1], [0, 0, 1, 1], [], []>} : vector<2x32xf32>, vector<32x96xf32>, vector<2x96xf32> -> vector<2x96xf32>
    %143 = vector.extract_strided_slice %7 {offsets = [0, 2, 0], sizes = [2, 1, 96], strides = [1, 1, 1]} : vector<2x8x96xf32> to vector<2x1x96xf32>
    %144 = vector.shape_cast %143 : vector<2x1x96xf32> to vector<2x96xf32>
    %145 = vector.extract_strided_slice %144 {offsets = [0, 0], sizes = [2, 32], strides = [1, 1]} : vector<2x96xf32> to vector<2x32xf32>
    %146 = vector.extract_strided_slice %142 {offsets = [0, 0], sizes = [2, 32], strides = [1, 1]} : vector<2x96xf32> to vector<2x32xf32>
    %147 = arith.addf %145, %146 : vector<2x32xf32>
    %148 = arith.negf %147 : vector<2x32xf32>
    %149 = math.exp %148 : vector<2x32xf32>
    %cst_39 = arith.constant 1.000000e+00 : f32
    %150 = vector.broadcast %cst_39 : f32 to vector<2x32xf32>
    %151 = arith.addf %150, %149 : vector<2x32xf32>
    %152 = arith.divf %150, %151 : vector<2x32xf32>
    %153 = vector.extract_strided_slice %144 {offsets = [0, 32], sizes = [2, 32], strides = [1, 1]} : vector<2x96xf32> to vector<2x32xf32>
    %154 = vector.extract_strided_slice %142 {offsets = [0, 32], sizes = [2, 32], strides = [1, 1]} : vector<2x96xf32> to vector<2x32xf32>
    %155 = arith.addf %153, %154 : vector<2x32xf32>
    %156 = arith.negf %155 : vector<2x32xf32>
    %157 = math.exp %156 : vector<2x32xf32>
    %cst_40 = arith.constant 1.000000e+00 : f32
    %158 = vector.broadcast %cst_40 : f32 to vector<2x32xf32>
    %159 = arith.addf %158, %157 : vector<2x32xf32>
    %160 = arith.divf %158, %159 : vector<2x32xf32>
    %161 = vector.extract_strided_slice %144 {offsets = [0, 64], sizes = [2, 32], strides = [1, 1]} : vector<2x96xf32> to vector<2x32xf32>
    %162 = vector.extract_strided_slice %142 {offsets = [0, 64], sizes = [2, 32], strides = [1, 1]} : vector<2x96xf32> to vector<2x32xf32>
    %163 = vector.broadcast %12 : vector<1x32xf32> to vector<2x32xf32>
    %164 = arith.addf %162, %163 : vector<2x32xf32>
    %165 = arith.mulf %152, %164 : vector<2x32xf32>
    %166 = arith.addf %161, %165 : vector<2x32xf32>
    %167 = math.tanh %166 : vector<2x32xf32>
    %cst_41 = arith.constant 1.000000e+00 : f32
    %168 = vector.broadcast %cst_41 : f32 to vector<2x32xf32>
    %169 = arith.subf %168, %160 : vector<2x32xf32>
    %170 = arith.mulf %169, %167 : vector<2x32xf32>
    %171 = arith.mulf %160, %109 : vector<2x32xf32>
    %172 = arith.addf %170, %171 : vector<2x32xf32>
    %cst_42 = arith.constant dense<0.000000e+00> : vector<2x96xf32>
    %173 = tpu.matmul %172, %9, %cst_42 {dimension_numbers = #tpu.dot_dimension_numbers<[1], [0], [0], [1], [0, 0, 1, 1], [], []>} : vector<2x32xf32>, vector<32x96xf32>, vector<2x96xf32> -> vector<2x96xf32>
    %174 = vector.broadcast %11 : vector<1x96xf32> to vector<2x96xf32>
    %175 = arith.addf %173, %174 : vector<2x96xf32>
    %cst_43 = arith.constant dense<0.000000e+00> : vector<2x96xf32>
    %176 = tpu.matmul %141, %10, %cst_43 {dimension_numbers = #tpu.dot_dimension_numbers<[1], [0], [0], [1], [0, 0, 1, 1], [], []>} : vector<2x32xf32>, vector<32x96xf32>, vector<2x96xf32> -> vector<2x96xf32>
    %177 = vector.extract_strided_slice %175 {offsets = [0, 0], sizes = [2, 32], strides = [1, 1]} : vector<2x96xf32> to vector<2x32xf32>
    %178 = vector.extract_strided_slice %176 {offsets = [0, 0], sizes = [2, 32], strides = [1, 1]} : vector<2x96xf32> to vector<2x32xf32>
    %179 = arith.addf %177, %178 : vector<2x32xf32>
    %180 = arith.negf %179 : vector<2x32xf32>
    %181 = math.exp %180 : vector<2x32xf32>
    %cst_44 = arith.constant 1.000000e+00 : f32
    %182 = vector.broadcast %cst_44 : f32 to vector<2x32xf32>
    %183 = arith.addf %182, %181 : vector<2x32xf32>
    %184 = arith.divf %182, %183 : vector<2x32xf32>
    %185 = vector.extract_strided_slice %175 {offsets = [0, 32], sizes = [2, 32], strides = [1, 1]} : vector<2x96xf32> to vector<2x32xf32>
    %186 = vector.extract_strided_slice %176 {offsets = [0, 32], sizes = [2, 32], strides = [1, 1]} : vector<2x96xf32> to vector<2x32xf32>
    %187 = arith.addf %185, %186 : vector<2x32xf32>
    %188 = arith.negf %187 : vector<2x32xf32>
    %189 = math.exp %188 : vector<2x32xf32>
    %cst_45 = arith.constant 1.000000e+00 : f32
    %190 = vector.broadcast %cst_45 : f32 to vector<2x32xf32>
    %191 = arith.addf %190, %189 : vector<2x32xf32>
    %192 = arith.divf %190, %191 : vector<2x32xf32>
    %193 = vector.extract_strided_slice %175 {offsets = [0, 64], sizes = [2, 32], strides = [1, 1]} : vector<2x96xf32> to vector<2x32xf32>
    %194 = vector.extract_strided_slice %176 {offsets = [0, 64], sizes = [2, 32], strides = [1, 1]} : vector<2x96xf32> to vector<2x32xf32>
    %195 = vector.broadcast %13 : vector<1x32xf32> to vector<2x32xf32>
    %196 = arith.addf %194, %195 : vector<2x32xf32>
    %197 = arith.mulf %184, %196 : vector<2x32xf32>
    %198 = arith.addf %193, %197 : vector<2x32xf32>
    %199 = math.tanh %198 : vector<2x32xf32>
    %cst_46 = arith.constant 1.000000e+00 : f32
    %200 = vector.broadcast %cst_46 : f32 to vector<2x32xf32>
    %201 = arith.subf %200, %192 : vector<2x32xf32>
    %202 = arith.mulf %201, %199 : vector<2x32xf32>
    %203 = arith.mulf %192, %141 : vector<2x32xf32>
    %204 = arith.addf %202, %203 : vector<2x32xf32>
    %cst_47 = arith.constant dense<0.000000e+00> : vector<2x96xf32>
    %205 = tpu.matmul %172, %8, %cst_47 {dimension_numbers = #tpu.dot_dimension_numbers<[1], [0], [0], [1], [0, 0, 1, 1], [], []>} : vector<2x32xf32>, vector<32x96xf32>, vector<2x96xf32> -> vector<2x96xf32>
    %206 = vector.extract_strided_slice %7 {offsets = [0, 3, 0], sizes = [2, 1, 96], strides = [1, 1, 1]} : vector<2x8x96xf32> to vector<2x1x96xf32>
    %207 = vector.shape_cast %206 : vector<2x1x96xf32> to vector<2x96xf32>
    %208 = vector.extract_strided_slice %207 {offsets = [0, 0], sizes = [2, 32], strides = [1, 1]} : vector<2x96xf32> to vector<2x32xf32>
    %209 = vector.extract_strided_slice %205 {offsets = [0, 0], sizes = [2, 32], strides = [1, 1]} : vector<2x96xf32> to vector<2x32xf32>
    %210 = arith.addf %208, %209 : vector<2x32xf32>
    %211 = arith.negf %210 : vector<2x32xf32>
    %212 = math.exp %211 : vector<2x32xf32>
    %cst_48 = arith.constant 1.000000e+00 : f32
    %213 = vector.broadcast %cst_48 : f32 to vector<2x32xf32>
    %214 = arith.addf %213, %212 : vector<2x32xf32>
    %215 = arith.divf %213, %214 : vector<2x32xf32>
    %216 = vector.extract_strided_slice %207 {offsets = [0, 32], sizes = [2, 32], strides = [1, 1]} : vector<2x96xf32> to vector<2x32xf32>
    %217 = vector.extract_strided_slice %205 {offsets = [0, 32], sizes = [2, 32], strides = [1, 1]} : vector<2x96xf32> to vector<2x32xf32>
    %218 = arith.addf %216, %217 : vector<2x32xf32>
    %219 = arith.negf %218 : vector<2x32xf32>
    %220 = math.exp %219 : vector<2x32xf32>
    %cst_49 = arith.constant 1.000000e+00 : f32
    %221 = vector.broadcast %cst_49 : f32 to vector<2x32xf32>
    %222 = arith.addf %221, %220 : vector<2x32xf32>
    %223 = arith.divf %221, %222 : vector<2x32xf32>
    %224 = vector.extract_strided_slice %207 {offsets = [0, 64], sizes = [2, 32], strides = [1, 1]} : vector<2x96xf32> to vector<2x32xf32>
    %225 = vector.extract_strided_slice %205 {offsets = [0, 64], sizes = [2, 32], strides = [1, 1]} : vector<2x96xf32> to vector<2x32xf32>
    %226 = vector.broadcast %12 : vector<1x32xf32> to vector<2x32xf32>
    %227 = arith.addf %225, %226 : vector<2x32xf32>
    %228 = arith.mulf %215, %227 : vector<2x32xf32>
    %229 = arith.addf %224, %228 : vector<2x32xf32>
    %230 = math.tanh %229 : vector<2x32xf32>
    %cst_50 = arith.constant 1.000000e+00 : f32
    %231 = vector.broadcast %cst_50 : f32 to vector<2x32xf32>
    %232 = arith.subf %231, %223 : vector<2x32xf32>
    %233 = arith.mulf %232, %230 : vector<2x32xf32>
    %234 = arith.mulf %223, %172 : vector<2x32xf32>
    %235 = arith.addf %233, %234 : vector<2x32xf32>
    %cst_51 = arith.constant dense<0.000000e+00> : vector<2x96xf32>
    %236 = tpu.matmul %235, %9, %cst_51 {dimension_numbers = #tpu.dot_dimension_numbers<[1], [0], [0], [1], [0, 0, 1, 1], [], []>} : vector<2x32xf32>, vector<32x96xf32>, vector<2x96xf32> -> vector<2x96xf32>
    %237 = vector.broadcast %11 : vector<1x96xf32> to vector<2x96xf32>
    %238 = arith.addf %236, %237 : vector<2x96xf32>
    %cst_52 = arith.constant dense<0.000000e+00> : vector<2x96xf32>
    %239 = tpu.matmul %204, %10, %cst_52 {dimension_numbers = #tpu.dot_dimension_numbers<[1], [0], [0], [1], [0, 0, 1, 1], [], []>} : vector<2x32xf32>, vector<32x96xf32>, vector<2x96xf32> -> vector<2x96xf32>
    %240 = vector.extract_strided_slice %238 {offsets = [0, 0], sizes = [2, 32], strides = [1, 1]} : vector<2x96xf32> to vector<2x32xf32>
    %241 = vector.extract_strided_slice %239 {offsets = [0, 0], sizes = [2, 32], strides = [1, 1]} : vector<2x96xf32> to vector<2x32xf32>
    %242 = arith.addf %240, %241 : vector<2x32xf32>
    %243 = arith.negf %242 : vector<2x32xf32>
    %244 = math.exp %243 : vector<2x32xf32>
    %cst_53 = arith.constant 1.000000e+00 : f32
    %245 = vector.broadcast %cst_53 : f32 to vector<2x32xf32>
    %246 = arith.addf %245, %244 : vector<2x32xf32>
    %247 = arith.divf %245, %246 : vector<2x32xf32>
    %248 = vector.extract_strided_slice %238 {offsets = [0, 32], sizes = [2, 32], strides = [1, 1]} : vector<2x96xf32> to vector<2x32xf32>
    %249 = vector.extract_strided_slice %239 {offsets = [0, 32], sizes = [2, 32], strides = [1, 1]} : vector<2x96xf32> to vector<2x32xf32>
    %250 = arith.addf %248, %249 : vector<2x32xf32>
    %251 = arith.negf %250 : vector<2x32xf32>
    %252 = math.exp %251 : vector<2x32xf32>
    %cst_54 = arith.constant 1.000000e+00 : f32
    %253 = vector.broadcast %cst_54 : f32 to vector<2x32xf32>
    %254 = arith.addf %253, %252 : vector<2x32xf32>
    %255 = arith.divf %253, %254 : vector<2x32xf32>
    %256 = vector.extract_strided_slice %238 {offsets = [0, 64], sizes = [2, 32], strides = [1, 1]} : vector<2x96xf32> to vector<2x32xf32>
    %257 = vector.extract_strided_slice %239 {offsets = [0, 64], sizes = [2, 32], strides = [1, 1]} : vector<2x96xf32> to vector<2x32xf32>
    %258 = vector.broadcast %13 : vector<1x32xf32> to vector<2x32xf32>
    %259 = arith.addf %257, %258 : vector<2x32xf32>
    %260 = arith.mulf %247, %259 : vector<2x32xf32>
    %261 = arith.addf %256, %260 : vector<2x32xf32>
    %262 = math.tanh %261 : vector<2x32xf32>
    %cst_55 = arith.constant 1.000000e+00 : f32
    %263 = vector.broadcast %cst_55 : f32 to vector<2x32xf32>
    %264 = arith.subf %263, %255 : vector<2x32xf32>
    %265 = arith.mulf %264, %262 : vector<2x32xf32>
    %266 = arith.mulf %255, %204 : vector<2x32xf32>
    %267 = arith.addf %265, %266 : vector<2x32xf32>
    %cst_56 = arith.constant dense<0.000000e+00> : vector<2x96xf32>
    %268 = tpu.matmul %235, %8, %cst_56 {dimension_numbers = #tpu.dot_dimension_numbers<[1], [0], [0], [1], [0, 0, 1, 1], [], []>} : vector<2x32xf32>, vector<32x96xf32>, vector<2x96xf32> -> vector<2x96xf32>
    %269 = vector.extract_strided_slice %7 {offsets = [0, 4, 0], sizes = [2, 1, 96], strides = [1, 1, 1]} : vector<2x8x96xf32> to vector<2x1x96xf32>
    %270 = vector.shape_cast %269 : vector<2x1x96xf32> to vector<2x96xf32>
    %271 = vector.extract_strided_slice %270 {offsets = [0, 0], sizes = [2, 32], strides = [1, 1]} : vector<2x96xf32> to vector<2x32xf32>
    %272 = vector.extract_strided_slice %268 {offsets = [0, 0], sizes = [2, 32], strides = [1, 1]} : vector<2x96xf32> to vector<2x32xf32>
    %273 = arith.addf %271, %272 : vector<2x32xf32>
    %274 = arith.negf %273 : vector<2x32xf32>
    %275 = math.exp %274 : vector<2x32xf32>
    %cst_57 = arith.constant 1.000000e+00 : f32
    %276 = vector.broadcast %cst_57 : f32 to vector<2x32xf32>
    %277 = arith.addf %276, %275 : vector<2x32xf32>
    %278 = arith.divf %276, %277 : vector<2x32xf32>
    %279 = vector.extract_strided_slice %270 {offsets = [0, 32], sizes = [2, 32], strides = [1, 1]} : vector<2x96xf32> to vector<2x32xf32>
    %280 = vector.extract_strided_slice %268 {offsets = [0, 32], sizes = [2, 32], strides = [1, 1]} : vector<2x96xf32> to vector<2x32xf32>
    %281 = arith.addf %279, %280 : vector<2x32xf32>
    %282 = arith.negf %281 : vector<2x32xf32>
    %283 = math.exp %282 : vector<2x32xf32>
    %cst_58 = arith.constant 1.000000e+00 : f32
    %284 = vector.broadcast %cst_58 : f32 to vector<2x32xf32>
    %285 = arith.addf %284, %283 : vector<2x32xf32>
    %286 = arith.divf %284, %285 : vector<2x32xf32>
    %287 = vector.extract_strided_slice %270 {offsets = [0, 64], sizes = [2, 32], strides = [1, 1]} : vector<2x96xf32> to vector<2x32xf32>
    %288 = vector.extract_strided_slice %268 {offsets = [0, 64], sizes = [2, 32], strides = [1, 1]} : vector<2x96xf32> to vector<2x32xf32>
    %289 = vector.broadcast %12 : vector<1x32xf32> to vector<2x32xf32>
    %290 = arith.addf %288, %289 : vector<2x32xf32>
    %291 = arith.mulf %278, %290 : vector<2x32xf32>
    %292 = arith.addf %287, %291 : vector<2x32xf32>
    %293 = math.tanh %292 : vector<2x32xf32>
    %cst_59 = arith.constant 1.000000e+00 : f32
    %294 = vector.broadcast %cst_59 : f32 to vector<2x32xf32>
    %295 = arith.subf %294, %286 : vector<2x32xf32>
    %296 = arith.mulf %295, %293 : vector<2x32xf32>
    %297 = arith.mulf %286, %235 : vector<2x32xf32>
    %298 = arith.addf %296, %297 : vector<2x32xf32>
    %cst_60 = arith.constant dense<0.000000e+00> : vector<2x96xf32>
    %299 = tpu.matmul %298, %9, %cst_60 {dimension_numbers = #tpu.dot_dimension_numbers<[1], [0], [0], [1], [0, 0, 1, 1], [], []>} : vector<2x32xf32>, vector<32x96xf32>, vector<2x96xf32> -> vector<2x96xf32>
    %300 = vector.broadcast %11 : vector<1x96xf32> to vector<2x96xf32>
    %301 = arith.addf %299, %300 : vector<2x96xf32>
    %cst_61 = arith.constant dense<0.000000e+00> : vector<2x96xf32>
    %302 = tpu.matmul %267, %10, %cst_61 {dimension_numbers = #tpu.dot_dimension_numbers<[1], [0], [0], [1], [0, 0, 1, 1], [], []>} : vector<2x32xf32>, vector<32x96xf32>, vector<2x96xf32> -> vector<2x96xf32>
    %303 = vector.extract_strided_slice %301 {offsets = [0, 0], sizes = [2, 32], strides = [1, 1]} : vector<2x96xf32> to vector<2x32xf32>
    %304 = vector.extract_strided_slice %302 {offsets = [0, 0], sizes = [2, 32], strides = [1, 1]} : vector<2x96xf32> to vector<2x32xf32>
    %305 = arith.addf %303, %304 : vector<2x32xf32>
    %306 = arith.negf %305 : vector<2x32xf32>
    %307 = math.exp %306 : vector<2x32xf32>
    %cst_62 = arith.constant 1.000000e+00 : f32
    %308 = vector.broadcast %cst_62 : f32 to vector<2x32xf32>
    %309 = arith.addf %308, %307 : vector<2x32xf32>
    %310 = arith.divf %308, %309 : vector<2x32xf32>
    %311 = vector.extract_strided_slice %301 {offsets = [0, 32], sizes = [2, 32], strides = [1, 1]} : vector<2x96xf32> to vector<2x32xf32>
    %312 = vector.extract_strided_slice %302 {offsets = [0, 32], sizes = [2, 32], strides = [1, 1]} : vector<2x96xf32> to vector<2x32xf32>
    %313 = arith.addf %311, %312 : vector<2x32xf32>
    %314 = arith.negf %313 : vector<2x32xf32>
    %315 = math.exp %314 : vector<2x32xf32>
    %cst_63 = arith.constant 1.000000e+00 : f32
    %316 = vector.broadcast %cst_63 : f32 to vector<2x32xf32>
    %317 = arith.addf %316, %315 : vector<2x32xf32>
    %318 = arith.divf %316, %317 : vector<2x32xf32>
    %319 = vector.extract_strided_slice %301 {offsets = [0, 64], sizes = [2, 32], strides = [1, 1]} : vector<2x96xf32> to vector<2x32xf32>
    %320 = vector.extract_strided_slice %302 {offsets = [0, 64], sizes = [2, 32], strides = [1, 1]} : vector<2x96xf32> to vector<2x32xf32>
    %321 = vector.broadcast %13 : vector<1x32xf32> to vector<2x32xf32>
    %322 = arith.addf %320, %321 : vector<2x32xf32>
    %323 = arith.mulf %310, %322 : vector<2x32xf32>
    %324 = arith.addf %319, %323 : vector<2x32xf32>
    %325 = math.tanh %324 : vector<2x32xf32>
    %cst_64 = arith.constant 1.000000e+00 : f32
    %326 = vector.broadcast %cst_64 : f32 to vector<2x32xf32>
    %327 = arith.subf %326, %318 : vector<2x32xf32>
    %328 = arith.mulf %327, %325 : vector<2x32xf32>
    %329 = arith.mulf %318, %267 : vector<2x32xf32>
    %330 = arith.addf %328, %329 : vector<2x32xf32>
    %cst_65 = arith.constant dense<0.000000e+00> : vector<2x96xf32>
    %331 = tpu.matmul %298, %8, %cst_65 {dimension_numbers = #tpu.dot_dimension_numbers<[1], [0], [0], [1], [0, 0, 1, 1], [], []>} : vector<2x32xf32>, vector<32x96xf32>, vector<2x96xf32> -> vector<2x96xf32>
    %332 = vector.extract_strided_slice %7 {offsets = [0, 5, 0], sizes = [2, 1, 96], strides = [1, 1, 1]} : vector<2x8x96xf32> to vector<2x1x96xf32>
    %333 = vector.shape_cast %332 : vector<2x1x96xf32> to vector<2x96xf32>
    %334 = vector.extract_strided_slice %333 {offsets = [0, 0], sizes = [2, 32], strides = [1, 1]} : vector<2x96xf32> to vector<2x32xf32>
    %335 = vector.extract_strided_slice %331 {offsets = [0, 0], sizes = [2, 32], strides = [1, 1]} : vector<2x96xf32> to vector<2x32xf32>
    %336 = arith.addf %334, %335 : vector<2x32xf32>
    %337 = arith.negf %336 : vector<2x32xf32>
    %338 = math.exp %337 : vector<2x32xf32>
    %cst_66 = arith.constant 1.000000e+00 : f32
    %339 = vector.broadcast %cst_66 : f32 to vector<2x32xf32>
    %340 = arith.addf %339, %338 : vector<2x32xf32>
    %341 = arith.divf %339, %340 : vector<2x32xf32>
    %342 = vector.extract_strided_slice %333 {offsets = [0, 32], sizes = [2, 32], strides = [1, 1]} : vector<2x96xf32> to vector<2x32xf32>
    %343 = vector.extract_strided_slice %331 {offsets = [0, 32], sizes = [2, 32], strides = [1, 1]} : vector<2x96xf32> to vector<2x32xf32>
    %344 = arith.addf %342, %343 : vector<2x32xf32>
    %345 = arith.negf %344 : vector<2x32xf32>
    %346 = math.exp %345 : vector<2x32xf32>
    %cst_67 = arith.constant 1.000000e+00 : f32
    %347 = vector.broadcast %cst_67 : f32 to vector<2x32xf32>
    %348 = arith.addf %347, %346 : vector<2x32xf32>
    %349 = arith.divf %347, %348 : vector<2x32xf32>
    %350 = vector.extract_strided_slice %333 {offsets = [0, 64], sizes = [2, 32], strides = [1, 1]} : vector<2x96xf32> to vector<2x32xf32>
    %351 = vector.extract_strided_slice %331 {offsets = [0, 64], sizes = [2, 32], strides = [1, 1]} : vector<2x96xf32> to vector<2x32xf32>
    %352 = vector.broadcast %12 : vector<1x32xf32> to vector<2x32xf32>
    %353 = arith.addf %351, %352 : vector<2x32xf32>
    %354 = arith.mulf %341, %353 : vector<2x32xf32>
    %355 = arith.addf %350, %354 : vector<2x32xf32>
    %356 = math.tanh %355 : vector<2x32xf32>
    %cst_68 = arith.constant 1.000000e+00 : f32
    %357 = vector.broadcast %cst_68 : f32 to vector<2x32xf32>
    %358 = arith.subf %357, %349 : vector<2x32xf32>
    %359 = arith.mulf %358, %356 : vector<2x32xf32>
    %360 = arith.mulf %349, %298 : vector<2x32xf32>
    %361 = arith.addf %359, %360 : vector<2x32xf32>
    %cst_69 = arith.constant dense<0.000000e+00> : vector<2x96xf32>
    %362 = tpu.matmul %361, %9, %cst_69 {dimension_numbers = #tpu.dot_dimension_numbers<[1], [0], [0], [1], [0, 0, 1, 1], [], []>} : vector<2x32xf32>, vector<32x96xf32>, vector<2x96xf32> -> vector<2x96xf32>
    %363 = vector.broadcast %11 : vector<1x96xf32> to vector<2x96xf32>
    %364 = arith.addf %362, %363 : vector<2x96xf32>
    %cst_70 = arith.constant dense<0.000000e+00> : vector<2x96xf32>
    %365 = tpu.matmul %330, %10, %cst_70 {dimension_numbers = #tpu.dot_dimension_numbers<[1], [0], [0], [1], [0, 0, 1, 1], [], []>} : vector<2x32xf32>, vector<32x96xf32>, vector<2x96xf32> -> vector<2x96xf32>
    %366 = vector.extract_strided_slice %364 {offsets = [0, 0], sizes = [2, 32], strides = [1, 1]} : vector<2x96xf32> to vector<2x32xf32>
    %367 = vector.extract_strided_slice %365 {offsets = [0, 0], sizes = [2, 32], strides = [1, 1]} : vector<2x96xf32> to vector<2x32xf32>
    %368 = arith.addf %366, %367 : vector<2x32xf32>
    %369 = arith.negf %368 : vector<2x32xf32>
    %370 = math.exp %369 : vector<2x32xf32>
    %cst_71 = arith.constant 1.000000e+00 : f32
    %371 = vector.broadcast %cst_71 : f32 to vector<2x32xf32>
    %372 = arith.addf %371, %370 : vector<2x32xf32>
    %373 = arith.divf %371, %372 : vector<2x32xf32>
    %374 = vector.extract_strided_slice %364 {offsets = [0, 32], sizes = [2, 32], strides = [1, 1]} : vector<2x96xf32> to vector<2x32xf32>
    %375 = vector.extract_strided_slice %365 {offsets = [0, 32], sizes = [2, 32], strides = [1, 1]} : vector<2x96xf32> to vector<2x32xf32>
    %376 = arith.addf %374, %375 : vector<2x32xf32>
    %377 = arith.negf %376 : vector<2x32xf32>
    %378 = math.exp %377 : vector<2x32xf32>
    %cst_72 = arith.constant 1.000000e+00 : f32
    %379 = vector.broadcast %cst_72 : f32 to vector<2x32xf32>
    %380 = arith.addf %379, %378 : vector<2x32xf32>
    %381 = arith.divf %379, %380 : vector<2x32xf32>
    %382 = vector.extract_strided_slice %364 {offsets = [0, 64], sizes = [2, 32], strides = [1, 1]} : vector<2x96xf32> to vector<2x32xf32>
    %383 = vector.extract_strided_slice %365 {offsets = [0, 64], sizes = [2, 32], strides = [1, 1]} : vector<2x96xf32> to vector<2x32xf32>
    %384 = vector.broadcast %13 : vector<1x32xf32> to vector<2x32xf32>
    %385 = arith.addf %383, %384 : vector<2x32xf32>
    %386 = arith.mulf %373, %385 : vector<2x32xf32>
    %387 = arith.addf %382, %386 : vector<2x32xf32>
    %388 = math.tanh %387 : vector<2x32xf32>
    %cst_73 = arith.constant 1.000000e+00 : f32
    %389 = vector.broadcast %cst_73 : f32 to vector<2x32xf32>
    %390 = arith.subf %389, %381 : vector<2x32xf32>
    %391 = arith.mulf %390, %388 : vector<2x32xf32>
    %392 = arith.mulf %381, %330 : vector<2x32xf32>
    %393 = arith.addf %391, %392 : vector<2x32xf32>
    %cst_74 = arith.constant dense<0.000000e+00> : vector<2x96xf32>
    %394 = tpu.matmul %361, %8, %cst_74 {dimension_numbers = #tpu.dot_dimension_numbers<[1], [0], [0], [1], [0, 0, 1, 1], [], []>} : vector<2x32xf32>, vector<32x96xf32>, vector<2x96xf32> -> vector<2x96xf32>
    %395 = vector.extract_strided_slice %7 {offsets = [0, 6, 0], sizes = [2, 1, 96], strides = [1, 1, 1]} : vector<2x8x96xf32> to vector<2x1x96xf32>
    %396 = vector.shape_cast %395 : vector<2x1x96xf32> to vector<2x96xf32>
    %397 = vector.extract_strided_slice %396 {offsets = [0, 0], sizes = [2, 32], strides = [1, 1]} : vector<2x96xf32> to vector<2x32xf32>
    %398 = vector.extract_strided_slice %394 {offsets = [0, 0], sizes = [2, 32], strides = [1, 1]} : vector<2x96xf32> to vector<2x32xf32>
    %399 = arith.addf %397, %398 : vector<2x32xf32>
    %400 = arith.negf %399 : vector<2x32xf32>
    %401 = math.exp %400 : vector<2x32xf32>
    %cst_75 = arith.constant 1.000000e+00 : f32
    %402 = vector.broadcast %cst_75 : f32 to vector<2x32xf32>
    %403 = arith.addf %402, %401 : vector<2x32xf32>
    %404 = arith.divf %402, %403 : vector<2x32xf32>
    %405 = vector.extract_strided_slice %396 {offsets = [0, 32], sizes = [2, 32], strides = [1, 1]} : vector<2x96xf32> to vector<2x32xf32>
    %406 = vector.extract_strided_slice %394 {offsets = [0, 32], sizes = [2, 32], strides = [1, 1]} : vector<2x96xf32> to vector<2x32xf32>
    %407 = arith.addf %405, %406 : vector<2x32xf32>
    %408 = arith.negf %407 : vector<2x32xf32>
    %409 = math.exp %408 : vector<2x32xf32>
    %cst_76 = arith.constant 1.000000e+00 : f32
    %410 = vector.broadcast %cst_76 : f32 to vector<2x32xf32>
    %411 = arith.addf %410, %409 : vector<2x32xf32>
    %412 = arith.divf %410, %411 : vector<2x32xf32>
    %413 = vector.extract_strided_slice %396 {offsets = [0, 64], sizes = [2, 32], strides = [1, 1]} : vector<2x96xf32> to vector<2x32xf32>
    %414 = vector.extract_strided_slice %394 {offsets = [0, 64], sizes = [2, 32], strides = [1, 1]} : vector<2x96xf32> to vector<2x32xf32>
    %415 = vector.broadcast %12 : vector<1x32xf32> to vector<2x32xf32>
    %416 = arith.addf %414, %415 : vector<2x32xf32>
    %417 = arith.mulf %404, %416 : vector<2x32xf32>
    %418 = arith.addf %413, %417 : vector<2x32xf32>
    %419 = math.tanh %418 : vector<2x32xf32>
    %cst_77 = arith.constant 1.000000e+00 : f32
    %420 = vector.broadcast %cst_77 : f32 to vector<2x32xf32>
    %421 = arith.subf %420, %412 : vector<2x32xf32>
    %422 = arith.mulf %421, %419 : vector<2x32xf32>
    %423 = arith.mulf %412, %361 : vector<2x32xf32>
    %424 = arith.addf %422, %423 : vector<2x32xf32>
    %cst_78 = arith.constant dense<0.000000e+00> : vector<2x96xf32>
    %425 = tpu.matmul %424, %9, %cst_78 {dimension_numbers = #tpu.dot_dimension_numbers<[1], [0], [0], [1], [0, 0, 1, 1], [], []>} : vector<2x32xf32>, vector<32x96xf32>, vector<2x96xf32> -> vector<2x96xf32>
    %426 = vector.broadcast %11 : vector<1x96xf32> to vector<2x96xf32>
    %427 = arith.addf %425, %426 : vector<2x96xf32>
    %cst_79 = arith.constant dense<0.000000e+00> : vector<2x96xf32>
    %428 = tpu.matmul %393, %10, %cst_79 {dimension_numbers = #tpu.dot_dimension_numbers<[1], [0], [0], [1], [0, 0, 1, 1], [], []>} : vector<2x32xf32>, vector<32x96xf32>, vector<2x96xf32> -> vector<2x96xf32>
    %429 = vector.extract_strided_slice %427 {offsets = [0, 0], sizes = [2, 32], strides = [1, 1]} : vector<2x96xf32> to vector<2x32xf32>
    %430 = vector.extract_strided_slice %428 {offsets = [0, 0], sizes = [2, 32], strides = [1, 1]} : vector<2x96xf32> to vector<2x32xf32>
    %431 = arith.addf %429, %430 : vector<2x32xf32>
    %432 = arith.negf %431 : vector<2x32xf32>
    %433 = math.exp %432 : vector<2x32xf32>
    %cst_80 = arith.constant 1.000000e+00 : f32
    %434 = vector.broadcast %cst_80 : f32 to vector<2x32xf32>
    %435 = arith.addf %434, %433 : vector<2x32xf32>
    %436 = arith.divf %434, %435 : vector<2x32xf32>
    %437 = vector.extract_strided_slice %427 {offsets = [0, 32], sizes = [2, 32], strides = [1, 1]} : vector<2x96xf32> to vector<2x32xf32>
    %438 = vector.extract_strided_slice %428 {offsets = [0, 32], sizes = [2, 32], strides = [1, 1]} : vector<2x96xf32> to vector<2x32xf32>
    %439 = arith.addf %437, %438 : vector<2x32xf32>
    %440 = arith.negf %439 : vector<2x32xf32>
    %441 = math.exp %440 : vector<2x32xf32>
    %cst_81 = arith.constant 1.000000e+00 : f32
    %442 = vector.broadcast %cst_81 : f32 to vector<2x32xf32>
    %443 = arith.addf %442, %441 : vector<2x32xf32>
    %444 = arith.divf %442, %443 : vector<2x32xf32>
    %445 = vector.extract_strided_slice %427 {offsets = [0, 64], sizes = [2, 32], strides = [1, 1]} : vector<2x96xf32> to vector<2x32xf32>
    %446 = vector.extract_strided_slice %428 {offsets = [0, 64], sizes = [2, 32], strides = [1, 1]} : vector<2x96xf32> to vector<2x32xf32>
    %447 = vector.broadcast %13 : vector<1x32xf32> to vector<2x32xf32>
    %448 = arith.addf %446, %447 : vector<2x32xf32>
    %449 = arith.mulf %436, %448 : vector<2x32xf32>
    %450 = arith.addf %445, %449 : vector<2x32xf32>
    %451 = math.tanh %450 : vector<2x32xf32>
    %cst_82 = arith.constant 1.000000e+00 : f32
    %452 = vector.broadcast %cst_82 : f32 to vector<2x32xf32>
    %453 = arith.subf %452, %444 : vector<2x32xf32>
    %454 = arith.mulf %453, %451 : vector<2x32xf32>
    %455 = arith.mulf %444, %393 : vector<2x32xf32>
    %456 = arith.addf %454, %455 : vector<2x32xf32>
    %cst_83 = arith.constant dense<0.000000e+00> : vector<2x96xf32>
    %457 = tpu.matmul %424, %8, %cst_83 {dimension_numbers = #tpu.dot_dimension_numbers<[1], [0], [0], [1], [0, 0, 1, 1], [], []>} : vector<2x32xf32>, vector<32x96xf32>, vector<2x96xf32> -> vector<2x96xf32>
    %458 = vector.extract_strided_slice %7 {offsets = [0, 7, 0], sizes = [2, 1, 96], strides = [1, 1, 1]} : vector<2x8x96xf32> to vector<2x1x96xf32>
    %459 = vector.shape_cast %458 : vector<2x1x96xf32> to vector<2x96xf32>
    %460 = vector.extract_strided_slice %459 {offsets = [0, 0], sizes = [2, 32], strides = [1, 1]} : vector<2x96xf32> to vector<2x32xf32>
    %461 = vector.extract_strided_slice %457 {offsets = [0, 0], sizes = [2, 32], strides = [1, 1]} : vector<2x96xf32> to vector<2x32xf32>
    %462 = arith.addf %460, %461 : vector<2x32xf32>
    %463 = arith.negf %462 : vector<2x32xf32>
    %464 = math.exp %463 : vector<2x32xf32>
    %cst_84 = arith.constant 1.000000e+00 : f32
    %465 = vector.broadcast %cst_84 : f32 to vector<2x32xf32>
    %466 = arith.addf %465, %464 : vector<2x32xf32>
    %467 = arith.divf %465, %466 : vector<2x32xf32>
    %468 = vector.extract_strided_slice %459 {offsets = [0, 32], sizes = [2, 32], strides = [1, 1]} : vector<2x96xf32> to vector<2x32xf32>
    %469 = vector.extract_strided_slice %457 {offsets = [0, 32], sizes = [2, 32], strides = [1, 1]} : vector<2x96xf32> to vector<2x32xf32>
    %470 = arith.addf %468, %469 : vector<2x32xf32>
    %471 = arith.negf %470 : vector<2x32xf32>
    %472 = math.exp %471 : vector<2x32xf32>
    %cst_85 = arith.constant 1.000000e+00 : f32
    %473 = vector.broadcast %cst_85 : f32 to vector<2x32xf32>
    %474 = arith.addf %473, %472 : vector<2x32xf32>
    %475 = arith.divf %473, %474 : vector<2x32xf32>
    %476 = vector.extract_strided_slice %459 {offsets = [0, 64], sizes = [2, 32], strides = [1, 1]} : vector<2x96xf32> to vector<2x32xf32>
    %477 = vector.extract_strided_slice %457 {offsets = [0, 64], sizes = [2, 32], strides = [1, 1]} : vector<2x96xf32> to vector<2x32xf32>
    %478 = vector.broadcast %12 : vector<1x32xf32> to vector<2x32xf32>
    %479 = arith.addf %477, %478 : vector<2x32xf32>
    %480 = arith.mulf %467, %479 : vector<2x32xf32>
    %481 = arith.addf %476, %480 : vector<2x32xf32>
    %482 = math.tanh %481 : vector<2x32xf32>
    %cst_86 = arith.constant 1.000000e+00 : f32
    %483 = vector.broadcast %cst_86 : f32 to vector<2x32xf32>
    %484 = arith.subf %483, %475 : vector<2x32xf32>
    %485 = arith.mulf %484, %482 : vector<2x32xf32>
    %486 = arith.mulf %475, %424 : vector<2x32xf32>
    %487 = arith.addf %485, %486 : vector<2x32xf32>
    %cst_87 = arith.constant dense<0.000000e+00> : vector<2x96xf32>
    %488 = tpu.matmul %487, %9, %cst_87 {dimension_numbers = #tpu.dot_dimension_numbers<[1], [0], [0], [1], [0, 0, 1, 1], [], []>} : vector<2x32xf32>, vector<32x96xf32>, vector<2x96xf32> -> vector<2x96xf32>
    %489 = vector.broadcast %11 : vector<1x96xf32> to vector<2x96xf32>
    %490 = arith.addf %488, %489 : vector<2x96xf32>
    %cst_88 = arith.constant dense<0.000000e+00> : vector<2x96xf32>
    %491 = tpu.matmul %456, %10, %cst_88 {dimension_numbers = #tpu.dot_dimension_numbers<[1], [0], [0], [1], [0, 0, 1, 1], [], []>} : vector<2x32xf32>, vector<32x96xf32>, vector<2x96xf32> -> vector<2x96xf32>
    %492 = vector.extract_strided_slice %490 {offsets = [0, 0], sizes = [2, 32], strides = [1, 1]} : vector<2x96xf32> to vector<2x32xf32>
    %493 = vector.extract_strided_slice %491 {offsets = [0, 0], sizes = [2, 32], strides = [1, 1]} : vector<2x96xf32> to vector<2x32xf32>
    %494 = arith.addf %492, %493 : vector<2x32xf32>
    %495 = arith.negf %494 : vector<2x32xf32>
    %496 = math.exp %495 : vector<2x32xf32>
    %cst_89 = arith.constant 1.000000e+00 : f32
    %497 = vector.broadcast %cst_89 : f32 to vector<2x32xf32>
    %498 = arith.addf %497, %496 : vector<2x32xf32>
    %499 = arith.divf %497, %498 : vector<2x32xf32>
    %500 = vector.extract_strided_slice %490 {offsets = [0, 32], sizes = [2, 32], strides = [1, 1]} : vector<2x96xf32> to vector<2x32xf32>
    %501 = vector.extract_strided_slice %491 {offsets = [0, 32], sizes = [2, 32], strides = [1, 1]} : vector<2x96xf32> to vector<2x32xf32>
    %502 = arith.addf %500, %501 : vector<2x32xf32>
    %503 = arith.negf %502 : vector<2x32xf32>
    %504 = math.exp %503 : vector<2x32xf32>
    %cst_90 = arith.constant 1.000000e+00 : f32
    %505 = vector.broadcast %cst_90 : f32 to vector<2x32xf32>
    %506 = arith.addf %505, %504 : vector<2x32xf32>
    %507 = arith.divf %505, %506 : vector<2x32xf32>
    %508 = vector.extract_strided_slice %490 {offsets = [0, 64], sizes = [2, 32], strides = [1, 1]} : vector<2x96xf32> to vector<2x32xf32>
    %509 = vector.extract_strided_slice %491 {offsets = [0, 64], sizes = [2, 32], strides = [1, 1]} : vector<2x96xf32> to vector<2x32xf32>
    %510 = vector.broadcast %13 : vector<1x32xf32> to vector<2x32xf32>
    %511 = arith.addf %509, %510 : vector<2x32xf32>
    %512 = arith.mulf %499, %511 : vector<2x32xf32>
    %513 = arith.addf %508, %512 : vector<2x32xf32>
    %514 = math.tanh %513 : vector<2x32xf32>
    %cst_91 = arith.constant 1.000000e+00 : f32
    %515 = vector.broadcast %cst_91 : f32 to vector<2x32xf32>
    %516 = arith.subf %515, %507 : vector<2x32xf32>
    %517 = arith.mulf %516, %514 : vector<2x32xf32>
    %518 = arith.mulf %507, %456 : vector<2x32xf32>
    %519 = arith.addf %517, %518 : vector<2x32xf32>
    %520 = tpu.concatenate %78, %141, %204, %267, %330, %393, %456, %519 in 1 : vector<2x32xf32>, vector<2x32xf32>, vector<2x32xf32>, vector<2x32xf32>, vector<2x32xf32>, vector<2x32xf32>, vector<2x32xf32>, vector<2x32xf32> -> vector<2x256xf32>
    %c0_92 = arith.constant 0 : index
    %c0_93 = arith.constant 0 : index
    %521 = vector.load %arg11[%c0_92, %c0_93] : memref<2x256xf32, #tpu.memory_space<vmem>>, vector<2x256xf32>
    tpu.vector_store %arg11[%c0_92, %c0_93], %520 {strides = array<i32>} : memref<2x256xf32, #tpu.memory_space<vmem>>, vector<2x256xf32>,
    %c0_94 = arith.constant 0 : index
    %c0_95 = arith.constant 0 : index
    %522 = vector.load %arg9[%c0_94, %c0_95] : memref<32x5xf32, #tpu.memory_space<vmem>>, vector<32x5xf32>
    %cst_96 = arith.constant dense<0.000000e+00> : vector<2x5xf32>
    %523 = tpu.matmul %519, %522, %cst_96 {dimension_numbers = #tpu.dot_dimension_numbers<[1], [0], [0], [1], [0, 0, 1, 1], [], []>} : vector<2x32xf32>, vector<32x5xf32>, vector<2x5xf32> -> vector<2x5xf32>
    %c0_97 = arith.constant 0 : index
    %c0_98 = arith.constant 0 : index
    %524 = vector.load %arg10[%c0_97, %c0_98] : memref<1x5xf32, #tpu.memory_space<vmem>>, vector<1x5xf32>
    %525 = vector.broadcast %524 : vector<1x5xf32> to vector<2x5xf32>
    %526 = arith.addf %523, %525 : vector<2x5xf32>
    %c0_99 = arith.constant 0 : index
    %c0_100 = arith.constant 0 : index
    %527 = vector.load %arg12[%c0_99, %c0_100] : memref<2x5xf32, #tpu.memory_space<vmem>>, vector<2x5xf32>
    tpu.vector_store %arg12[%c0_99, %c0_100], %526 {strides = array<i32>} : memref<2x5xf32, #tpu.memory_space<vmem>>, vector<2x5xf32>,
    return
  }
}

</mosaic_0001>

<llo_original>
// kernel: activity_gru_forward.1
$region0: #{activity_gru_forward.1}
  #allocation0 [shape = 'u32[]', space=smem, size = 0x4, offset = 0x4, fixed_abs, tag = 'smem constant byte address 0x4 - core index']
  #allocation1 [shape = 'u32[144,128]{1,0:T(1,128)}', space=vmem, size = 0x12000, scoped, tag = 'internal scratch']
  %s0 = inlined_call_operand.vmem [shape: f32[2,8,6], index: 0, kind: input, shape index: {}]
  %s1 = inlined_call_operand.hbm [shape: f32[6,96], index: 1, kind: input, shape index: {}]
  %s2 = inlined_call_operand.vmem [shape: f32[32,96], index: 2, kind: input, shape index: {}]
  %s3 = inlined_call_operand.vmem [shape: f32[1,96], index: 3, kind: input, shape index: {}]
  %s4 = inlined_call_operand.vmem [shape: f32[1,32], index: 4, kind: input, shape index: {}]
  %s5 = inlined_call_operand.vmem [shape: f32[32,96], index: 5, kind: input, shape index: {}]
  %s6 = inlined_call_operand.hbm [shape: f32[32,96], index: 6, kind: input, shape index: {}]
  %s7 = inlined_call_operand.vmem [shape: f32[1,96], index: 7, kind: input, shape index: {}]
  %s8 = inlined_call_operand.vmem [shape: f32[1,32], index: 8, kind: input, shape index: {}]
  %s9 = inlined_call_operand.vmem [shape: f32[32,5], index: 9, kind: input, shape index: {}]
  %s10 = inlined_call_operand.vmem [shape: f32[1,5], index: 10, kind: input, shape index: {}]
  %s11 = inlined_call_operand.vmem [shape: f32[2,256], index: 11, kind: output, shape index: {0}]
  %s12 = inlined_call_operand.hbm [shape: f32[2,5], index: 12, kind: output, shape index: {1}]
  %13 = xla_tuple %s11, %s12
  %s14 = sld [smem:[#allocation0]]
  $region70: #{activity_gru_forward.1} parent=0
    _
  %s16 = ssub.s32 1, %s14
  %s17 = scalar_select 0, %s16, %s14
  $region1: #{activity_gru_forward.1} parent=0
    #allocation2 [shape = 'u8[4096]{0}', space=vmem, size = 0x1000, scoped, tag = 'input window, operand 1, single buffered']
    #allocation3 [shape = 's32[1]{0}', space=sflag, size = 0x4, scoped, tag = 'scoped memory for activity_gru_forward.1']
    #allocation4 [shape = 's32[1]{0}', space=sflag, size = 0x4, scoped, tag = 'scoped memory for activity_gru_forward.1']
    #allocation5 [shape = 'u8[16384]{0}', space=vmem, size = 0x4000, scoped, tag = 'input window, operand 6, single buffered']
    #allocation6 [shape = 's32[1]{0}', space=sflag, size = 0x4, scoped, tag = 'scoped memory for activity_gru_forward.1']
    #allocation7 [shape = 'u8[1024]{0}', space=vmem, size = 0x400, scoped, tag = 'output window, operand 1, single buffered']
    %18 = vsyncpa [#allocation3], 0
    %19 = vsyncpa [#allocation6], 0
    %20 = vsyncpa [#allocation4], 0
    // Predicated region
    $region2: #{activity_gru_forward.1} parent=1 // pred_check
      _
    $region3: #{activity_gru_forward.1} parent=1 // pred_check_branch
      %22 = sbr.rel (0) target = $region5
    $region4: #{activity_gru_forward.1} parent=1 // pred_region
      _
    $region5: #{activity_gru_forward.1} parent=1 // pred_fallthru
      _
    // Predicated region
    $region6: #{activity_gru_forward.1} parent=1 // pred_check
      _
    $region7: #{activity_gru_forward.1} parent=1 // pred_check_branch
      %24 = sbr.rel (0) target = $region9
    $region8: #{activity_gru_forward.1} parent=1 // pred_region
      %s26 = ssub.s32 128, 128
      %27 = vsyncadd [#allocation3], %s26
      %s29 = sshll.u32 [#allocation2], 4
      %s30 = int_to_ptr.vmem [resolvable:$true] %s29
      %32 = dma.hbm_to_vmem [thread:$0]  %s1, 128, %s30, [#allocation3]
    $region9: #{activity_gru_forward.1} parent=1 // pred_fallthru
      _
    // Predicated region
    $region10: #{activity_gru_forward.1} parent=1 // pred_check
      _
    $region11: #{activity_gru_forward.1} parent=1 // pred_check_branch
      %34 = sbr.rel (0) target = $region13
    $region12: #{activity_gru_forward.1} parent=1 // pred_region
      _
    $region13: #{activity_gru_forward.1} parent=1 // pred_fallthru
      _
    // Predicated region
    $region14: #{activity_gru_forward.1} parent=1 // pred_check
      _
    $region15: #{activity_gru_forward.1} parent=1 // pred_check_branch
      %36 = sbr.rel (0) target = $region17
    $region16: #{activity_gru_forward.1} parent=1 // pred_region
      _
    $region17: #{activity_gru_forward.1} parent=1 // pred_fallthru
      _
    // Predicated region
    $region18: #{activity_gru_forward.1} parent=1 // pred_check
      _
    $region19: #{activity_gru_forward.1} parent=1 // pred_check_branch
      %38 = sbr.rel (0) target = $region21
    $region20: #{activity_gru_forward.1} parent=1 // pred_region
      _
    $region21: #{activity_gru_forward.1} parent=1 // pred_fallthru
      _
    // Predicated region
    $region22: #{activity_gru_forward.1} parent=1 // pred_check
      _
    $region23: #{activity_gru_forward.1} parent=1 // pred_check_branch
      %40 = sbr.rel (0) target = $region25
    $region24: #{activity_gru_forward.1} parent=1 // pred_region
      _
    $region25: #{activity_gru_forward.1} parent=1 // pred_fallthru
      _
    // Predicated region
    $region26: #{activity_gru_forward.1} parent=1 // pred_check
      _
    $region27: #{activity_gru_forward.1} parent=1 // pred_check_branch
      %42 = sbr.rel (0) target = $region29
    $region28: #{activity_gru_forward.1} parent=1 // pred_region
      %s44 = ssub.s32 512, 512
      %45 = vsyncadd [#allocation6], %s44
      %s46 = sshll.u32 [#allocation5], 4
      %s47 = int_to_ptr.vmem [resolvable:$true] %s46
      %52 = dma.hbm_to_vmem [thread:$0]  %s6, 512, %s47, [#allocation6], 128, 128, 8
    $region29: #{activity_gru_forward.1} parent=1 // pred_fallthru
      _
    // Predicated region
    $region30: #{activity_gru_forward.1} parent=1 // pred_check
      _
    $region31: #{activity_gru_forward.1} parent=1 // pred_check_branch
      %54 = sbr.rel (0) target = $region33
    $region32: #{activity_gru_forward.1} parent=1 // pred_region
      _
    $region33: #{activity_gru_forward.1} parent=1 // pred_fallthru
      _
    // Predicated region
    $region34: #{activity_gru_forward.1} parent=1 // pred_check
      _
    $region35: #{activity_gru_forward.1} parent=1 // pred_check_branch
      %56 = sbr.rel (0) target = $region37
    $region36: #{activity_gru_forward.1} parent=1 // pred_region
      _
    $region37: #{activity_gru_forward.1} parent=1 // pred_fallthru
      _
    // Predicated region
    $region38: #{activity_gru_forward.1} parent=1 // pred_check
      _
    $region39: #{activity_gru_forward.1} parent=1 // pred_check_branch
      %58 = sbr.rel (0) target = $region41
    $region40: #{activity_gru_forward.1} parent=1 // pred_region
      _
    $region41: #{activity_gru_forward.1} parent=1 // pred_fallthru
      _
    // Predicated region
    $region42: #{activity_gru_forward.1} parent=1 // pred_check
      _
    $region43: #{activity_gru_forward.1} parent=1 // pred_check_branch
      %60 = sbr.rel (0) target = $region45
    $region44: #{activity_gru_forward.1} parent=1 // pred_region
      _
    $region45: #{activity_gru_forward.1} parent=1 // pred_fallthru
      _
    // Predicated region
    $region46: #{activity_gru_forward.1} parent=1 // pred_check
      _
    $region47: #{activity_gru_forward.1} parent=1 // pred_check_branch
      %62 = sbr.rel (0) target = $region49
    $region48: #{activity_gru_forward.1} parent=1 // pred_region
      %63 = dma.done [#allocation3], 128
    $region49: #{activity_gru_forward.1} parent=1 // pred_fallthru
      _
    // Predicated region
    $region50: #{activity_gru_forward.1} parent=1 // pred_check
      _
    $region51: #{activity_gru_forward.1} parent=1 // pred_check_branch
      %65 = sbr.rel (0) target = $region53
    $region52: #{activity_gru_forward.1} parent=1 // pred_region
      %66 = dma.done [#allocation6], 512
    $region53: #{activity_gru_forward.1} parent=1 // pred_fallthru
      _
    %v67 = vld [vmem:[%s0] sm:$0xff]
    %v68 = vld [vmem:[%s0 + $0x8] sm:$0xff]
    %v69 = vld [vmem:[#allocation2] sm:$0x3f]
    %v70 = vld [vmem:[%s3] sm:$0x1]
    %v72 = vlaneseq
    %v73 = vshrl.u32 %v72, 7
    %v74 = vsub.s32 0, %v73
    %v75 = vrot.slane %v70, %v74
    %vm77 = vcmask 48128
    %v79 = vsel %vm77, %v67, 0
    %v82 = vsel %vm77, %v68, 0
    %vm84 = vcmask 1045504
    %v86 = vsel %vm84, %v69, 0
    %88 = vmatprep.subr.mxu0 0.0
    %89 = vmatpush1.msra.mxu0 %v86
    %90 = vmatprep.subr.mxu0 0.0
    %91 = vmatpush1.msra.mxu0 0.0
    %92 = vmatprep.subr.mxu0 0.0
    %93 = vmatpush1.msra.mxu0 0.0
    %94 = vmatprep.subr.mxu0 0.0
    %95 = vmatpush1.msra.mxu0 0.0
    %96 = vmatprep.subr.mxu0 0.0
    %97 = vmatpush1.msra.mxu0 0.0
    %98 = vmatprep.subr.mxu0 0.0
    %99 = vmatpush1.msra.mxu0 0.0
    %100 = vmatprep.subr.mxu0 0.0
    %101 = vmatpush1.msra.mxu0 0.0
    %102 = vmatprep.subr.mxu0 0.0
    %103 = vmatpush1.msra.mxu0 0.0
    %104 = vmatprep.subr.mxu0 0.0
    %105 = vmatpush1.msra.mxu0 0.0
    %106 = vmatprep.subr.mxu0 0.0
    %107 = vmatpush1.msra.mxu0 0.0
    %108 = vmatprep.subr.mxu0 0.0
    %109 = vmatpush1.msra.mxu0 0.0
    %110 = vmatprep.subr.mxu0 0.0
    %111 = vmatpush1.msra.mxu0 0.0
    %112 = vmatprep.subr.mxu0 0.0
    %113 = vmatpush1.msra.mxu0 0.0
    %114 = vmatprep.subr.mxu0 0.0
    %115 = vmatpush1.msra.mxu0 0.0
    %116 = vmatprep.subr.mxu0 0.0
    %117 = vmatpush1.msra.mxu0 0.0
    %118 = vmatprep.subr.mxu0 0.0
    %119 = vmatpush1.msra.mxu0 0.0
    %120 = vmatprep.subr.mxu0 0.0
    %121 = vmatpush1.msra.mxu0 0.0
    %122 = vmatprep.subr.mxu0 0.0
    %123 = vmatpush1.msra.mxu0 0.0
    %124 = vmatprep.subr.mxu0 0.0
    %125 = vmatpush1.msra.mxu0 0.0
    %126 = vmatprep.subr.mxu0 0.0
    %127 = vmatpush1.msra.mxu0 0.0
    %128 = vmatprep.subr.mxu0 0.0
    %129 = vmatpush1.msra.mxu0 0.0
    %130 = vmatprep.subr.mxu0 0.0
    %131 = vmatpush1.msra.mxu0 0.0
    %132 = vmatprep.subr.mxu0 0.0
    %133 = vmatpush1.msra.mxu0 0.0
    %134 = vmatprep.subr.mxu0 0.0
    %135 = vmatpush1.msra.mxu0 0.0
    %136 = vmatprep.subr.mxu0 0.0
    %137 = vmatpush1.msra.mxu0 0.0
    %138 = vmatprep.subr.mxu0 0.0
    %139 = vmatpush1.msra.mxu0 0.0
    %140 = vmatprep.subr.mxu0 0.0
    %141 = vmatpush1.msra.mxu0 0.0
    %142 = vmatprep.subr.mxu0 0.0
    %143 = vmatpush1.msra.mxu0 0.0
    %144 = vmatprep.subr.mxu0 0.0
    %145 = vmatpush1.msra.mxu0 0.0
    %146 = vmatprep.subr.mxu0 0.0
    %147 = vmatpush1.msra.mxu0 0.0
    %148 = vmatprep.subr.mxu0 0.0
    %149 = vmatpush1.msra.mxu0 0.0
    %150 = vmatprep.subr.mxu0 0.0
    %151 = vmatpush1.msra.mxu0 0.0
    %152 = vmatprep.mubr.f32.mxu0 0.0
    %153 = vmatmul.mubr.f32.gmra.mrb[0].mxu0 %v79
    %v154 = vpop.f32.mrb[0].mxu0
    %v155 = vadd.f32 %v75, %v154
    %v156 = vpop.f32.mrb[0].mxu0
    %157 = vmatprep.mubr.f32.mxu0 0.0
    %158 = vmatmul.mubr.f32.gmra.mrb[0].mxu0 %v82
    %v159 = vpop.f32.mrb[0].mxu0
    %v160 = vadd.f32 %v75, %v159
    %v161 = vpop.f32.mrb[0].mxu0
    %162 = vdwg.mxu0
    %v163 = vld [vmem:[%s2] sm:$0xff]
    %v164 = vld [vmem:[%s2 + $0x8] sm:$0xff]
    %v165 = vld [vmem:[%s2 + $0x10] sm:$0xff]
    %v166 = vld [vmem:[%s2 + $0x18] sm:$0xff]
    %v167 = vld [vmem:[%s5] sm:$0xff]
    %v168 = vld [vmem:[%s5 + $0x8] sm:$0xff]
    %v169 = vld [vmem:[%s5 + $0x10] sm:$0xff]
    %v170 = vld [vmem:[%s5 + $0x18] sm:$0xff]
    %v171 = vld [vmem:[#allocation5] sm:$0xff]
    %v172 = vld [vmem:[#allocation5 + $0x8] sm:$0xff]
    %v173 = vld [vmem:[#allocation5 + $0x10] sm:$0xff]
    %v174 = vld [vmem:[#allocation5 + $0x18] sm:$0xff]
    %v175 = vld [vmem:[%s7] sm:$0x1]
    %v176 = vld [vmem:[%s4] sm:$0x1]
    %v177 = vld [vmem:[%s8] sm:$0x1]
    %vm178 = vcmask 261120
    %v180 = vsel %vm178, 0.0, 0
    %182 = vmatprep.subr.mxu0 0.0
    %183 = vmatpush1.msra.mxu0 %v163
    %184 = vmatprep.subr.mxu0 0.0
    %185 = vmatpush1.msra.mxu0 %v164
    %186 = vmatprep.subr.mxu0 0.0
    %187 = vmatpush1.msra.mxu0 %v165
    %188 = vmatprep.subr.mxu0 0.0
    %189 = vmatpush1.msra.mxu0 %v166
    %190 = vmatprep.subr.mxu0 0.0
    %191 = vmatpush1.msra.mxu0 0.0
    %192 = vmatprep.subr.mxu0 0.0
    %193 = vmatpush1.msra.mxu0 0.0
    %194 = vmatprep.subr.mxu0 0.0
    %195 = vmatpush1.msra.mxu0 0.0
    %196 = vmatprep.subr.mxu0 0.0
    %197 = vmatpush1.msra.mxu0 0.0
    %198 = vmatprep.subr.mxu0 0.0
    %199 = vmatpush1.msra.mxu0 0.0
    %200 = vmatprep.subr.mxu0 0.0
    %201 = vmatpush1.msra.mxu0 0.0
    %202 = vmatprep.subr.mxu0 0.0
    %203 = vmatpush1.msra.mxu0 0.0
    %204 = vmatprep.subr.mxu0 0.0
    %205 = vmatpush1.msra.mxu0 0.0
    %206 = vmatprep.subr.mxu0 0.0
    %207 = vmatpush1.msra.mxu0 0.0
    %208 = vmatprep.subr.mxu0 0.0
    %209 = vmatpush1.msra.mxu0 0.0
    %210 = vmatprep.subr.mxu0 0.0
    %211 = vmatpush1.msra.mxu0 0.0
    %212 = vmatprep.subr.mxu0 0.0
    %213 = vmatpush1.msra.mxu0 0.0
    %214 = vmatprep.subr.mxu0 0.0
    %215 = vmatpush1.msra.mxu0 0.0
    %216 = vmatprep.subr.mxu0 0.0
    %217 = vmatpush1.msra.mxu0 0.0
    %218 = vmatprep.subr.mxu0 0.0
    %219 = vmatpush1.msra.mxu0 0.0
    %220 = vmatprep.subr.mxu0 0.0
    %221 = vmatpush1.msra.mxu0 0.0
    %222 = vmatprep.subr.mxu0 0.0
    %223 = vmatpush1.msra.mxu0 0.0
    %224 = vmatprep.subr.mxu0 0.0
    %225 = vmatpush1.msra.mxu0 0.0
    %226 = vmatprep.subr.mxu0 0.0
    %227 = vmatpush1.msra.mxu0 0.0
    %228 = vmatprep.subr.mxu0 0.0
    %229 = vmatpush1.msra.mxu0 0.0
    %230 = vmatprep.subr.mxu0 0.0
    %231 = vmatpush1.msra.mxu0 0.0
    %232 = vmatprep.subr.mxu0 0.0
    %233 = vmatpush1.msra.mxu0 0.0
    %234 = vmatprep.subr.mxu0 0.0
    %235 = vmatpush1.msra.mxu0 0.0
    %236 = vmatprep.subr.mxu0 0.0
    %237 = vmatpush1.msra.mxu0 0.0
    %238 = vmatprep.subr.mxu0 0.0
    %239 = vmatpush1.msra.mxu0 0.0
    %240 = vmatprep.subr.mxu0 0.0
    %241 = vmatpush1.msra.mxu0 0.0
    %242 = vmatprep.subr.mxu0 0.0
    %243 = vmatpush1.msra.mxu0 0.0
    %244 = vmatprep.subr.mxu0 0.0
    %245 = vmatpush1.msra.mxu0 0.0
    %246 = vmatprep.mubr.f32.mxu0 0.0
    %247 = vmatmul.mubr.f32.gmra.mrb[0].mxu0 %v180
    %v248 = vpop.f32.mrb[0].mxu0
    %v249 = vadd.f32 0.0, %v248
    %v250 = vpop.f32.mrb[0].mxu0
    %251 = vdwg.mxu0
    %v253 = vrot.slane %v249, 1
    %v256 = vadd.f32 %v155, %v249
    %v257 = vadd.f32 %v160, %v253
    %v258 = vxor.u32 %v256, 2147483648
    %v259 = vxor.u32 %v257, 2147483648
    %v260 = vmul.f32 %v258, 1.442695
    %v261 = vpow.pop %v260
    %v262 = vmul.f32 %v259, 1.442695
    %v263 = vpow.pop %v262
    %v264 = vadd.f32 %v261, 1.0
    %v265 = vadd.f32 %v263, 1.0
    %v266 = vrcp.pop %v264
    %v267 = vmul.f32 1.0, %v266
    %v268 = vrcp.pop %v265
    %v269 = vmul.f32 1.0, %v268
    %v271 = vlaneseq
    %v272 = vshrl.u32 %v271, 7
    %v273 = vsub.s32 0, %v272
    %v274 = vrot.slane %v176, %v273
    %275 = vrot.lane.b32.xlu0 %v274, 64
    %v276 = vpop.permute.xlu0 %275
    %v278 = vadd.f32 %v249, %v276
    %v280 = vrot.slane %v278, 1
    %281 = vrot.lane.b32.xlu0 %v278, 64
    %v282 = vpop.permute.xlu0 %281
    %283 = vrot.lane.b32.xlu0 %v280, 64
    %v284 = vpop.permute.xlu0 %283
    %v287 = vmul.f32 %v267, %v282
    %v288 = vmul.f32 %v269, %v284
    %291 = vrot.lane.b32.xlu0 %v287, 64
    %v292 = vpop.permute.xlu0 %291
    %293 = vrot.lane.b32.xlu0 %v288, 64
    %v294 = vpop.permute.xlu0 %293
    %v297 = vadd.f32 %v155, %v292
    %v298 = vadd.f32 %v160, %v294
    %v299 = vtanh.pop %v297
    %v300 = vtanh.pop %v298
    %v301 = vsub.f32 1.0, %v267
    %v302 = vsub.f32 1.0, %v269
    %305 = vrot.lane.b32.xlu0 %v299, 96
    %v306 = vpop.permute.xlu0 %305
    %307 = vrot.lane.b32.xlu0 %v300, 96
    %v308 = vpop.permute.xlu0 %307
    %v311 = vmul.f32 %v301, %v306
    %v312 = vmul.f32 %v302, %v308
    %v313 = vmul.f32 %v267, 0.0
    %v314 = vmul.f32 %v269, 0.0
    %v315 = vadd.f32 %v311, %v313
    %v316 = vadd.f32 %v312, %v314
    %v318 = vlaneseq
    %v319 = vshrl.u32 %v318, 7
    %v320 = vsub.s32 0, %v319
    %v321 = vrot.slane %v175, %v320
    %v325 = vrot.slane %v316, 7
    %vm326 = vcmask 1041409
    %v327 = vsel %vm326, %v325, %v315
    %328 = vrot.lane.b32.xlu0 %v327, 96
    %v329 = vpop.permute.xlu0 %328
    %v330 = vsel %vm178, %v329, 0
    %332 = vmatprep.subr.mxu0 0.0
    %333 = vmatpush1.msra.mxu0 %v167
    %334 = vmatprep.subr.mxu0 0.0
    %335 = vmatpush1.msra.mxu0 %v168
    %336 = vmatprep.subr.mxu0 0.0
    %337 = vmatpush1.msra.mxu0 %v169
    %338 = vmatprep.subr.mxu0 0.0
    %339 = vmatpush1.msra.mxu0 %v170
    %340 = vmatprep.subr.mxu0 0.0
    %341 = vmatpush1.msra.mxu0 0.0
    %342 = vmatprep.subr.mxu0 0.0
    %343 = vmatpush1.msra.mxu0 0.0
    %344 = vmatprep.subr.mxu0 0.0
    %345 = vmatpush1.msra.mxu0 0.0
    %346 = vmatprep.subr.mxu0 0.0
    %347 = vmatpush1.msra.mxu0 0.0
    %348 = vmatprep.subr.mxu0 0.0
    %349 = vmatpush1.msra.mxu0 0.0
    %350 = vmatprep.subr.mxu0 0.0
    %351 = vmatpush1.msra.mxu0 0.0
    %352 = vmatprep.subr.mxu0 0.0
    %353 = vmatpush1.msra.mxu0 0.0
    %354 = vmatprep.subr.mxu0 0.0
    %355 = vmatpush1.msra.mxu0 0.0
    %356 = vmatprep.subr.mxu0 0.0
    %357 = vmatpush1.msra.mxu0 0.0
    %358 = vmatprep.subr.mxu0 0.0
    %359 = vmatpush1.msra.mxu0 0.0
    %360 = vmatprep.subr.mxu0 0.0
    %361 = vmatpush1.msra.mxu0 0.0
    %362 = vmatprep.subr.mxu0 0.0
    %363 = vmatpush1.msra.mxu0 0.0
    %364 = vmatprep.subr.mxu0 0.0
    %365 = vmatpush1.msra.mxu0 0.0
    %366 = vmatprep.subr.mxu0 0.0
    %367 = vmatpush1.msra.mxu0 0.0
    %368 = vmatprep.subr.mxu0 0.0
    %369 = vmatpush1.msra.mxu0 0.0
    %370 = vmatprep.subr.mxu0 0.0
    %371 = vmatpush1.msra.mxu0 0.0
    %372 = vmatprep.subr.mxu0 0.0
    %373 = vmatpush1.msra.mxu0 0.0
    %374 = vmatprep.subr.mxu0 0.0
    %375 = vmatpush1.msra.mxu0 0.0
    %376 = vmatprep.subr.mxu0 0.0
    %377 = vmatpush1.msra.mxu0 0.0
    %378 = vmatprep.subr.mxu0 0.0
    %379 = vmatpush1.msra.mxu0 0.0
    %380 = vmatprep.subr.mxu0 0.0
    %381 = vmatpush1.msra.mxu0 0.0
    %382 = vmatprep.subr.mxu0 0.0
    %383 = vmatpush1.msra.mxu0 0.0
    %384 = vmatprep.subr.mxu0 0.0
    %385 = vmatpush1.msra.mxu0 0.0
    %386 = vmatprep.subr.mxu0 0.0
    %387 = vmatpush1.msra.mxu0 0.0
    %388 = vmatprep.subr.mxu0 0.0
    %389 = vmatpush1.msra.mxu0 0.0
    %390 = vmatprep.subr.mxu0 0.0
    %391 = vmatpush1.msra.mxu0 0.0
    %392 = vmatprep.subr.mxu0 0.0
    %393 = vmatpush1.msra.mxu0 0.0
    %394 = vmatprep.subr.mxu0 0.0
    %395 = vmatpush1.msra.mxu0 0.0
    %396 = vmatprep.mubr.f32.mxu0 0.0
    %397 = vmatmul.mubr.f32.gmra.mrb[0].mxu0 %v330
    %v398 = vpop.f32.mrb[0].mxu0
    %v399 = vadd.f32 %v321, %v398
    %v400 = vpop.f32.mrb[0].mxu0
    %401 = vdwg.mxu0
    %402 = vmatprep.subr.mxu0 0.0
    %403 = vmatpush1.msra.mxu0 %v171
    %404 = vmatprep.subr.mxu0 0.0
    %405 = vmatpush1.msra.mxu0 %v172
    %406 = vmatprep.subr.mxu0 0.0
    %407 = vmatpush1.msra.mxu0 %v173
    %408 = vmatprep.subr.mxu0 0.0
    %409 = vmatpush1.msra.mxu0 %v174
    %410 = vmatprep.subr.mxu0 0.0
    %411 = vmatpush1.msra.mxu0 0.0
    %412 = vmatprep.subr.mxu0 0.0
    %413 = vmatpush1.msra.mxu0 0.0
    %414 = vmatprep.subr.mxu0 0.0
    %415 = vmatpush1.msra.mxu0 0.0
    %416 = vmatprep.subr.mxu0 0.0
    %417 = vmatpush1.msra.mxu0 0.0
    %418 = vmatprep.subr.mxu0 0.0
    %419 = vmatpush1.msra.mxu0 0.0
    %420 = vmatprep.subr.mxu0 0.0
    %421 = vmatpush1.msra.mxu0 0.0
    %422 = vmatprep.subr.mxu0 0.0
    %423 = vmatpush1.msra.mxu0 0.0
    %424 = vmatprep.subr.mxu0 0.0
    %425 = vmatpush1.msra.mxu0 0.0
    %426 = vmatprep.subr.mxu0 0.0
    %427 = vmatpush1.msra.mxu0 0.0
    %428 = vmatprep.subr.mxu0 0.0
    %429 = vmatpush1.msra.mxu0 0.0
    %430 = vmatprep.subr.mxu0 0.0
    %431 = vmatpush1.msra.mxu0 0.0
    %432 = vmatprep.subr.mxu0 0.0
    %433 = vmatpush1.msra.mxu0 0.0
    %434 = vmatprep.subr.mxu0 0.0
    %435 = vmatpush1.msra.mxu0 0.0
    %436 = vmatprep.subr.mxu0 0.0
    %437 = vmatpush1.msra.mxu0 0.0
    %438 = vmatprep.subr.mxu0 0.0
    %439 = vmatpush1.msra.mxu0 0.0
    %440 = vmatprep.subr.mxu0 0.0
    %441 = vmatpush1.msra.mxu0 0.0
    %442 = vmatprep.subr.mxu0 0.0
    %443 = vmatpush1.msra.mxu0 0.0
    %444 = vmatprep.subr.mxu0 0.0
    %445 = vmatpush1.msra.mxu0 0.0
    %446 = vmatprep.subr.mxu0 0.0
    %447 = vmatpush1.msra.mxu0 0.0
    %448 = vmatprep.subr.mxu0 0.0
    %449 = vmatpush1.msra.mxu0 0.0
    %450 = vmatprep.subr.mxu0 0.0
    %451 = vmatpush1.msra.mxu0 0.0
    %452 = vmatprep.subr.mxu0 0.0
    %453 = vmatpush1.msra.mxu0 0.0
    %454 = vmatprep.subr.mxu0 0.0
    %455 = vmatpush1.msra.mxu0 0.0
    %456 = vmatprep.subr.mxu0 0.0
    %457 = vmatpush1.msra.mxu0 0.0
    %458 = vmatprep.subr.mxu0 0.0
    %459 = vmatpush1.msra.mxu0 0.0
    %460 = vmatprep.subr.mxu0 0.0
    %461 = vmatpush1.msra.mxu0 0.0
    %462 = vmatprep.subr.mxu0 0.0
    %463 = vmatpush1.msra.mxu0 0.0
    %464 = vmatprep.subr.mxu0 0.0
    %465 = vmatpush1.msra.mxu0 0.0
    %466 = vmatprep.mubr.f32.mxu0 0.0
    %467 = vmatmul.mubr.f32.gmra.mrb[0].mxu0 %v180
    %v468 = vpop.f32.mrb[0].mxu0
    %v469 = vadd.f32 0.0, %v468
    %v470 = vpop.f32.mrb[0].mxu0
    %471 = vdwg.mxu0
    %v472 = vadd.f32 %v399, %v469
    %v473 = vxor.u32 %v472, 2147483648
    %v474 = vmul.f32 %v473, 1.442695
    %v475 = vpow.pop %v474
    %v476 = vadd.f32 %v475, 1.0
    %v477 = vrcp.pop %v476
    %v478 = vmul.f32 1.0, %v477
    %v480 = vlaneseq
    %v481 = vshrl.u32 %v480, 7
    %v482 = vsub.s32 0, %v481
    %v483 = vrot.slane %v177, %v482
    %484 = vrot.lane.b32.xlu0 %v483, 64
    %v485 = vpop.permute.xlu0 %484
    %v487 = vadd.f32 %v469, %v485
    %489 = vrot.lane.b32.xlu0 %v487, 64
    %v490 = vpop.permute.xlu0 %489
    %v492 = vmul.f32 %v478, %v490
    %494 = vrot.lane.b32.xlu0 %v492, 64
    %v495 = vpop.permute.xlu0 %494
    %v497 = vadd.f32 %v399, %v495
    %v498 = vtanh.pop %v497
    %v499 = vsub.f32 1.0, %v478
    %501 = vrot.lane.b32.xlu0 %v498, 96
    %v502 = vpop.permute.xlu0 %501
    %v504 = vmul.f32 %v499, %v502
    %v505 = vmul.f32 %v478, 0.0
    %v506 = vadd.f32 %v504, %v505
    %507 = vmatprep.subr.mxu0 0.0
    %508 = vmatpush1.msra.mxu0 %v163
    %509 = vmatprep.subr.mxu0 0.0
    %510 = vmatpush1.msra.mxu0 %v164
    %511 = vmatprep.subr.mxu0 0.0
    %512 = vmatpush1.msra.mxu0 %v165
    %513 = vmatprep.subr.mxu0 0.0
    %514 = vmatpush1.msra.mxu0 %v166
    %515 = vmatprep.subr.mxu0 0.0
    %516 = vmatpush1.msra.mxu0 0.0
    %517 = vmatprep.subr.mxu0 0.0
    %518 = vmatpush1.msra.mxu0 0.0
    %519 = vmatprep.subr.mxu0 0.0
    %520 = vmatpush1.msra.mxu0 0.0
    %521 = vmatprep.subr.mxu0 0.0
    %522 = vmatpush1.msra.mxu0 0.0
    %523 = vmatprep.subr.mxu0 0.0
    %524 = vmatpush1.msra.mxu0 0.0
    %525 = vmatprep.subr.mxu0 0.0
    %526 = vmatpush1.msra.mxu0 0.0
    %527 = vmatprep.subr.mxu0 0.0
    %528 = vmatpush1.msra.mxu0 0.0
    %529 = vmatprep.subr.mxu0 0.0
    %530 = vmatpush1.msra.mxu0 0.0
    %531 = vmatprep.subr.mxu0 0.0
    %532 = vmatpush1.msra.mxu0 0.0
    %533 = vmatprep.subr.mxu0 0.0
    %534 = vmatpush1.msra.mxu0 0.0
    %535 = vmatprep.subr.mxu0 0.0
    %536 = vmatpush1.msra.mxu0 0.0
    %537 = vmatprep.subr.mxu0 0.0
    %538 = vmatpush1.msra.mxu0 0.0
    %539 = vmatprep.subr.mxu0 0.0
    %540 = vmatpush1.msra.mxu0 0.0
    %541 = vmatprep.subr.mxu0 0.0
    %542 = vmatpush1.msra.mxu0 0.0
    %543 = vmatprep.subr.mxu0 0.0
    %544 = vmatpush1.msra.mxu0 0.0
    %545 = vmatprep.subr.mxu0 0.0
    %546 = vmatpush1.msra.mxu0 0.0
    %547 = vmatprep.subr.mxu0 0.0
    %548 = vmatpush1.msra.mxu0 0.0
    %549 = vmatprep.subr.mxu0 0.0
    %550 = vmatpush1.msra.mxu0 0.0
    %551 = vmatprep.subr.mxu0 0.0
    %552 = vmatpush1.msra.mxu0 0.0
    %553 = vmatprep.subr.mxu0 0.0
    %554 = vmatpush1.msra.mxu0 0.0
    %555 = vmatprep.subr.mxu0 0.0
    %556 = vmatpush1.msra.mxu0 0.0
    %557 = vmatprep.subr.mxu0 0.0
    %558 = vmatpush1.msra.mxu0 0.0
    %559 = vmatprep.subr.mxu0 0.0
    %560 = vmatpush1.msra.mxu0 0.0
    %561 = vmatprep.subr.mxu0 0.0
    %562 = vmatpush1.msra.mxu0 0.0
    %563 = vmatprep.subr.mxu0 0.0
    %564 = vmatpush1.msra.mxu0 0.0
    %565 = vmatprep.subr.mxu0 0.0
    %566 = vmatpush1.msra.mxu0 0.0
    %567 = vmatprep.subr.mxu0 0.0
    %568 = vmatpush1.msra.mxu0 0.0
    %569 = vmatprep.subr.mxu0 0.0
    %570 = vmatpush1.msra.mxu0 0.0
    %571 = vmatprep.mubr.f32.mxu0 0.0
    %572 = vmatmul.mubr.f32.gmra.mrb[0].mxu0 %v330
    %v573 = vpop.f32.mrb[0].mxu0
    %v574 = vadd.f32 0.0, %v573
    %v575 = vpop.f32.mrb[0].mxu0
    %576 = vdwg.mxu0
    %v578 = vrot.slane %v574, 7
    %v581 = vadd.f32 %v155, %v578
    %v582 = vadd.f32 %v160, %v574
    %v583 = vxor.u32 %v581, 2147483648
    %v584 = vxor.u32 %v582, 2147483648
    %v585 = vmul.f32 %v583, 1.442695
    %v586 = vpow.pop %v585
    %v587 = vmul.f32 %v584, 1.442695
    %v588 = vpow.pop %v587
    %v589 = vadd.f32 %v586, 1.0
    %v590 = vadd.f32 %v588, 1.0
    %v591 = vrcp.pop %v589
    %v592 = vmul.f32 1.0, %v591
    %v593 = vrcp.pop %v590
    %v594 = vmul.f32 1.0, %v593
    %v595 = vadd.f32 %v574, %v276
    %v597 = vrot.slane %v595, 7
    %598 = vrot.lane.b32.xlu0 %v597, 64
    %v599 = vpop.permute.xlu0 %598
    %600 = vrot.lane.b32.xlu0 %v595, 64
    %v601 = vpop.permute.xlu0 %600
    %v604 = vmul.f32 %v592, %v599
    %v605 = vmul.f32 %v594, %v601
    %608 = vrot.lane.b32.xlu0 %v604, 64
    %v609 = vpop.permute.xlu0 %608
    %610 = vrot.lane.b32.xlu0 %v605, 64
    %v611 = vpop.permute.xlu0 %610
    %v614 = vadd.f32 %v155, %v609
    %v615 = vadd.f32 %v160, %v611
    %v616 = vtanh.pop %v614
    %v617 = vtanh.pop %v615
    %v618 = vsub.f32 1.0, %v592
    %v619 = vsub.f32 1.0, %v594
    %622 = vrot.lane.b32.xlu0 %v616, 96
    %v623 = vpop.permute.xlu0 %622
    %624 = vrot.lane.b32.xlu0 %v617, 96
    %v625 = vpop.permute.xlu0 %624
    %v628 = vmul.f32 %v618, %v623
    %v629 = vmul.f32 %v619, %v625
    %v630 = vrot.slane %v315, 7
    %v633 = vmul.f32 %v592, %v630
    %v634 = vmul.f32 %v594, %v325
    %v635 = vadd.f32 %v628, %v633
    %v636 = vadd.f32 %v629, %v634
    %v639 = vrot.slane %v635, 1
    %v640 = vsel %vm326, %v636, %v639
    %641 = vrot.lane.b32.xlu0 %v640, 96
    %v642 = vpop.permute.xlu0 %641
    %v643 = vsel %vm178, %v642, 0
    %645 = vmatprep.subr.mxu0 0.0
    %646 = vmatpush1.msra.mxu0 %v167
    %647 = vmatprep.subr.mxu0 0.0
    %648 = vmatpush1.msra.mxu0 %v168
    %649 = vmatprep.subr.mxu0 0.0
    %650 = vmatpush1.msra.mxu0 %v169
    %651 = vmatprep.subr.mxu0 0.0
    %652 = vmatpush1.msra.mxu0 %v170
    %653 = vmatprep.subr.mxu0 0.0
    %654 = vmatpush1.msra.mxu0 0.0
    %655 = vmatprep.subr.mxu0 0.0
    %656 = vmatpush1.msra.mxu0 0.0
    %657 = vmatprep.subr.mxu0 0.0
    %658 = vmatpush1.msra.mxu0 0.0
    %659 = vmatprep.subr.mxu0 0.0
    %660 = vmatpush1.msra.mxu0 0.0
    %661 = vmatprep.subr.mxu0 0.0
    %662 = vmatpush1.msra.mxu0 0.0
    %663 = vmatprep.subr.mxu0 0.0
    %664 = vmatpush1.msra.mxu0 0.0
    %665 = vmatprep.subr.mxu0 0.0
    %666 = vmatpush1.msra.mxu0 0.0
    %667 = vmatprep.subr.mxu0 0.0
    %668 = vmatpush1.msra.mxu0 0.0
    %669 = vmatprep.subr.mxu0 0.0
    %670 = vmatpush1.msra.mxu0 0.0
    %671 = vmatprep.subr.mxu0 0.0
    %672 = vmatpush1.msra.mxu0 0.0
    %673 = vmatprep.subr.mxu0 0.0
    %674 = vmatpush1.msra.mxu0 0.0
    %675 = vmatprep.subr.mxu0 0.0
    %676 = vmatpush1.msra.mxu0 0.0
    %677 = vmatprep.subr.mxu0 0.0
    %678 = vmatpush1.msra.mxu0 0.0
    %679 = vmatprep.subr.mxu0 0.0
    %680 = vmatpush1.msra.mxu0 0.0
    %681 = vmatprep.subr.mxu0 0.0
    %682 = vmatpush1.msra.mxu0 0.0
    %683 = vmatprep.subr.mxu0 0.0
    %684 = vmatpush1.msra.mxu0 0.0
    %685 = vmatprep.subr.mxu0 0.0
    %686 = vmatpush1.msra.mxu0 0.0
    %687 = vmatprep.subr.mxu0 0.0
    %688 = vmatpush1.msra.mxu0 0.0
    %689 = vmatprep.subr.mxu0 0.0
    %690 = vmatpush1.msra.mxu0 0.0
    %691 = vmatprep.subr.mxu0 0.0
    %692 = vmatpush1.msra.mxu0 0.0
    %693 = vmatprep.subr.mxu0 0.0
    %694 = vmatpush1.msra.mxu0 0.0
    %695 = vmatprep.subr.mxu0 0.0
    %696 = vmatpush1.msra.mxu0 0.0
    %697 = vmatprep.subr.mxu0 0.0
    %698 = vmatpush1.msra.mxu0 0.0
    %699 = vmatprep.subr.mxu0 0.0
    %700 = vmatpush1.msra.mxu0 0.0
    %701 = vmatprep.subr.mxu0 0.0
    %702 = vmatpush1.msra.mxu0 0.0
    %703 = vmatprep.subr.mxu0 0.0
    %704 = vmatpush1.msra.mxu0 0.0
    %705 = vmatprep.subr.mxu0 0.0
    %706 = vmatpush1.msra.mxu0 0.0
    %707 = vmatprep.subr.mxu0 0.0
    %708 = vmatpush1.msra.mxu0 0.0
    %709 = vmatprep.mubr.f32.mxu0 0.0
    %710 = vmatmul.mubr.f32.gmra.mrb[0].mxu0 %v643
    %v711 = vpop.f32.mrb[0].mxu0
    %v712 = vadd.f32 %v321, %v711
    %v713 = vpop.f32.mrb[0].mxu0
    %714 = vdwg.mxu0
    %716 = vrot.lane.b32.xlu0 %v506, 96
    %v717 = vpop.permute.xlu0 %716
    %v718 = vsel %vm178, %v717, 0
    %720 = vmatprep.subr.mxu0 0.0
    %721 = vmatpush1.msra.mxu0 %v171
    %722 = vmatprep.subr.mxu0 0.0
    %723 = vmatpush1.msra.mxu0 %v172
    %724 = vmatprep.subr.mxu0 0.0
    %725 = vmatpush1.msra.mxu0 %v173
    %726 = vmatprep.subr.mxu0 0.0
    %727 = vmatpush1.msra.mxu0 %v174
    %728 = vmatprep.subr.mxu0 0.0
    %729 = vmatpush1.msra.mxu0 0.0
    %730 = vmatprep.subr.mxu0 0.0
    %731 = vmatpush1.msra.mxu0 0.0
    %732 = vmatprep.subr.mxu0 0.0
    %733 = vmatpush1.msra.mxu0 0.0
    %734 = vmatprep.subr.mxu0 0.0
    %735 = vmatpush1.msra.mxu0 0.0
    %736 = vmatprep.subr.mxu0 0.0
    %737 = vmatpush1.msra.mxu0 0.0
    %738 = vmatprep.subr.mxu0 0.0
    %739 = vmatpush1.msra.mxu0 0.0
    %740 = vmatprep.subr.mxu0 0.0
    %741 = vmatpush1.msra.mxu0 0.0
    %742 = vmatprep.subr.mxu0 0.0
    %743 = vmatpush1.msra.mxu0 0.0
    %744 = vmatprep.subr.mxu0 0.0
    %745 = vmatpush1.msra.mxu0 0.0
    %746 = vmatprep.subr.mxu0 0.0
    %747 = vmatpush1.msra.mxu0 0.0
    %748 = vmatprep.subr.mxu0 0.0
    %749 = vmatpush1.msra.mxu0 0.0
    %750 = vmatprep.subr.mxu0 0.0
    %751 = vmatpush1.msra.mxu0 0.0
    %752 = vmatprep.subr.mxu0 0.0
    %753 = vmatpush1.msra.mxu0 0.0
    %754 = vmatprep.subr.mxu0 0.0
    %755 = vmatpush1.msra.mxu0 0.0
    %756 = vmatprep.subr.mxu0 0.0
    %757 = vmatpush1.msra.mxu0 0.0
    %758 = vmatprep.subr.mxu0 0.0
    %759 = vmatpush1.msra.mxu0 0.0
    %760 = vmatprep.subr.mxu0 0.0
    %761 = vmatpush1.msra.mxu0 0.0
    %762 = vmatprep.subr.mxu0 0.0
    %763 = vmatpush1.msra.mxu0 0.0
    %764 = vmatprep.subr.mxu0 0.0
    %765 = vmatpush1.msra.mxu0 0.0
    %766 = vmatprep.subr.mxu0 0.0
    %767 = vmatpush1.msra.mxu0 0.0
    %768 = vmatprep.subr.mxu0 0.0
    %769 = vmatpush1.msra.mxu0 0.0
    %770 = vmatprep.subr.mxu0 0.0
    %771 = vmatpush1.msra.mxu0 0.0
    %772 = vmatprep.subr.mxu0 0.0
    %773 = vmatpush1.msra.mxu0 0.0
    %774 = vmatprep.subr.mxu0 0.0
    %775 = vmatpush1.msra.mxu0 0.0
    %776 = vmatprep.subr.mxu0 0.0
    %777 = vmatpush1.msra.mxu0 0.0
    %778 = vmatprep.subr.mxu0 0.0
    %779 = vmatpush1.msra.mxu0 0.0
    %780 = vmatprep.subr.mxu0 0.0
    %781 = vmatpush1.msra.mxu0 0.0
    %782 = vmatprep.subr.mxu0 0.0
    %783 = vmatpush1.msra.mxu0 0.0
    %784 = vmatprep.mubr.f32.mxu0 0.0
    %785 = vmatmul.mubr.f32.gmra.mrb[0].mxu0 %v718
    %v786 = vpop.f32.mrb[0].mxu0
    %v787 = vadd.f32 0.0, %v786
    %v788 = vpop.f32.mrb[0].mxu0
    %789 = vdwg.mxu0
    %v790 = vadd.f32 %v712, %v787
    %v791 = vxor.u32 %v790, 2147483648
    %v792 = vmul.f32 %v791, 1.442695
    %v793 = vpow.pop %v792
    %v794 = vadd.f32 %v793, 1.0
    %v795 = vrcp.pop %v794
    %v796 = vmul.f32 1.0, %v795
    %v797 = vadd.f32 %v787, %v485
    %799 = vrot.lane.b32.xlu0 %v797, 64
    %v800 = vpop.permute.xlu0 %799
    %v802 = vmul.f32 %v796, %v800
    %804 = vrot.lane.b32.xlu0 %v802, 64
    %v805 = vpop.permute.xlu0 %804
    %v807 = vadd.f32 %v712, %v805
    %v808 = vtanh.pop %v807
    %v809 = vsub.f32 1.0, %v796
    %811 = vrot.lane.b32.xlu0 %v808, 96
    %v812 = vpop.permute.xlu0 %811
    %v814 = vmul.f32 %v809, %v812
    %v815 = vmul.f32 %v796, %v506
    %v816 = vadd.f32 %v814, %v815
    %817 = vmatprep.subr.mxu0 0.0
    %818 = vmatpush1.msra.mxu0 %v163
    %819 = vmatprep.subr.mxu0 0.0
    %820 = vmatpush1.msra.mxu0 %v164
    %821 = vmatprep.subr.mxu0 0.0
    %822 = vmatpush1.msra.mxu0 %v165
    %823 = vmatprep.subr.mxu0 0.0
    %824 = vmatpush1.msra.mxu0 %v166
    %825 = vmatprep.subr.mxu0 0.0
    %826 = vmatpush1.msra.mxu0 0.0
    %827 = vmatprep.subr.mxu0 0.0
    %828 = vmatpush1.msra.mxu0 0.0
    %829 = vmatprep.subr.mxu0 0.0
    %830 = vmatpush1.msra.mxu0 0.0
    %831 = vmatprep.subr.mxu0 0.0
    %832 = vmatpush1.msra.mxu0 0.0
    %833 = vmatprep.subr.mxu0 0.0
    %834 = vmatpush1.msra.mxu0 0.0
    %835 = vmatprep.subr.mxu0 0.0
    %836 = vmatpush1.msra.mxu0 0.0
    %837 = vmatprep.subr.mxu0 0.0
    %838 = vmatpush1.msra.mxu0 0.0
    %839 = vmatprep.subr.mxu0 0.0
    %840 = vmatpush1.msra.mxu0 0.0
    %841 = vmatprep.subr.mxu0 0.0
    %842 = vmatpush1.msra.mxu0 0.0
    %843 = vmatprep.subr.mxu0 0.0
    %844 = vmatpush1.msra.mxu0 0.0
    %845 = vmatprep.subr.mxu0 0.0
    %846 = vmatpush1.msra.mxu0 0.0
    %847 = vmatprep.subr.mxu0 0.0
    %848 = vmatpush1.msra.mxu0 0.0
    %849 = vmatprep.subr.mxu0 0.0
    %850 = vmatpush1.msra.mxu0 0.0
    %851 = vmatprep.subr.mxu0 0.0
    %852 = vmatpush1.msra.mxu0 0.0
    %853 = vmatprep.subr.mxu0 0.0
    %854 = vmatpush1.msra.mxu0 0.0
    %855 = vmatprep.subr.mxu0 0.0
    %856 = vmatpush1.msra.mxu0 0.0
    %857 = vmatprep.subr.mxu0 0.0
    %858 = vmatpush1.msra.mxu0 0.0
    %859 = vmatprep.subr.mxu0 0.0
    %860 = vmatpush1.msra.mxu0 0.0
    %861 = vmatprep.subr.mxu0 0.0
    %862 = vmatpush1.msra.mxu0 0.0
    %863 = vmatprep.subr.mxu0 0.0
    %864 = vmatpush1.msra.mxu0 0.0
    %865 = vmatprep.subr.mxu0 0.0
    %866 = vmatpush1.msra.mxu0 0.0
    %867 = vmatprep.subr.mxu0 0.0
    %868 = vmatpush1.msra.mxu0 0.0
    %869 = vmatprep.subr.mxu0 0.0
    %870 = vmatpush1.msra.mxu0 0.0
    %871 = vmatprep.subr.mxu0 0.0
    %872 = vmatpush1.msra.mxu0 0.0
    %873 = vmatprep.subr.mxu0 0.0
    %874 = vmatpush1.msra.mxu0 0.0
    %875 = vmatprep.subr.mxu0 0.0
    %876 = vmatpush1.msra.mxu0 0.0
    %877 = vmatprep.subr.mxu0 0.0
    %878 = vmatpush1.msra.mxu0 0.0
    %879 = vmatprep.subr.mxu0 0.0
    %880 = vmatpush1.msra.mxu0 0.0
    %881 = vmatprep.mubr.f32.mxu0 0.0
    %882 = vmatmul.mubr.f32.gmra.mrb[0].mxu0 %v643
    %v883 = vpop.f32.mrb[0].mxu0
    %v884 = vadd.f32 0.0, %v883
    %v885 = vpop.f32.mrb[0].mxu0
    %886 = vdwg.mxu0
    %v888 = vrot.slane %v884, 6
    %v889 = vrot.slane %v884, 7
    %v892 = vadd.f32 %v155, %v888
    %v893 = vadd.f32 %v160, %v889
    %v894 = vxor.u32 %v892, 2147483648
    %v895 = vxor.u32 %v893, 2147483648
    %v896 = vmul.f32 %v894, 1.442695
    %v897 = vpow.pop %v896
    %v898 = vmul.f32 %v895, 1.442695
    %v899 = vpow.pop %v898
    %v900 = vadd.f32 %v897, 1.0
    %v901 = vadd.f32 %v899, 1.0
    %v902 = vrcp.pop %v900
    %v903 = vmul.f32 1.0, %v902
    %v904 = vrcp.pop %v901
    %v905 = vmul.f32 1.0, %v904
    %v906 = vadd.f32 %v884, %v276
    %v908 = vrot.slane %v906, 6
    %v909 = vrot.slane %v906, 7
    %910 = vrot.lane.b32.xlu0 %v908, 64
    %v911 = vpop.permute.xlu0 %910
    %912 = vrot.lane.b32.xlu0 %v909, 64
    %v913 = vpop.permute.xlu0 %912
    %v916 = vmul.f32 %v903, %v911
    %v917 = vmul.f32 %v905, %v913
    %920 = vrot.lane.b32.xlu0 %v916, 64
    %v921 = vpop.permute.xlu0 %920
    %922 = vrot.lane.b32.xlu0 %v917, 64
    %v923 = vpop.permute.xlu0 %922
    %v926 = vadd.f32 %v155, %v921
    %v927 = vadd.f32 %v160, %v923
    %v928 = vtanh.pop %v926
    %v929 = vtanh.pop %v927
    %v930 = vsub.f32 1.0, %v903
    %v931 = vsub.f32 1.0, %v905
    %934 = vrot.lane.b32.xlu0 %v928, 96
    %v935 = vpop.permute.xlu0 %934
    %936 = vrot.lane.b32.xlu0 %v929, 96
    %v937 = vpop.permute.xlu0 %936
    %v940 = vmul.f32 %v930, %v935
    %v941 = vmul.f32 %v931, %v937
    %v942 = vrot.slane %v635, 7
    %v943 = vrot.slane %v636, 7
    %v946 = vmul.f32 %v903, %v942
    %v947 = vmul.f32 %v905, %v943
    %v948 = vadd.f32 %v940, %v946
    %v949 = vadd.f32 %v941, %v947
    %v952 = vrot.slane %v948, 2
    %v953 = vrot.slane %v949, 1
    %v954 = vsel %vm326, %v953, %v952
    %955 = vrot.lane.b32.xlu0 %v954, 96
    %v956 = vpop.permute.xlu0 %955
    %v957 = vsel %vm178, %v956, 0
    %959 = vmatprep.subr.mxu0 0.0
    %960 = vmatpush1.msra.mxu0 %v167
    %961 = vmatprep.subr.mxu0 0.0
    %962 = vmatpush1.msra.mxu0 %v168
    %963 = vmatprep.subr.mxu0 0.0
    %964 = vmatpush1.msra.mxu0 %v169
    %965 = vmatprep.subr.mxu0 0.0
    %966 = vmatpush1.msra.mxu0 %v170
    %967 = vmatprep.subr.mxu0 0.0
    %968 = vmatpush1.msra.mxu0 0.0
    %969 = vmatprep.subr.mxu0 0.0
    %970 = vmatpush1.msra.mxu0 0.0
    %971 = vmatprep.subr.mxu0 0.0
    %972 = vmatpush1.msra.mxu0 0.0
    %973 = vmatprep.subr.mxu0 0.0
    %974 = vmatpush1.msra.mxu0 0.0
    %975 = vmatprep.subr.mxu0 0.0
    %976 = vmatpush1.msra.mxu0 0.0
    %977 = vmatprep.subr.mxu0 0.0
    %978 = vmatpush1.msra.mxu0 0.0
    %979 = vmatprep.subr.mxu0 0.0
    %980 = vmatpush1.msra.mxu0 0.0
    %981 = vmatprep.subr.mxu0 0.0
    %982 = vmatpush1.msra.mxu0 0.0
    %983 = vmatprep.subr.mxu0 0.0
    %984 = vmatpush1.msra.mxu0 0.0
    %985 = vmatprep.subr.mxu0 0.0
    %986 = vmatpush1.msra.mxu0 0.0
    %987 = vmatprep.subr.mxu0 0.0
    %988 = vmatpush1.msra.mxu0 0.0
    %989 = vmatprep.subr.mxu0 0.0
    %990 = vmatpush1.msra.mxu0 0.0
    %991 = vmatprep.subr.mxu0 0.0
    %992 = vmatpush1.msra.mxu0 0.0
    %993 = vmatprep.subr.mxu0 0.0
    %994 = vmatpush1.msra.mxu0 0.0
    %995 = vmatprep.subr.mxu0 0.0
    %996 = vmatpush1.msra.mxu0 0.0
    %997 = vmatprep.subr.mxu0 0.0
    %998 = vmatpush1.msra.mxu0 0.0
    %999 = vmatprep.subr.mxu0 0.0
    %1000 = vmatpush1.msra.mxu0 0.0
    %1001 = vmatprep.subr.mxu0 0.0
    %1002 = vmatpush1.msra.mxu0 0.0
    %1003 = vmatprep.subr.mxu0 0.0
    %1004 = vmatpush1.msra.mxu0 0.0
    %1005 = vmatprep.subr.mxu0 0.0
    %1006 = vmatpush1.msra.mxu0 0.0
    %1007 = vmatprep.subr.mxu0 0.0
    %1008 = vmatpush1.msra.mxu0 0.0
    %1009 = vmatprep.subr.mxu0 0.0
    %1010 = vmatpush1.msra.mxu0 0.0
    %1011 = vmatprep.subr.mxu0 0.0
    %1012 = vmatpush1.msra.mxu0 0.0
    %1013 = vmatprep.subr.mxu0 0.0
    %1014 = vmatpush1.msra.mxu0 0.0
    %1015 = vmatprep.subr.mxu0 0.0
    %1016 = vmatpush1.msra.mxu0 0.0
    %1017 = vmatprep.subr.mxu0 0.0
    %1018 = vmatpush1.msra.mxu0 0.0
    %1019 = vmatprep.subr.mxu0 0.0
    %1020 = vmatpush1.msra.mxu0 0.0
    %1021 = vmatprep.subr.mxu0 0.0
    %1022 = vmatpush1.msra.mxu0 0.0
    %1023 = vmatprep.mubr.f32.mxu0 0.0
    %1024 = vmatmul.mubr.f32.gmra.mrb[0].mxu0 %v957
    %v1025 = vpop.f32.mrb[0].mxu0
    %v1026 = vadd.f32 %v321, %v1025
    %v1027 = vpop.f32.mrb[0].mxu0
    %1028 = vdwg.mxu0
    %1030 = vrot.lane.b32.xlu0 %v816, 96
    %v1031 = vpop.permute.xlu0 %1030
    %v1032 = vsel %vm178, %v1031, 0
    %1034 = vmatprep.subr.mxu0 0.0
    %1035 = vmatpush1.msra.mxu0 %v171
    %1036 = vmatprep.subr.mxu0 0.0
    %1037 = vmatpush1.msra.mxu0 %v172
    %1038 = vmatprep.subr.mxu0 0.0
    %1039 = vmatpush1.msra.mxu0 %v173
    %1040 = vmatprep.subr.mxu0 0.0
    %1041 = vmatpush1.msra.mxu0 %v174
    %1042 = vmatprep.subr.mxu0 0.0
    %1043 = vmatpush1.msra.mxu0 0.0
    %1044 = vmatprep.subr.mxu0 0.0
    %1045 = vmatpush1.msra.mxu0 0.0
    %1046 = vmatprep.subr.mxu0 0.0
    %1047 = vmatpush1.msra.mxu0 0.0
    %1048 = vmatprep.subr.mxu0 0.0
    %1049 = vmatpush1.msra.mxu0 0.0
    %1050 = vmatprep.subr.mxu0 0.0
    %1051 = vmatpush1.msra.mxu0 0.0
    %1052 = vmatprep.subr.mxu0 0.0
    %1053 = vmatpush1.msra.mxu0 0.0
    %1054 = vmatprep.subr.mxu0 0.0
    %1055 = vmatpush1.msra.mxu0 0.0
    %1056 = vmatprep.subr.mxu0 0.0
    %1057 = vmatpush1.msra.mxu0 0.0
    %1058 = vmatprep.subr.mxu0 0.0
    %1059 = vmatpush1.msra.mxu0 0.0
    %1060 = vmatprep.subr.mxu0 0.0
    %1061 = vmatpush1.msra.mxu0 0.0
    %1062 = vmatprep.subr.mxu0 0.0
    %1063 = vmatpush1.msra.mxu0 0.0
    %1064 = vmatprep.subr.mxu0 0.0
    %1065 = vmatpush1.msra.mxu0 0.0
    %1066 = vmatprep.subr.mxu0 0.0
    %1067 = vmatpush1.msra.mxu0 0.0
    %1068 = vmatprep.subr.mxu0 0.0
    %1069 = vmatpush1.msra.mxu0 0.0
    %1070 = vmatprep.subr.mxu0 0.0
    %1071 = vmatpush1.msra.mxu0 0.0
    %1072 = vmatprep.subr.mxu0 0.0
    %1073 = vmatpush1.msra.mxu0 0.0
    %1074 = vmatprep.subr.mxu0 0.0
    %1075 = vmatpush1.msra.mxu0 0.0
    %1076 = vmatprep.subr.mxu0 0.0
    %1077 = vmatpush1.msra.mxu0 0.0
    %1078 = vmatprep.subr.mxu0 0.0
    %1079 = vmatpush1.msra.mxu0 0.0
    %1080 = vmatprep.subr.mxu0 0.0
    %1081 = vmatpush1.msra.mxu0 0.0
    %1082 = vmatprep.subr.mxu0 0.0
    %1083 = vmatpush1.msra.mxu0 0.0
    %1084 = vmatprep.subr.mxu0 0.0
    %1085 = vmatpush1.msra.mxu0 0.0
    %1086 = vmatprep.subr.mxu0 0.0
    %1087 = vmatpush1.msra.mxu0 0.0
    %1088 = vmatprep.subr.mxu0 0.0
    %1089 = vmatpush1.msra.mxu0 0.0
    %1090 = vmatprep.subr.mxu0 0.0
    %1091 = vmatpush1.msra.mxu0 0.0
    %1092 = vmatprep.subr.mxu0 0.0
    %1093 = vmatpush1.msra.mxu0 0.0
    %1094 = vmatprep.subr.mxu0 0.0
    %1095 = vmatpush1.msra.mxu0 0.0
    %1096 = vmatprep.subr.mxu0 0.0
    %1097 = vmatpush1.msra.mxu0 0.0
    %1098 = vmatprep.mubr.f32.mxu0 0.0
    %1099 = vmatmul.mubr.f32.gmra.mrb[0].mxu0 %v1032
    %v1100 = vpop.f32.mrb[0].mxu0
    %v1101 = vadd.f32 0.0, %v1100
    %v1102 = vpop.f32.mrb[0].mxu0
    %1103 = vdwg.mxu0
    %v1104 = vadd.f32 %v1026, %v1101
    %v1105 = vxor.u32 %v1104, 2147483648
    %v1106 = vmul.f32 %v1105, 1.442695
    %v1107 = vpow.pop %v1106
    %v1108 = vadd.f32 %v1107, 1.0
    %v1109 = vrcp.pop %v1108
    %v1110 = vmul.f32 1.0, %v1109
    %v1111 = vadd.f32 %v1101, %v485
    %1113 = vrot.lane.b32.xlu0 %v1111, 64
    %v1114 = vpop.permute.xlu0 %1113
    %v1116 = vmul.f32 %v1110, %v1114
    %1118 = vrot.lane.b32.xlu0 %v1116, 64
    %v1119 = vpop.permute.xlu0 %1118
    %v1121 = vadd.f32 %v1026, %v1119
    %v1122 = vtanh.pop %v1121
    %v1123 = vsub.f32 1.0, %v1110
    %1125 = vrot.lane.b32.xlu0 %v1122, 96
    %v1126 = vpop.permute.xlu0 %1125
    %v1128 = vmul.f32 %v1123, %v1126
    %v1129 = vmul.f32 %v1110, %v816
    %v1130 = vadd.f32 %v1128, %v1129
    %1131 = vmatprep.subr.mxu0 0.0
    %1132 = vmatpush1.msra.mxu0 %v163
    %1133 = vmatprep.subr.mxu0 0.0
    %1134 = vmatpush1.msra.mxu0 %v164
    %1135 = vmatprep.subr.mxu0 0.0
    %1136 = vmatpush1.msra.mxu0 %v165
    %1137 = vmatprep.subr.mxu0 0.0
    %1138 = vmatpush1.msra.mxu0 %v166
    %1139 = vmatprep.subr.mxu0 0.0
    %1140 = vmatpush1.msra.mxu0 0.0
    %1141 = vmatprep.subr.mxu0 0.0
    %1142 = vmatpush1.msra.mxu0 0.0
    %1143 = vmatprep.subr.mxu0 0.0
    %1144 = vmatpush1.msra.mxu0 0.0
    %1145 = vmatprep.subr.mxu0 0.0
    %1146 = vmatpush1.msra.mxu0 0.0
    %1147 = vmatprep.subr.mxu0 0.0
    %1148 = vmatpush1.msra.mxu0 0.0
    %1149 = vmatprep.subr.mxu0 0.0
    %1150 = vmatpush1.msra.mxu0 0.0
    %1151 = vmatprep.subr.mxu0 0.0
    %1152 = vmatpush1.msra.mxu0 0.0
    %1153 = vmatprep.subr.mxu0 0.0
    %1154 = vmatpush1.msra.mxu0 0.0
    %1155 = vmatprep.subr.mxu0 0.0
    %1156 = vmatpush1.msra.mxu0 0.0
    %1157 = vmatprep.subr.mxu0 0.0
    %1158 = vmatpush1.msra.mxu0 0.0
    %1159 = vmatprep.subr.mxu0 0.0
    %1160 = vmatpush1.msra.mxu0 0.0
    %1161 = vmatprep.subr.mxu0 0.0
    %1162 = vmatpush1.msra.mxu0 0.0
    %1163 = vmatprep.subr.mxu0 0.0
    %1164 = vmatpush1.msra.mxu0 0.0
    %1165 = vmatprep.subr.mxu0 0.0
    %1166 = vmatpush1.msra.mxu0 0.0
    %1167 = vmatprep.subr.mxu0 0.0
    %1168 = vmatpush1.msra.mxu0 0.0
    %1169 = vmatprep.subr.mxu0 0.0
    %1170 = vmatpush1.msra.mxu0 0.0
    %1171 = vmatprep.subr.mxu0 0.0
    %1172 = vmatpush1.msra.mxu0 0.0
    %1173 = vmatprep.subr.mxu0 0.0
    %1174 = vmatpush1.msra.mxu0 0.0
    %1175 = vmatprep.subr.mxu0 0.0
    %1176 = vmatpush1.msra.mxu0 0.0
    %1177 = vmatprep.subr.mxu0 0.0
    %1178 = vmatpush1.msra.mxu0 0.0
    %1179 = vmatprep.subr.mxu0 0.0
    %1180 = vmatpush1.msra.mxu0 0.0
    %1181 = vmatprep.subr.mxu0 0.0
    %1182 = vmatpush1.msra.mxu0 0.0
    %1183 = vmatprep.subr.mxu0 0.0
    %1184 = vmatpush1.msra.mxu0 0.0
    %1185 = vmatprep.subr.mxu0 0.0
    %1186 = vmatpush1.msra.mxu0 0.0
    %1187 = vmatprep.subr.mxu0 0.0
    %1188 = vmatpush1.msra.mxu0 0.0
    %1189 = vmatprep.subr.mxu0 0.0
    %1190 = vmatpush1.msra.mxu0 0.0
    %1191 = vmatprep.subr.mxu0 0.0
    %1192 = vmatpush1.msra.mxu0 0.0
    %1193 = vmatprep.subr.mxu0 0.0
    %1194 = vmatpush1.msra.mxu0 0.0
    %1195 = vmatprep.mubr.f32.mxu0 0.0
    %1196 = vmatmul.mubr.f32.gmra.mrb[0].mxu0 %v957
    %v1197 = vpop.f32.mrb[0].mxu0
    %v1198 = vadd.f32 0.0, %v1197
    %v1199 = vpop.f32.mrb[0].mxu0
    %1200 = vdwg.mxu0
    %v1202 = vrot.slane %v1198, 5
    %v1203 = vrot.slane %v1198, 6
    %v1206 = vadd.f32 %v155, %v1202
    %v1207 = vadd.f32 %v160, %v1203
    %v1208 = vxor.u32 %v1206, 2147483648
    %v1209 = vxor.u32 %v1207, 2147483648
    %v1210 = vmul.f32 %v1208, 1.442695
    %v1211 = vpow.pop %v1210
    %v1212 = vmul.f32 %v1209, 1.442695
    %v1213 = vpow.pop %v1212
    %v1214 = vadd.f32 %v1211, 1.0
    %v1215 = vadd.f32 %v1213, 1.0
    %v1216 = vrcp.pop %v1214
    %v1217 = vmul.f32 1.0, %v1216
    %v1218 = vrcp.pop %v1215
    %v1219 = vmul.f32 1.0, %v1218
    %v1220 = vadd.f32 %v1198, %v276
    %v1222 = vrot.slane %v1220, 5
    %v1223 = vrot.slane %v1220, 6
    %1224 = vrot.lane.b32.xlu0 %v1222, 64
    %v1225 = vpop.permute.xlu0 %1224
    %1226 = vrot.lane.b32.xlu0 %v1223, 64
    %v1227 = vpop.permute.xlu0 %1226
    %v1230 = vmul.f32 %v1217, %v1225
    %v1231 = vmul.f32 %v1219, %v1227
    %1234 = vrot.lane.b32.xlu0 %v1230, 64
    %v1235 = vpop.permute.xlu0 %1234
    %1236 = vrot.lane.b32.xlu0 %v1231, 64
    %v1237 = vpop.permute.xlu0 %1236
    %v1240 = vadd.f32 %v155, %v1235
    %v1241 = vadd.f32 %v160, %v1237
    %v1242 = vtanh.pop %v1240
    %v1243 = vtanh.pop %v1241
    %v1244 = vsub.f32 1.0, %v1217
    %v1245 = vsub.f32 1.0, %v1219
    %1248 = vrot.lane.b32.xlu0 %v1242, 96
    %v1249 = vpop.permute.xlu0 %1248
    %1250 = vrot.lane.b32.xlu0 %v1243, 96
    %v1251 = vpop.permute.xlu0 %1250
    %v1254 = vmul.f32 %v1244, %v1249
    %v1255 = vmul.f32 %v1245, %v1251
    %v1256 = vrot.slane %v948, 7
    %v1257 = vrot.slane %v949, 7
    %v1260 = vmul.f32 %v1217, %v1256
    %v1261 = vmul.f32 %v1219, %v1257
    %v1262 = vadd.f32 %v1254, %v1260
    %v1263 = vadd.f32 %v1255, %v1261
    %v1266 = vrot.slane %v1262, 3
    %v1267 = vrot.slane %v1263, 2
    %v1268 = vsel %vm326, %v1267, %v1266
    %1269 = vrot.lane.b32.xlu0 %v1268, 96
    %v1270 = vpop.permute.xlu0 %1269
    %v1271 = vsel %vm178, %v1270, 0
    %1273 = vmatprep.subr.mxu0 0.0
    %1274 = vmatpush1.msra.mxu0 %v167
    %1275 = vmatprep.subr.mxu0 0.0
    %1276 = vmatpush1.msra.mxu0 %v168
    %1277 = vmatprep.subr.mxu0 0.0
    %1278 = vmatpush1.msra.mxu0 %v169
    %1279 = vmatprep.subr.mxu0 0.0
    %1280 = vmatpush1.msra.mxu0 %v170
    %1281 = vmatprep.subr.mxu0 0.0
    %1282 = vmatpush1.msra.mxu0 0.0
    %1283 = vmatprep.subr.mxu0 0.0
    %1284 = vmatpush1.msra.mxu0 0.0
    %1285 = vmatprep.subr.mxu0 0.0
    %1286 = vmatpush1.msra.mxu0 0.0
    %1287 = vmatprep.subr.mxu0 0.0
    %1288 = vmatpush1.msra.mxu0 0.0
    %1289 = vmatprep.subr.mxu0 0.0
    %1290 = vmatpush1.msra.mxu0 0.0
    %1291 = vmatprep.subr.mxu0 0.0
    %1292 = vmatpush1.msra.mxu0 0.0
    %1293 = vmatprep.subr.mxu0 0.0
    %1294 = vmatpush1.msra.mxu0 0.0
    %1295 = vmatprep.subr.mxu0 0.0
    %1296 = vmatpush1.msra.mxu0 0.0
    %1297 = vmatprep.subr.mxu0 0.0
    %1298 = vmatpush1.msra.mxu0 0.0
    %1299 = vmatprep.subr.mxu0 0.0
    %1300 = vmatpush1.msra.mxu0 0.0
    %1301 = vmatprep.subr.mxu0 0.0
    %1302 = vmatpush1.msra.mxu0 0.0
    %1303 = vmatprep.subr.mxu0 0.0
    %1304 = vmatpush1.msra.mxu0 0.0
    %1305 = vmatprep.subr.mxu0 0.0
    %1306 = vmatpush1.msra.mxu0 0.0
    %1307 = vmatprep.subr.mxu0 0.0
    %1308 = vmatpush1.msra.mxu0 0.0
    %1309 = vmatprep.subr.mxu0 0.0
    %1310 = vmatpush1.msra.mxu0 0.0
    %1311 = vmatprep.subr.mxu0 0.0
    %1312 = vmatpush1.msra.mxu0 0.0
    %1313 = vmatprep.subr.mxu0 0.0
    %1314 = vmatpush1.msra.mxu0 0.0
    %1315 = vmatprep.subr.mxu0 0.0
    %1316 = vmatpush1.msra.mxu0 0.0
    %1317 = vmatprep.subr.mxu0 0.0
    %1318 = vmatpush1.msra.mxu0 0.0
    %1319 = vmatprep.subr.mxu0 0.0
    %1320 = vmatpush1.msra.mxu0 0.0
    %1321 = vmatprep.subr.mxu0 0.0
    %1322 = vmatpush1.msra.mxu0 0.0
    %1323 = vmatprep.subr.mxu0 0.0
    %1324 = vmatpush1.msra.mxu0 0.0
    %1325 = vmatprep.subr.mxu0 0.0
    %1326 = vmatpush1.msra.mxu0 0.0
    %1327 = vmatprep.subr.mxu0 0.0
    %1328 = vmatpush1.msra.mxu0 0.0
    %1329 = vmatprep.subr.mxu0 0.0
    %1330 = vmatpush1.msra.mxu0 0.0
    %1331 = vmatprep.subr.mxu0 0.0
    %1332 = vmatpush1.msra.mxu0 0.0
    %1333 = vmatprep.subr.mxu0 0.0
    %1334 = vmatpush1.msra.mxu0 0.0
    %1335 = vmatprep.subr.mxu0 0.0
    %1336 = vmatpush1.msra.mxu0 0.0
    %1337 = vmatprep.mubr.f32.mxu0 0.0
    %1338 = vmatmul.mubr.f32.gmra.mrb[0].mxu0 %v1271
    %v1339 = vpop.f32.mrb[0].mxu0
    %v1340 = vadd.f32 %v321, %v1339
    %v1341 = vpop.f32.mrb[0].mxu0
    %1342 = vdwg.mxu0
    %1344 = vrot.lane.b32.xlu0 %v1130, 96
    %v1345 = vpop.permute.xlu0 %1344
    %v1346 = vsel %vm178, %v1345, 0
    %1348 = vmatprep.subr.mxu0 0.0
    %1349 = vmatpush1.msra.mxu0 %v171
    %1350 = vmatprep.subr.mxu0 0.0
    %1351 = vmatpush1.msra.mxu0 %v172
    %1352 = vmatprep.subr.mxu0 0.0
    %1353 = vmatpush1.msra.mxu0 %v173
    %1354 = vmatprep.subr.mxu0 0.0
    %1355 = vmatpush1.msra.mxu0 %v174
    %1356 = vmatprep.subr.mxu0 0.0
    %1357 = vmatpush1.msra.mxu0 0.0
    %1358 = vmatprep.subr.mxu0 0.0
    %1359 = vmatpush1.msra.mxu0 0.0
    %1360 = vmatprep.subr.mxu0 0.0
    %1361 = vmatpush1.msra.mxu0 0.0
    %1362 = vmatprep.subr.mxu0 0.0
    %1363 = vmatpush1.msra.mxu0 0.0
    %1364 = vmatprep.subr.mxu0 0.0
    %1365 = vmatpush1.msra.mxu0 0.0
    %1366 = vmatprep.subr.mxu0 0.0
    %1367 = vmatpush1.msra.mxu0 0.0
    %1368 = vmatprep.subr.mxu0 0.0
    %1369 = vmatpush1.msra.mxu0 0.0
    %1370 = vmatprep.subr.mxu0 0.0
    %1371 = vmatpush1.msra.mxu0 0.0
    %1372 = vmatprep.subr.mxu0 0.0
    %1373 = vmatpush1.msra.mxu0 0.0
    %1374 = vmatprep.subr.mxu0 0.0
    %1375 = vmatpush1.msra.mxu0 0.0
    %1376 = vmatprep.subr.mxu0 0.0
    %1377 = vmatpush1.msra.mxu0 0.0
    %1378 = vmatprep.subr.mxu0 0.0
    %1379 = vmatpush1.msra.mxu0 0.0
    %1380 = vmatprep.subr.mxu0 0.0
    %1381 = vmatpush1.msra.mxu0 0.0
    %1382 = vmatprep.subr.mxu0 0.0
    %1383 = vmatpush1.msra.mxu0 0.0
    %1384 = vmatprep.subr.mxu0 0.0
    %1385 = vmatpush1.msra.mxu0 0.0
    %1386 = vmatprep.subr.mxu0 0.0
    %1387 = vmatpush1.msra.mxu0 0.0
    %1388 = vmatprep.subr.mxu0 0.0
    %1389 = vmatpush1.msra.mxu0 0.0
    %1390 = vmatprep.subr.mxu0 0.0
    %1391 = vmatpush1.msra.mxu0 0.0
    %1392 = vmatprep.subr.mxu0 0.0
    %1393 = vmatpush1.msra.mxu0 0.0
    %1394 = vmatprep.subr.mxu0 0.0
    %1395 = vmatpush1.msra.mxu0 0.0
    %1396 = vmatprep.subr.mxu0 0.0
    %1397 = vmatpush1.msra.mxu0 0.0
    %1398 = vmatprep.subr.mxu0 0.0
    %1399 = vmatpush1.msra.mxu0 0.0
    %1400 = vmatprep.subr.mxu0 0.0
    %1401 = vmatpush1.msra.mxu0 0.0
    %1402 = vmatprep.subr.mxu0 0.0
    %1403 = vmatpush1.msra.mxu0 0.0
    %1404 = vmatprep.subr.mxu0 0.0
    %1405 = vmatpush1.msra.mxu0 0.0
    %1406 = vmatprep.subr.mxu0 0.0
    %1407 = vmatpush1.msra.mxu0 0.0
    %1408 = vmatprep.subr.mxu0 0.0
    %1409 = vmatpush1.msra.mxu0 0.0
    %1410 = vmatprep.subr.mxu0 0.0
    %1411 = vmatpush1.msra.mxu0 0.0
    %1412 = vmatprep.mubr.f32.mxu0 0.0
    %1413 = vmatmul.mubr.f32.gmra.mrb[0].mxu0 %v1346
    %v1414 = vpop.f32.mrb[0].mxu0
    %v1415 = vadd.f32 0.0, %v1414
    %v1416 = vpop.f32.mrb[0].mxu0
    %1417 = vdwg.mxu0
    %v1418 = vadd.f32 %v1340, %v1415
    %v1419 = vxor.u32 %v1418, 2147483648
    %v1420 = vmul.f32 %v1419, 1.442695
    %v1421 = vpow.pop %v1420
    %v1422 = vadd.f32 %v1421, 1.0
    %v1423 = vrcp.pop %v1422
    %v1424 = vmul.f32 1.0, %v1423
    %v1425 = vadd.f32 %v1415, %v485
    %1427 = vrot.lane.b32.xlu0 %v1425, 64
    %v1428 = vpop.permute.xlu0 %1427
    %v1430 = vmul.f32 %v1424, %v1428
    %1432 = vrot.lane.b32.xlu0 %v1430, 64
    %v1433 = vpop.permute.xlu0 %1432
    %v1435 = vadd.f32 %v1340, %v1433
    %v1436 = vtanh.pop %v1435
    %v1437 = vsub.f32 1.0, %v1424
    %1439 = vrot.lane.b32.xlu0 %v1436, 96
    %v1440 = vpop.permute.xlu0 %1439
    %v1442 = vmul.f32 %v1437, %v1440
    %v1443 = vmul.f32 %v1424, %v1130
    %v1444 = vadd.f32 %v1442, %v1443
    %1445 = vmatprep.subr.mxu0 0.0
    %1446 = vmatpush1.msra.mxu0 %v163
    %1447 = vmatprep.subr.mxu0 0.0
    %1448 = vmatpush1.msra.mxu0 %v164
    %1449 = vmatprep.subr.mxu0 0.0
    %1450 = vmatpush1.msra.mxu0 %v165
    %1451 = vmatprep.subr.mxu0 0.0
    %1452 = vmatpush1.msra.mxu0 %v166
    %1453 = vmatprep.subr.mxu0 0.0
    %1454 = vmatpush1.msra.mxu0 0.0
    %1455 = vmatprep.subr.mxu0 0.0
    %1456 = vmatpush1.msra.mxu0 0.0
    %1457 = vmatprep.subr.mxu0 0.0
    %1458 = vmatpush1.msra.mxu0 0.0
    %1459 = vmatprep.subr.mxu0 0.0
    %1460 = vmatpush1.msra.mxu0 0.0
    %1461 = vmatprep.subr.mxu0 0.0
    %1462 = vmatpush1.msra.mxu0 0.0
    %1463 = vmatprep.subr.mxu0 0.0
    %1464 = vmatpush1.msra.mxu0 0.0
    %1465 = vmatprep.subr.mxu0 0.0
    %1466 = vmatpush1.msra.mxu0 0.0
    %1467 = vmatprep.subr.mxu0 0.0
    %1468 = vmatpush1.msra.mxu0 0.0
    %1469 = vmatprep.subr.mxu0 0.0
    %1470 = vmatpush1.msra.mxu0 0.0
    %1471 = vmatprep.subr.mxu0 0.0
    %1472 = vmatpush1.msra.mxu0 0.0
    %1473 = vmatprep.subr.mxu0 0.0
    %1474 = vmatpush1.msra.mxu0 0.0
    %1475 = vmatprep.subr.mxu0 0.0
    %1476 = vmatpush1.msra.mxu0 0.0
    %1477 = vmatprep.subr.mxu0 0.0
    %1478 = vmatpush1.msra.mxu0 0.0
    %1479 = vmatprep.subr.mxu0 0.0
    %1480 = vmatpush1.msra.mxu0 0.0
    %1481 = vmatprep.subr.mxu0 0.0
    %1482 = vmatpush1.msra.mxu0 0.0
    %1483 = vmatprep.subr.mxu0 0.0
    %1484 = vmatpush1.msra.mxu0 0.0
    %1485 = vmatprep.subr.mxu0 0.0
    %1486 = vmatpush1.msra.mxu0 0.0
    %1487 = vmatprep.subr.mxu0 0.0
    %1488 = vmatpush1.msra.mxu0 0.0
    %1489 = vmatprep.subr.mxu0 0.0
    %1490 = vmatpush1.msra.mxu0 0.0
    %1491 = vmatprep.subr.mxu0 0.0
    %1492 = vmatpush1.msra.mxu0 0.0
    %1493 = vmatprep.subr.mxu0 0.0
    %1494 = vmatpush1.msra.mxu0 0.0
    %1495 = vmatprep.subr.mxu0 0.0
    %1496 = vmatpush1.msra.mxu0 0.0
    %1497 = vmatprep.subr.mxu0 0.0
    %1498 = vmatpush1.msra.mxu0 0.0
    %1499 = vmatprep.subr.mxu0 0.0
    %1500 = vmatpush1.msra.mxu0 0.0
    %1501 = vmatprep.subr.mxu0 0.0
    %1502 = vmatpush1.msra.mxu0 0.0
    %1503 = vmatprep.subr.mxu0 0.0
    %1504 = vmatpush1.msra.mxu0 0.0
    %1505 = vmatprep.subr.mxu0 0.0
    %1506 = vmatpush1.msra.mxu0 0.0
    %1507 = vmatprep.subr.mxu0 0.0
    %1508 = vmatpush1.msra.mxu0 0.0
    %1509 = vmatprep.mubr.f32.mxu0 0.0
    %1510 = vmatmul.mubr.f32.gmra.mrb[0].mxu0 %v1271
    %v1511 = vpop.f32.mrb[0].mxu0
    %v1512 = vadd.f32 0.0, %v1511
    %v1513 = vpop.f32.mrb[0].mxu0
    %1514 = vdwg.mxu0
    %v1516 = vrot.slane %v1512, 4
    %v1517 = vrot.slane %v1512, 5
    %v1520 = vadd.f32 %v155, %v1516
    %v1521 = vadd.f32 %v160, %v1517
    %v1522 = vxor.u32 %v1520, 2147483648
    %v1523 = vxor.u32 %v1521, 2147483648
    %v1524 = vmul.f32 %v1522, 1.442695
    %v1525 = vpow.pop %v1524
    %v1526 = vmul.f32 %v1523, 1.442695
    %v1527 = vpow.pop %v1526
    %v1528 = vadd.f32 %v1525, 1.0
    %v1529 = vadd.f32 %v1527, 1.0
    %v1530 = vrcp.pop %v1528
    %v1531 = vmul.f32 1.0, %v1530
    %v1532 = vrcp.pop %v1529
    %v1533 = vmul.f32 1.0, %v1532
    %v1534 = vadd.f32 %v1512, %v276
    %v1536 = vrot.slane %v1534, 4
    %v1537 = vrot.slane %v1534, 5
    %1538 = vrot.lane.b32.xlu0 %v1536, 64
    %v1539 = vpop.permute.xlu0 %1538
    %1540 = vrot.lane.b32.xlu0 %v1537, 64
    %v1541 = vpop.permute.xlu0 %1540
    %v1544 = vmul.f32 %v1531, %v1539
    %v1545 = vmul.f32 %v1533, %v1541
    %1548 = vrot.lane.b32.xlu0 %v1544, 64
    %v1549 = vpop.permute.xlu0 %1548
    %1550 = vrot.lane.b32.xlu0 %v1545, 64
    %v1551 = vpop.permute.xlu0 %1550
    %v1554 = vadd.f32 %v155, %v1549
    %v1555 = vadd.f32 %v160, %v1551
    %v1556 = vtanh.pop %v1554
    %v1557 = vtanh.pop %v1555
    %v1558 = vsub.f32 1.0, %v1531
    %v1559 = vsub.f32 1.0, %v1533
    %1562 = vrot.lane.b32.xlu0 %v1556, 96
    %v1563 = vpop.permute.xlu0 %1562
    %1564 = vrot.lane.b32.xlu0 %v1557, 96
    %v1565 = vpop.permute.xlu0 %1564
    %v1568 = vmul.f32 %v1558, %v1563
    %v1569 = vmul.f32 %v1559, %v1565
    %v1570 = vrot.slane %v1262, 7
    %v1571 = vrot.slane %v1263, 7
    %v1574 = vmul.f32 %v1531, %v1570
    %v1575 = vmul.f32 %v1533, %v1571
    %v1576 = vadd.f32 %v1568, %v1574
    %v1577 = vadd.f32 %v1569, %v1575
    %v1580 = vrot.slane %v1576, 4
    %v1581 = vrot.slane %v1577, 3
    %v1582 = vsel %vm326, %v1581, %v1580
    %1583 = vrot.lane.b32.xlu0 %v1582, 96
    %v1584 = vpop.permute.xlu0 %1583
    %v1585 = vsel %vm178, %v1584, 0
    %1587 = vmatprep.subr.mxu0 0.0
    %1588 = vmatpush1.msra.mxu0 %v167
    %1589 = vmatprep.subr.mxu0 0.0
    %1590 = vmatpush1.msra.mxu0 %v168
    %1591 = vmatprep.subr.mxu0 0.0
    %1592 = vmatpush1.msra.mxu0 %v169
    %1593 = vmatprep.subr.mxu0 0.0
    %1594 = vmatpush1.msra.mxu0 %v170
    %1595 = vmatprep.subr.mxu0 0.0
    %1596 = vmatpush1.msra.mxu0 0.0
    %1597 = vmatprep.subr.mxu0 0.0
    %1598 = vmatpush1.msra.mxu0 0.0
    %1599 = vmatprep.subr.mxu0 0.0
    %1600 = vmatpush1.msra.mxu0 0.0
    %1601 = vmatprep.subr.mxu0 0.0
    %1602 = vmatpush1.msra.mxu0 0.0
    %1603 = vmatprep.subr.mxu0 0.0
    %1604 = vmatpush1.msra.mxu0 0.0
    %1605 = vmatprep.subr.mxu0 0.0
    %1606 = vmatpush1.msra.mxu0 0.0
    %1607 = vmatprep.subr.mxu0 0.0
    %1608 = vmatpush1.msra.mxu0 0.0
    %1609 = vmatprep.subr.mxu0 0.0
    %1610 = vmatpush1.msra.mxu0 0.0
    %1611 = vmatprep.subr.mxu0 0.0
    %1612 = vmatpush1.msra.mxu0 0.0
    %1613 = vmatprep.subr.mxu0 0.0
    %1614 = vmatpush1.msra.mxu0 0.0
    %1615 = vmatprep.subr.mxu0 0.0
    %1616 = vmatpush1.msra.mxu0 0.0
    %1617 = vmatprep.subr.mxu0 0.0
    %1618 = vmatpush1.msra.mxu0 0.0
    %1619 = vmatprep.subr.mxu0 0.0
    %1620 = vmatpush1.msra.mxu0 0.0
    %1621 = vmatprep.subr.mxu0 0.0
    %1622 = vmatpush1.msra.mxu0 0.0
    %1623 = vmatprep.subr.mxu0 0.0
    %1624 = vmatpush1.msra.mxu0 0.0
    %1625 = vmatprep.subr.mxu0 0.0
    %1626 = vmatpush1.msra.mxu0 0.0
    %1627 = vmatprep.subr.mxu0 0.0
    %1628 = vmatpush1.msra.mxu0 0.0
    %1629 = vmatprep.subr.mxu0 0.0
    %1630 = vmatpush1.msra.mxu0 0.0
    %1631 = vmatprep.subr.mxu0 0.0
    %1632 = vmatpush1.msra.mxu0 0.0
    %1633 = vmatprep.subr.mxu0 0.0
    %1634 = vmatpush1.msra.mxu0 0.0
    %1635 = vmatprep.subr.mxu0 0.0
    %1636 = vmatpush1.msra.mxu0 0.0
    %1637 = vmatprep.subr.mxu0 0.0
    %1638 = vmatpush1.msra.mxu0 0.0
    %1639 = vmatprep.subr.mxu0 0.0
    %1640 = vmatpush1.msra.mxu0 0.0
    %1641 = vmatprep.subr.mxu0 0.0
    %1642 = vmatpush1.msra.mxu0 0.0
    %1643 = vmatprep.subr.mxu0 0.0
    %1644 = vmatpush1.msra.mxu0 0.0
    %1645 = vmatprep.subr.mxu0 0.0
    %1646 = vmatpush1.msra.mxu0 0.0
    %1647 = vmatprep.subr.mxu0 0.0
    %1648 = vmatpush1.msra.mxu0 0.0
    %1649 = vmatprep.subr.mxu0 0.0
    %1650 = vmatpush1.msra.mxu0 0.0
    %1651 = vmatprep.mubr.f32.mxu0 0.0
    %1652 = vmatmul.mubr.f32.gmra.mrb[0].mxu0 %v1585
    %v1653 = vpop.f32.mrb[0].mxu0
    %v1654 = vadd.f32 %v321, %v1653
    %v1655 = vpop.f32.mrb[0].mxu0
    %1656 = vdwg.mxu0
    %1658 = vrot.lane.b32.xlu0 %v1444, 96
    %v1659 = vpop.permute.xlu0 %1658
    %v1660 = vsel %vm178, %v1659, 0
    %1662 = vmatprep.subr.mxu0 0.0
    %1663 = vmatpush1.msra.mxu0 %v171
    %1664 = vmatprep.subr.mxu0 0.0
    %1665 = vmatpush1.msra.mxu0 %v172
    %1666 = vmatprep.subr.mxu0 0.0
    %1667 = vmatpush1.msra.mxu0 %v173
    %1668 = vmatprep.subr.mxu0 0.0
    %1669 = vmatpush1.msra.mxu0 %v174
    %1670 = vmatprep.subr.mxu0 0.0
    %1671 = vmatpush1.msra.mxu0 0.0
    %1672 = vmatprep.subr.mxu0 0.0
    %1673 = vmatpush1.msra.mxu0 0.0
    %1674 = vmatprep.subr.mxu0 0.0
    %1675 = vmatpush1.msra.mxu0 0.0
    %1676 = vmatprep.subr.mxu0 0.0
    %1677 = vmatpush1.msra.mxu0 0.0
    %1678 = vmatprep.subr.mxu0 0.0
    %1679 = vmatpush1.msra.mxu0 0.0
    %1680 = vmatprep.subr.mxu0 0.0
    %1681 = vmatpush1.msra.mxu0 0.0
    %1682 = vmatprep.subr.mxu0 0.0
    %1683 = vmatpush1.msra.mxu0 0.0
    %1684 = vmatprep.subr.mxu0 0.0
    %1685 = vmatpush1.msra.mxu0 0.0
    %1686 = vmatprep.subr.mxu0 0.0
    %1687 = vmatpush1.msra.mxu0 0.0
    %1688 = vmatprep.subr.mxu0 0.0
    %1689 = vmatpush1.msra.mxu0 0.0
    %1690 = vmatprep.subr.mxu0 0.0
    %1691 = vmatpush1.msra.mxu0 0.0
    %1692 = vmatprep.subr.mxu0 0.0
    %1693 = vmatpush1.msra.mxu0 0.0
    %1694 = vmatprep.subr.mxu0 0.0
    %1695 = vmatpush1.msra.mxu0 0.0
    %1696 = vmatprep.subr.mxu0 0.0
    %1697 = vmatpush1.msra.mxu0 0.0
    %1698 = vmatprep.subr.mxu0 0.0
    %1699 = vmatpush1.msra.mxu0 0.0
    %1700 = vmatprep.subr.mxu0 0.0
    %1701 = vmatpush1.msra.mxu0 0.0
    %1702 = vmatprep.subr.mxu0 0.0
    %1703 = vmatpush1.msra.mxu0 0.0
    %1704 = vmatprep.subr.mxu0 0.0
    %1705 = vmatpush1.msra.mxu0 0.0
    %1706 = vmatprep.subr.mxu0 0.0
    %1707 = vmatpush1.msra.mxu0 0.0
    %1708 = vmatprep.subr.mxu0 0.0
    %1709 = vmatpush1.msra.mxu0 0.0
    %1710 = vmatprep.subr.mxu0 0.0
    %1711 = vmatpush1.msra.mxu0 0.0
    %1712 = vmatprep.subr.mxu0 0.0
    %1713 = vmatpush1.msra.mxu0 0.0
    %1714 = vmatprep.subr.mxu0 0.0
    %1715 = vmatpush1.msra.mxu0 0.0
    %1716 = vmatprep.subr.mxu0 0.0
    %1717 = vmatpush1.msra.mxu0 0.0
    %1718 = vmatprep.subr.mxu0 0.0
    %1719 = vmatpush1.msra.mxu0 0.0
    %1720 = vmatprep.subr.mxu0 0.0
    %1721 = vmatpush1.msra.mxu0 0.0
    %1722 = vmatprep.subr.mxu0 0.0
    %1723 = vmatpush1.msra.mxu0 0.0
    %1724 = vmatprep.subr.mxu0 0.0
    %1725 = vmatpush1.msra.mxu0 0.0
    %1726 = vmatprep.mubr.f32.mxu0 0.0
    %1727 = vmatmul.mubr.f32.gmra.mrb[0].mxu0 %v1660
    %v1728 = vpop.f32.mrb[0].mxu0
    %v1729 = vadd.f32 0.0, %v1728
    %v1730 = vpop.f32.mrb[0].mxu0
    %1731 = vdwg.mxu0
    %v1732 = vadd.f32 %v1654, %v1729
    %v1733 = vxor.u32 %v1732, 2147483648
    %v1734 = vmul.f32 %v1733, 1.442695
    %v1735 = vpow.pop %v1734
    %v1736 = vadd.f32 %v1735, 1.0
    %v1737 = vrcp.pop %v1736
    %v1738 = vmul.f32 1.0, %v1737
    %v1739 = vadd.f32 %v1729, %v485
    %1741 = vrot.lane.b32.xlu0 %v1739, 64
    %v1742 = vpop.permute.xlu0 %1741
    %v1744 = vmul.f32 %v1738, %v1742
    %1746 = vrot.lane.b32.xlu0 %v1744, 64
    %v1747 = vpop.permute.xlu0 %1746
    %v1749 = vadd.f32 %v1654, %v1747
    %v1750 = vtanh.pop %v1749
    %v1751 = vsub.f32 1.0, %v1738
    %1753 = vrot.lane.b32.xlu0 %v1750, 96
    %v1754 = vpop.permute.xlu0 %1753
    %v1756 = vmul.f32 %v1751, %v1754
    %v1757 = vmul.f32 %v1738, %v1444
    %v1758 = vadd.f32 %v1756, %v1757
    %1759 = vmatprep.subr.mxu0 0.0
    %1760 = vmatpush1.msra.mxu0 %v163
    %1761 = vmatprep.subr.mxu0 0.0
    %1762 = vmatpush1.msra.mxu0 %v164
    %1763 = vmatprep.subr.mxu0 0.0
    %1764 = vmatpush1.msra.mxu0 %v165
    %1765 = vmatprep.subr.mxu0 0.0
    %1766 = vmatpush1.msra.mxu0 %v166
    %1767 = vmatprep.subr.mxu0 0.0
    %1768 = vmatpush1.msra.mxu0 0.0
    %1769 = vmatprep.subr.mxu0 0.0
    %1770 = vmatpush1.msra.mxu0 0.0
    %1771 = vmatprep.subr.mxu0 0.0
    %1772 = vmatpush1.msra.mxu0 0.0
    %1773 = vmatprep.subr.mxu0 0.0
    %1774 = vmatpush1.msra.mxu0 0.0
    %1775 = vmatprep.subr.mxu0 0.0
    %1776 = vmatpush1.msra.mxu0 0.0
    %1777 = vmatprep.subr.mxu0 0.0
    %1778 = vmatpush1.msra.mxu0 0.0
    %1779 = vmatprep.subr.mxu0 0.0
    %1780 = vmatpush1.msra.mxu0 0.0
    %1781 = vmatprep.subr.mxu0 0.0
    %1782 = vmatpush1.msra.mxu0 0.0
    %1783 = vmatprep.subr.mxu0 0.0
    %1784 = vmatpush1.msra.mxu0 0.0
    %1785 = vmatprep.subr.mxu0 0.0
    %1786 = vmatpush1.msra.mxu0 0.0
    %1787 = vmatprep.subr.mxu0 0.0
    %1788 = vmatpush1.msra.mxu0 0.0
    %1789 = vmatprep.subr.mxu0 0.0
    %1790 = vmatpush1.msra.mxu0 0.0
    %1791 = vmatprep.subr.mxu0 0.0
    %1792 = vmatpush1.msra.mxu0 0.0
    %1793 = vmatprep.subr.mxu0 0.0
    %1794 = vmatpush1.msra.mxu0 0.0
    %1795 = vmatprep.subr.mxu0 0.0
    %1796 = vmatpush1.msra.mxu0 0.0
    %1797 = vmatprep.subr.mxu0 0.0
    %1798 = vmatpush1.msra.mxu0 0.0
    %1799 = vmatprep.subr.mxu0 0.0
    %1800 = vmatpush1.msra.mxu0 0.0
    %1801 = vmatprep.subr.mxu0 0.0
    %1802 = vmatpush1.msra.mxu0 0.0
    %1803 = vmatprep.subr.mxu0 0.0
    %1804 = vmatpush1.msra.mxu0 0.0
    %1805 = vmatprep.subr.mxu0 0.0
    %1806 = vmatpush1.msra.mxu0 0.0
    %1807 = vmatprep.subr.mxu0 0.0
    %1808 = vmatpush1.msra.mxu0 0.0
    %1809 = vmatprep.subr.mxu0 0.0
    %1810 = vmatpush1.msra.mxu0 0.0
    %1811 = vmatprep.subr.mxu0 0.0
    %1812 = vmatpush1.msra.mxu0 0.0
    %1813 = vmatprep.subr.mxu0 0.0
    %1814 = vmatpush1.msra.mxu0 0.0
    %1815 = vmatprep.subr.mxu0 0.0
    %1816 = vmatpush1.msra.mxu0 0.0
    %1817 = vmatprep.subr.mxu0 0.0
    %1818 = vmatpush1.msra.mxu0 0.0
    %1819 = vmatprep.subr.mxu0 0.0
    %1820 = vmatpush1.msra.mxu0 0.0
    %1821 = vmatprep.subr.mxu0 0.0
    %1822 = vmatpush1.msra.mxu0 0.0
    %1823 = vmatprep.mubr.f32.mxu0 0.0
    %1824 = vmatmul.mubr.f32.gmra.mrb[0].mxu0 %v1585
    %v1825 = vpop.f32.mrb[0].mxu0
    %v1826 = vadd.f32 0.0, %v1825
    %v1827 = vpop.f32.mrb[0].mxu0
    %1828 = vdwg.mxu0
    %v1830 = vrot.slane %v1826, 3
    %v1831 = vrot.slane %v1826, 4
    %v1834 = vadd.f32 %v155, %v1830
    %v1835 = vadd.f32 %v160, %v1831
    %v1836 = vxor.u32 %v1834, 2147483648
    %v1837 = vxor.u32 %v1835, 2147483648
    %v1838 = vmul.f32 %v1836, 1.442695
    %v1839 = vpow.pop %v1838
    %v1840 = vmul.f32 %v1837, 1.442695
    %v1841 = vpow.pop %v1840
    %v1842 = vadd.f32 %v1839, 1.0
    %v1843 = vadd.f32 %v1841, 1.0
    %v1844 = vrcp.pop %v1842
    %v1845 = vmul.f32 1.0, %v1844
    %v1846 = vrcp.pop %v1843
    %v1847 = vmul.f32 1.0, %v1846
    %v1848 = vadd.f32 %v1826, %v276
    %v1850 = vrot.slane %v1848, 3
    %v1851 = vrot.slane %v1848, 4
    %1852 = vrot.lane.b32.xlu0 %v1850, 64
    %v1853 = vpop.permute.xlu0 %1852
    %1854 = vrot.lane.b32.xlu0 %v1851, 64
    %v1855 = vpop.permute.xlu0 %1854
    %v1858 = vmul.f32 %v1845, %v1853
    %v1859 = vmul.f32 %v1847, %v1855
    %1862 = vrot.lane.b32.xlu0 %v1858, 64
    %v1863 = vpop.permute.xlu0 %1862
    %1864 = vrot.lane.b32.xlu0 %v1859, 64
    %v1865 = vpop.permute.xlu0 %1864
    %v1868 = vadd.f32 %v155, %v1863
    %v1869 = vadd.f32 %v160, %v1865
    %v1870 = vtanh.pop %v1868
    %v1871 = vtanh.pop %v1869
    %v1872 = vsub.f32 1.0, %v1845
    %v1873 = vsub.f32 1.0, %v1847
    %1876 = vrot.lane.b32.xlu0 %v1870, 96
    %v1877 = vpop.permute.xlu0 %1876
    %1878 = vrot.lane.b32.xlu0 %v1871, 96
    %v1879 = vpop.permute.xlu0 %1878
    %v1882 = vmul.f32 %v1872, %v1877
    %v1883 = vmul.f32 %v1873, %v1879
    %v1884 = vrot.slane %v1576, 7
    %v1885 = vrot.slane %v1577, 7
    %v1888 = vmul.f32 %v1845, %v1884
    %v1889 = vmul.f32 %v1847, %v1885
    %v1890 = vadd.f32 %v1882, %v1888
    %v1891 = vadd.f32 %v1883, %v1889
    %v1894 = vrot.slane %v1890, 5
    %v1895 = vrot.slane %v1891, 4
    %v1896 = vsel %vm326, %v1895, %v1894
    %1897 = vrot.lane.b32.xlu0 %v1896, 96
    %v1898 = vpop.permute.xlu0 %1897
    %v1899 = vsel %vm178, %v1898, 0
    %1901 = vmatprep.subr.mxu0 0.0
    %1902 = vmatpush1.msra.mxu0 %v167
    %1903 = vmatprep.subr.mxu0 0.0
    %1904 = vmatpush1.msra.mxu0 %v168
    %1905 = vmatprep.subr.mxu0 0.0
    %1906 = vmatpush1.msra.mxu0 %v169
    %1907 = vmatprep.subr.mxu0 0.0
    %1908 = vmatpush1.msra.mxu0 %v170
    %1909 = vmatprep.subr.mxu0 0.0
    %1910 = vmatpush1.msra.mxu0 0.0
    %1911 = vmatprep.subr.mxu0 0.0
    %1912 = vmatpush1.msra.mxu0 0.0
    %1913 = vmatprep.subr.mxu0 0.0
    %1914 = vmatpush1.msra.mxu0 0.0
    %1915 = vmatprep.subr.mxu0 0.0
    %1916 = vmatpush1.msra.mxu0 0.0
    %1917 = vmatprep.subr.mxu0 0.0
    %1918 = vmatpush1.msra.mxu0 0.0
    %1919 = vmatprep.subr.mxu0 0.0
    %1920 = vmatpush1.msra.mxu0 0.0
    %1921 = vmatprep.subr.mxu0 0.0
    %1922 = vmatpush1.msra.mxu0 0.0
    %1923 = vmatprep.subr.mxu0 0.0
    %1924 = vmatpush1.msra.mxu0 0.0
    %1925 = vmatprep.subr.mxu0 0.0
    %1926 = vmatpush1.msra.mxu0 0.0
    %1927 = vmatprep.subr.mxu0 0.0
    %1928 = vmatpush1.msra.mxu0 0.0
    %1929 = vmatprep.subr.mxu0 0.0
    %1930 = vmatpush1.msra.mxu0 0.0
    %1931 = vmatprep.subr.mxu0 0.0
    %1932 = vmatpush1.msra.mxu0 0.0
    %1933 = vmatprep.subr.mxu0 0.0
    %1934 = vmatpush1.msra.mxu0 0.0
    %1935 = vmatprep.subr.mxu0 0.0
    %1936 = vmatpush1.msra.mxu0 0.0
    %1937 = vmatprep.subr.mxu0 0.0
    %1938 = vmatpush1.msra.mxu0 0.0
    %1939 = vmatprep.subr.mxu0 0.0
    %1940 = vmatpush1.msra.mxu0 0.0
    %1941 = vmatprep.subr.mxu0 0.0
    %1942 = vmatpush1.msra.mxu0 0.0
    %1943 = vmatprep.subr.mxu0 0.0
    %1944 = vmatpush1.msra.mxu0 0.0
    %1945 = vmatprep.subr.mxu0 0.0
    %1946 = vmatpush1.msra.mxu0 0.0
    %1947 = vmatprep.subr.mxu0 0.0
    %1948 = vmatpush1.msra.mxu0 0.0
    %1949 = vmatprep.subr.mxu0 0.0
    %1950 = vmatpush1.msra.mxu0 0.0
    %1951 = vmatprep.subr.mxu0 0.0
    %1952 = vmatpush1.msra.mxu0 0.0
    %1953 = vmatprep.subr.mxu0 0.0
    %1954 = vmatpush1.msra.mxu0 0.0
    %1955 = vmatprep.subr.mxu0 0.0
    %1956 = vmatpush1.msra.mxu0 0.0
    %1957 = vmatprep.subr.mxu0 0.0
    %1958 = vmatpush1.msra.mxu0 0.0
    %1959 = vmatprep.subr.mxu0 0.0
    %1960 = vmatpush1.msra.mxu0 0.0
    %1961 = vmatprep.subr.mxu0 0.0
    %1962 = vmatpush1.msra.mxu0 0.0
    %1963 = vmatprep.subr.mxu0 0.0
    %1964 = vmatpush1.msra.mxu0 0.0
    %1965 = vmatprep.mubr.f32.mxu0 0.0
    %1966 = vmatmul.mubr.f32.gmra.mrb[0].mxu0 %v1899
    %v1967 = vpop.f32.mrb[0].mxu0
    %v1968 = vadd.f32 %v321, %v1967
    %v1969 = vpop.f32.mrb[0].mxu0
    %1970 = vdwg.mxu0
    %1972 = vrot.lane.b32.xlu0 %v1758, 96
    %v1973 = vpop.permute.xlu0 %1972
    %v1974 = vsel %vm178, %v1973, 0
    %1976 = vmatprep.subr.mxu0 0.0
    %1977 = vmatpush1.msra.mxu0 %v171
    %1978 = vmatprep.subr.mxu0 0.0
    %1979 = vmatpush1.msra.mxu0 %v172
    %1980 = vmatprep.subr.mxu0 0.0
    %1981 = vmatpush1.msra.mxu0 %v173
    %1982 = vmatprep.subr.mxu0 0.0
    %1983 = vmatpush1.msra.mxu0 %v174
    %1984 = vmatprep.subr.mxu0 0.0
    %1985 = vmatpush1.msra.mxu0 0.0
    %1986 = vmatprep.subr.mxu0 0.0
    %1987 = vmatpush1.msra.mxu0 0.0
    %1988 = vmatprep.subr.mxu0 0.0
    %1989 = vmatpush1.msra.mxu0 0.0
    %1990 = vmatprep.subr.mxu0 0.0
    %1991 = vmatpush1.msra.mxu0 0.0
    %1992 = vmatprep.subr.mxu0 0.0
    %1993 = vmatpush1.msra.mxu0 0.0
    %1994 = vmatprep.subr.mxu0 0.0
    %1995 = vmatpush1.msra.mxu0 0.0
    %1996 = vmatprep.subr.mxu0 0.0
    %1997 = vmatpush1.msra.mxu0 0.0
    %1998 = vmatprep.subr.mxu0 0.0
    %1999 = vmatpush1.msra.mxu0 0.0
    %2000 = vmatprep.subr.mxu0 0.0
    %2001 = vmatpush1.msra.mxu0 0.0
    %2002 = vmatprep.subr.mxu0 0.0
    %2003 = vmatpush1.msra.mxu0 0.0
    %2004 = vmatprep.subr.mxu0 0.0
    %2005 = vmatpush1.msra.mxu0 0.0
    %2006 = vmatprep.subr.mxu0 0.0
    %2007 = vmatpush1.msra.mxu0 0.0
    %2008 = vmatprep.subr.mxu0 0.0
    %2009 = vmatpush1.msra.mxu0 0.0
    %2010 = vmatprep.subr.mxu0 0.0
    %2011 = vmatpush1.msra.mxu0 0.0
    %2012 = vmatprep.subr.mxu0 0.0
    %2013 = vmatpush1.msra.mxu0 0.0
    %2014 = vmatprep.subr.mxu0 0.0
    %2015 = vmatpush1.msra.mxu0 0.0
    %2016 = vmatprep.subr.mxu0 0.0
    %2017 = vmatpush1.msra.mxu0 0.0
    %2018 = vmatprep.subr.mxu0 0.0
    %2019 = vmatpush1.msra.mxu0 0.0
    %2020 = vmatprep.subr.mxu0 0.0
    %2021 = vmatpush1.msra.mxu0 0.0
    %2022 = vmatprep.subr.mxu0 0.0
    %2023 = vmatpush1.msra.mxu0 0.0
    %2024 = vmatprep.subr.mxu0 0.0
    %2025 = vmatpush1.msra.mxu0 0.0
    %2026 = vmatprep.subr.mxu0 0.0
    %2027 = vmatpush1.msra.mxu0 0.0
    %2028 = vmatprep.subr.mxu0 0.0
    %2029 = vmatpush1.msra.mxu0 0.0
    %2030 = vmatprep.subr.mxu0 0.0
    %2031 = vmatpush1.msra.mxu0 0.0
    %2032 = vmatprep.subr.mxu0 0.0
    %2033 = vmatpush1.msra.mxu0 0.0
    %2034 = vmatprep.subr.mxu0 0.0
    %2035 = vmatpush1.msra.mxu0 0.0
    %2036 = vmatprep.subr.mxu0 0.0
    %2037 = vmatpush1.msra.mxu0 0.0
    %2038 = vmatprep.subr.mxu0 0.0
    %2039 = vmatpush1.msra.mxu0 0.0
    %2040 = vmatprep.mubr.f32.mxu0 0.0
    %2041 = vmatmul.mubr.f32.gmra.mrb[0].mxu0 %v1974
    %v2042 = vpop.f32.mrb[0].mxu0
    %v2043 = vadd.f32 0.0, %v2042
    %v2044 = vpop.f32.mrb[0].mxu0
    %2045 = vdwg.mxu0
    %v2046 = vadd.f32 %v1968, %v2043
    %v2047 = vxor.u32 %v2046, 2147483648
    %v2048 = vmul.f32 %v2047, 1.442695
    %v2049 = vpow.pop %v2048
    %v2050 = vadd.f32 %v2049, 1.0
    %v2051 = vrcp.pop %v2050
    %v2052 = vmul.f32 1.0, %v2051
    %v2053 = vadd.f32 %v2043, %v485
    %2055 = vrot.lane.b32.xlu0 %v2053, 64
    %v2056 = vpop.permute.xlu0 %2055
    %v2058 = vmul.f32 %v2052, %v2056
    %2060 = vrot.lane.b32.xlu0 %v2058, 64
    %v2061 = vpop.permute.xlu0 %2060
    %v2063 = vadd.f32 %v1968, %v2061
    %v2064 = vtanh.pop %v2063
    %v2065 = vsub.f32 1.0, %v2052
    %2067 = vrot.lane.b32.xlu0 %v2064, 96
    %v2068 = vpop.permute.xlu0 %2067
    %v2070 = vmul.f32 %v2065, %v2068
    %v2071 = vmul.f32 %v2052, %v1758
    %v2072 = vadd.f32 %v2070, %v2071
    %2073 = vmatprep.subr.mxu0 0.0
    %2074 = vmatpush1.msra.mxu0 %v163
    %2075 = vmatprep.subr.mxu0 0.0
    %2076 = vmatpush1.msra.mxu0 %v164
    %2077 = vmatprep.subr.mxu0 0.0
    %2078 = vmatpush1.msra.mxu0 %v165
    %2079 = vmatprep.subr.mxu0 0.0
    %2080 = vmatpush1.msra.mxu0 %v166
    %2081 = vmatprep.subr.mxu0 0.0
    %2082 = vmatpush1.msra.mxu0 0.0
    %2083 = vmatprep.subr.mxu0 0.0
    %2084 = vmatpush1.msra.mxu0 0.0
    %2085 = vmatprep.subr.mxu0 0.0
    %2086 = vmatpush1.msra.mxu0 0.0
    %2087 = vmatprep.subr.mxu0 0.0
    %2088 = vmatpush1.msra.mxu0 0.0
    %2089 = vmatprep.subr.mxu0 0.0
    %2090 = vmatpush1.msra.mxu0 0.0
    %2091 = vmatprep.subr.mxu0 0.0
    %2092 = vmatpush1.msra.mxu0 0.0
    %2093 = vmatprep.subr.mxu0 0.0
    %2094 = vmatpush1.msra.mxu0 0.0
    %2095 = vmatprep.subr.mxu0 0.0
    %2096 = vmatpush1.msra.mxu0 0.0
    %2097 = vmatprep.subr.mxu0 0.0
    %2098 = vmatpush1.msra.mxu0 0.0
    %2099 = vmatprep.subr.mxu0 0.0
    %2100 = vmatpush1.msra.mxu0 0.0
    %2101 = vmatprep.subr.mxu0 0.0
    %2102 = vmatpush1.msra.mxu0 0.0
    %2103 = vmatprep.subr.mxu0 0.0
    %2104 = vmatpush1.msra.mxu0 0.0
    %2105 = vmatprep.subr.mxu0 0.0
    %2106 = vmatpush1.msra.mxu0 0.0
    %2107 = vmatprep.subr.mxu0 0.0
    %2108 = vmatpush1.msra.mxu0 0.0
    %2109 = vmatprep.subr.mxu0 0.0
    %2110 = vmatpush1.msra.mxu0 0.0
    %2111 = vmatprep.subr.mxu0 0.0
    %2112 = vmatpush1.msra.mxu0 0.0
    %2113 = vmatprep.subr.mxu0 0.0
    %2114 = vmatpush1.msra.mxu0 0.0
    %2115 = vmatprep.subr.mxu0 0.0
    %2116 = vmatpush1.msra.mxu0 0.0
    %2117 = vmatprep.subr.mxu0 0.0
    %2118 = vmatpush1.msra.mxu0 0.0
    %2119 = vmatprep.subr.mxu0 0.0
    %2120 = vmatpush1.msra.mxu0 0.0
    %2121 = vmatprep.subr.mxu0 0.0
    %2122 = vmatpush1.msra.mxu0 0.0
    %2123 = vmatprep.subr.mxu0 0.0
    %2124 = vmatpush1.msra.mxu0 0.0
    %2125 = vmatprep.subr.mxu0 0.0
    %2126 = vmatpush1.msra.mxu0 0.0
    %2127 = vmatprep.subr.mxu0 0.0
    %2128 = vmatpush1.msra.mxu0 0.0
    %2129 = vmatprep.subr.mxu0 0.0
    %2130 = vmatpush1.msra.mxu0 0.0
    %2131 = vmatprep.subr.mxu0 0.0
    %2132 = vmatpush1.msra.mxu0 0.0
    %2133 = vmatprep.subr.mxu0 0.0
    %2134 = vmatpush1.msra.mxu0 0.0
    %2135 = vmatprep.subr.mxu0 0.0
    %2136 = vmatpush1.msra.mxu0 0.0
    %2137 = vmatprep.mubr.f32.mxu0 0.0
    %2138 = vmatmul.mubr.f32.gmra.mrb[0].mxu0 %v1899
    %v2139 = vpop.f32.mrb[0].mxu0
    %v2140 = vadd.f32 0.0, %v2139
    %v2141 = vpop.f32.mrb[0].mxu0
    %2142 = vdwg.mxu0
    %v2144 = vrot.slane %v2140, 2
    %v2145 = vrot.slane %v2140, 3
    %v2148 = vadd.f32 %v155, %v2144
    %v2149 = vadd.f32 %v160, %v2145
    %v2150 = vxor.u32 %v2148, 2147483648
    %v2151 = vxor.u32 %v2149, 2147483648
    %v2152 = vmul.f32 %v2150, 1.442695
    %v2153 = vpow.pop %v2152
    %v2154 = vmul.f32 %v2151, 1.442695
    %v2155 = vpow.pop %v2154
    %v2156 = vadd.f32 %v2153, 1.0
    %v2157 = vadd.f32 %v2155, 1.0
    %v2158 = vrcp.pop %v2156
    %v2159 = vmul.f32 1.0, %v2158
    %v2160 = vrcp.pop %v2157
    %v2161 = vmul.f32 1.0, %v2160
    %v2162 = vadd.f32 %v2140, %v276
    %v2164 = vrot.slane %v2162, 2
    %v2165 = vrot.slane %v2162, 3
    %2166 = vrot.lane.b32.xlu0 %v2164, 64
    %v2167 = vpop.permute.xlu0 %2166
    %2168 = vrot.lane.b32.xlu0 %v2165, 64
    %v2169 = vpop.permute.xlu0 %2168
    %v2172 = vmul.f32 %v2159, %v2167
    %v2173 = vmul.f32 %v2161, %v2169
    %2176 = vrot.lane.b32.xlu0 %v2172, 64
    %v2177 = vpop.permute.xlu0 %2176
    %2178 = vrot.lane.b32.xlu0 %v2173, 64
    %v2179 = vpop.permute.xlu0 %2178
    %v2182 = vadd.f32 %v155, %v2177
    %v2183 = vadd.f32 %v160, %v2179
    %v2184 = vtanh.pop %v2182
    %v2185 = vtanh.pop %v2183
    %v2186 = vsub.f32 1.0, %v2159
    %v2187 = vsub.f32 1.0, %v2161
    %2190 = vrot.lane.b32.xlu0 %v2184, 96
    %v2191 = vpop.permute.xlu0 %2190
    %2192 = vrot.lane.b32.xlu0 %v2185, 96
    %v2193 = vpop.permute.xlu0 %2192
    %v2196 = vmul.f32 %v2186, %v2191
    %v2197 = vmul.f32 %v2187, %v2193
    %v2198 = vrot.slane %v1890, 7
    %v2199 = vrot.slane %v1891, 7
    %v2202 = vmul.f32 %v2159, %v2198
    %v2203 = vmul.f32 %v2161, %v2199
    %v2204 = vadd.f32 %v2196, %v2202
    %v2205 = vadd.f32 %v2197, %v2203
    %v2208 = vrot.slane %v2204, 6
    %v2209 = vrot.slane %v2205, 5
    %v2210 = vsel %vm326, %v2209, %v2208
    %2211 = vrot.lane.b32.xlu0 %v2210, 96
    %v2212 = vpop.permute.xlu0 %2211
    %v2213 = vsel %vm178, %v2212, 0
    %2215 = vmatprep.subr.mxu0 0.0
    %2216 = vmatpush1.msra.mxu0 %v167
    %2217 = vmatprep.subr.mxu0 0.0
    %2218 = vmatpush1.msra.mxu0 %v168
    %2219 = vmatprep.subr.mxu0 0.0
    %2220 = vmatpush1.msra.mxu0 %v169
    %2221 = vmatprep.subr.mxu0 0.0
    %2222 = vmatpush1.msra.mxu0 %v170
    %2223 = vmatprep.subr.mxu0 0.0
    %2224 = vmatpush1.msra.mxu0 0.0
    %2225 = vmatprep.subr.mxu0 0.0
    %2226 = vmatpush1.msra.mxu0 0.0
    %2227 = vmatprep.subr.mxu0 0.0
    %2228 = vmatpush1.msra.mxu0 0.0
    %2229 = vmatprep.subr.mxu0 0.0
    %2230 = vmatpush1.msra.mxu0 0.0
    %2231 = vmatprep.subr.mxu0 0.0
    %2232 = vmatpush1.msra.mxu0 0.0
    %2233 = vmatprep.subr.mxu0 0.0
    %2234 = vmatpush1.msra.mxu0 0.0
    %2235 = vmatprep.subr.mxu0 0.0
    %2236 = vmatpush1.msra.mxu0 0.0
    %2237 = vmatprep.subr.mxu0 0.0
    %2238 = vmatpush1.msra.mxu0 0.0
    %2239 = vmatprep.subr.mxu0 0.0
    %2240 = vmatpush1.msra.mxu0 0.0
    %2241 = vmatprep.subr.mxu0 0.0
    %2242 = vmatpush1.msra.mxu0 0.0
    %2243 = vmatprep.subr.mxu0 0.0
    %2244 = vmatpush1.msra.mxu0 0.0
    %2245 = vmatprep.subr.mxu0 0.0
    %2246 = vmatpush1.msra.mxu0 0.0
    %2247 = vmatprep.subr.mxu0 0.0
    %2248 = vmatpush1.msra.mxu0 0.0
    %2249 = vmatprep.subr.mxu0 0.0
    %2250 = vmatpush1.msra.mxu0 0.0
    %2251 = vmatprep.subr.mxu0 0.0
    %2252 = vmatpush1.msra.mxu0 0.0
    %2253 = vmatprep.subr.mxu0 0.0
    %2254 = vmatpush1.msra.mxu0 0.0
    %2255 = vmatprep.subr.mxu0 0.0
    %2256 = vmatpush1.msra.mxu0 0.0
    %2257 = vmatprep.subr.mxu0 0.0
    %2258 = vmatpush1.msra.mxu0 0.0
    %2259 = vmatprep.subr.mxu0 0.0
    %2260 = vmatpush1.msra.mxu0 0.0
    %2261 = vmatprep.subr.mxu0 0.0
    %2262 = vmatpush1.msra.mxu0 0.0
    %2263 = vmatprep.subr.mxu0 0.0
    %2264 = vmatpush1.msra.mxu0 0.0
    %2265 = vmatprep.subr.mxu0 0.0
    %2266 = vmatpush1.msra.mxu0 0.0
    %2267 = vmatprep.subr.mxu0 0.0
    %2268 = vmatpush1.msra.mxu0 0.0
    %2269 = vmatprep.subr.mxu0 0.0
    %2270 = vmatpush1.msra.mxu0 0.0
    %2271 = vmatprep.subr.mxu0 0.0
    %2272 = vmatpush1.msra.mxu0 0.0
    %2273 = vmatprep.subr.mxu0 0.0
    %2274 = vmatpush1.msra.mxu0 0.0
    %2275 = vmatprep.subr.mxu0 0.0
    %2276 = vmatpush1.msra.mxu0 0.0
    %2277 = vmatprep.subr.mxu0 0.0
    %2278 = vmatpush1.msra.mxu0 0.0
    %2279 = vmatprep.mubr.f32.mxu0 0.0
    %2280 = vmatmul.mubr.f32.gmra.mrb[0].mxu0 %v2213
    %v2281 = vpop.f32.mrb[0].mxu0
    %v2282 = vadd.f32 %v321, %v2281
    %v2283 = vpop.f32.mrb[0].mxu0
    %2284 = vdwg.mxu0
    %2286 = vrot.lane.b32.xlu0 %v2072, 96
    %v2287 = vpop.permute.xlu0 %2286
    %v2288 = vsel %vm178, %v2287, 0
    %2290 = vmatprep.subr.mxu0 0.0
    %2291 = vmatpush1.msra.mxu0 %v171
    %2292 = vmatprep.subr.mxu0 0.0
    %2293 = vmatpush1.msra.mxu0 %v172
    %2294 = vmatprep.subr.mxu0 0.0
    %2295 = vmatpush1.msra.mxu0 %v173
    %2296 = vmatprep.subr.mxu0 0.0
    %2297 = vmatpush1.msra.mxu0 %v174
    %2298 = vmatprep.subr.mxu0 0.0
    %2299 = vmatpush1.msra.mxu0 0.0
    %2300 = vmatprep.subr.mxu0 0.0
    %2301 = vmatpush1.msra.mxu0 0.0
    %2302 = vmatprep.subr.mxu0 0.0
    %2303 = vmatpush1.msra.mxu0 0.0
    %2304 = vmatprep.subr.mxu0 0.0
    %2305 = vmatpush1.msra.mxu0 0.0
    %2306 = vmatprep.subr.mxu0 0.0
    %2307 = vmatpush1.msra.mxu0 0.0
    %2308 = vmatprep.subr.mxu0 0.0
    %2309 = vmatpush1.msra.mxu0 0.0
    %2310 = vmatprep.subr.mxu0 0.0
    %2311 = vmatpush1.msra.mxu0 0.0
    %2312 = vmatprep.subr.mxu0 0.0
    %2313 = vmatpush1.msra.mxu0 0.0
    %2314 = vmatprep.subr.mxu0 0.0
    %2315 = vmatpush1.msra.mxu0 0.0
    %2316 = vmatprep.subr.mxu0 0.0
    %2317 = vmatpush1.msra.mxu0 0.0
    %2318 = vmatprep.subr.mxu0 0.0
    %2319 = vmatpush1.msra.mxu0 0.0
    %2320 = vmatprep.subr.mxu0 0.0
    %2321 = vmatpush1.msra.mxu0 0.0
    %2322 = vmatprep.subr.mxu0 0.0
    %2323 = vmatpush1.msra.mxu0 0.0
    %2324 = vmatprep.subr.mxu0 0.0
    %2325 = vmatpush1.msra.mxu0 0.0
    %2326 = vmatprep.subr.mxu0 0.0
    %2327 = vmatpush1.msra.mxu0 0.0
    %2328 = vmatprep.subr.mxu0 0.0
    %2329 = vmatpush1.msra.mxu0 0.0
    %2330 = vmatprep.subr.mxu0 0.0
    %2331 = vmatpush1.msra.mxu0 0.0
    %2332 = vmatprep.subr.mxu0 0.0
    %2333 = vmatpush1.msra.mxu0 0.0
    %2334 = vmatprep.subr.mxu0 0.0
    %2335 = vmatpush1.msra.mxu0 0.0
    %2336 = vmatprep.subr.mxu0 0.0
    %2337 = vmatpush1.msra.mxu0 0.0
    %2338 = vmatprep.subr.mxu0 0.0
    %2339 = vmatpush1.msra.mxu0 0.0
    %2340 = vmatprep.subr.mxu0 0.0
    %2341 = vmatpush1.msra.mxu0 0.0
    %2342 = vmatprep.subr.mxu0 0.0
    %2343 = vmatpush1.msra.mxu0 0.0
    %2344 = vmatprep.subr.mxu0 0.0
    %2345 = vmatpush1.msra.mxu0 0.0
    %2346 = vmatprep.subr.mxu0 0.0
    %2347 = vmatpush1.msra.mxu0 0.0
    %2348 = vmatprep.subr.mxu0 0.0
    %2349 = vmatpush1.msra.mxu0 0.0
    %2350 = vmatprep.subr.mxu0 0.0
    %2351 = vmatpush1.msra.mxu0 0.0
    %2352 = vmatprep.subr.mxu0 0.0
    %2353 = vmatpush1.msra.mxu0 0.0
    %2354 = vmatprep.mubr.f32.mxu0 0.0
    %2355 = vmatmul.mubr.f32.gmra.mrb[0].mxu0 %v2288
    %v2356 = vpop.f32.mrb[0].mxu0
    %v2357 = vadd.f32 0.0, %v2356
    %v2358 = vpop.f32.mrb[0].mxu0
    %2359 = vdwg.mxu0
    %v2360 = vadd.f32 %v2282, %v2357
    %v2361 = vxor.u32 %v2360, 2147483648
    %v2362 = vmul.f32 %v2361, 1.442695
    %v2363 = vpow.pop %v2362
    %v2364 = vadd.f32 %v2363, 1.0
    %v2365 = vrcp.pop %v2364
    %v2366 = vmul.f32 1.0, %v2365
    %v2367 = vadd.f32 %v2357, %v485
    %2369 = vrot.lane.b32.xlu0 %v2367, 64
    %v2370 = vpop.permute.xlu0 %2369
    %v2372 = vmul.f32 %v2366, %v2370
    %2374 = vrot.lane.b32.xlu0 %v2372, 64
    %v2375 = vpop.permute.xlu0 %2374
    %v2377 = vadd.f32 %v2282, %v2375
    %v2378 = vtanh.pop %v2377
    %v2379 = vsub.f32 1.0, %v2366
    %2381 = vrot.lane.b32.xlu0 %v2378, 96
    %v2382 = vpop.permute.xlu0 %2381
    %v2384 = vmul.f32 %v2379, %v2382
    %v2385 = vmul.f32 %v2366, %v2072
    %v2386 = vadd.f32 %v2384, %v2385
    %2387 = vmatprep.subr.mxu0 0.0
    %2388 = vmatpush1.msra.mxu0 %v163
    %2389 = vmatprep.subr.mxu0 0.0
    %2390 = vmatpush1.msra.mxu0 %v164
    %2391 = vmatprep.subr.mxu0 0.0
    %2392 = vmatpush1.msra.mxu0 %v165
    %2393 = vmatprep.subr.mxu0 0.0
    %2394 = vmatpush1.msra.mxu0 %v166
    %2395 = vmatprep.subr.mxu0 0.0
    %2396 = vmatpush1.msra.mxu0 0.0
    %2397 = vmatprep.subr.mxu0 0.0
    %2398 = vmatpush1.msra.mxu0 0.0
    %2399 = vmatprep.subr.mxu0 0.0
    %2400 = vmatpush1.msra.mxu0 0.0
    %2401 = vmatprep.subr.mxu0 0.0
    %2402 = vmatpush1.msra.mxu0 0.0
    %2403 = vmatprep.subr.mxu0 0.0
    %2404 = vmatpush1.msra.mxu0 0.0
    %2405 = vmatprep.subr.mxu0 0.0
    %2406 = vmatpush1.msra.mxu0 0.0
    %2407 = vmatprep.subr.mxu0 0.0
    %2408 = vmatpush1.msra.mxu0 0.0
    %2409 = vmatprep.subr.mxu0 0.0
    %2410 = vmatpush1.msra.mxu0 0.0
    %2411 = vmatprep.subr.mxu0 0.0
    %2412 = vmatpush1.msra.mxu0 0.0
    %2413 = vmatprep.subr.mxu0 0.0
    %2414 = vmatpush1.msra.mxu0 0.0
    %2415 = vmatprep.subr.mxu0 0.0
    %2416 = vmatpush1.msra.mxu0 0.0
    %2417 = vmatprep.subr.mxu0 0.0
    %2418 = vmatpush1.msra.mxu0 0.0
    %2419 = vmatprep.subr.mxu0 0.0
    %2420 = vmatpush1.msra.mxu0 0.0
    %2421 = vmatprep.subr.mxu0 0.0
    %2422 = vmatpush1.msra.mxu0 0.0
    %2423 = vmatprep.subr.mxu0 0.0
    %2424 = vmatpush1.msra.mxu0 0.0
    %2425 = vmatprep.subr.mxu0 0.0
    %2426 = vmatpush1.msra.mxu0 0.0
    %2427 = vmatprep.subr.mxu0 0.0
    %2428 = vmatpush1.msra.mxu0 0.0
    %2429 = vmatprep.subr.mxu0 0.0
    %2430 = vmatpush1.msra.mxu0 0.0
    %2431 = vmatprep.subr.mxu0 0.0
    %2432 = vmatpush1.msra.mxu0 0.0
    %2433 = vmatprep.subr.mxu0 0.0
    %2434 = vmatpush1.msra.mxu0 0.0
    %2435 = vmatprep.subr.mxu0 0.0
    %2436 = vmatpush1.msra.mxu0 0.0
    %2437 = vmatprep.subr.mxu0 0.0
    %2438 = vmatpush1.msra.mxu0 0.0
    %2439 = vmatprep.subr.mxu0 0.0
    %2440 = vmatpush1.msra.mxu0 0.0
    %2441 = vmatprep.subr.mxu0 0.0
    %2442 = vmatpush1.msra.mxu0 0.0
    %2443 = vmatprep.subr.mxu0 0.0
    %2444 = vmatpush1.msra.mxu0 0.0
    %2445 = vmatprep.subr.mxu0 0.0
    %2446 = vmatpush1.msra.mxu0 0.0
    %2447 = vmatprep.subr.mxu0 0.0
    %2448 = vmatpush1.msra.mxu0 0.0
    %2449 = vmatprep.subr.mxu0 0.0
    %2450 = vmatpush1.msra.mxu0 0.0
    %2451 = vmatprep.mubr.f32.mxu0 0.0
    %2452 = vmatmul.mubr.f32.gmra.mrb[0].mxu0 %v2213
    %v2453 = vpop.f32.mrb[0].mxu0
    %v2454 = vadd.f32 0.0, %v2453
    %v2455 = vpop.f32.mrb[0].mxu0
    %2456 = vdwg.mxu0
    %v2458 = vrot.slane %v2454, 1
    %v2459 = vrot.slane %v2454, 2
    %v2462 = vadd.f32 %v155, %v2458
    %v2463 = vadd.f32 %v160, %v2459
    %v2464 = vxor.u32 %v2462, 2147483648
    %v2465 = vxor.u32 %v2463, 2147483648
    %v2466 = vmul.f32 %v2464, 1.442695
    %v2467 = vpow.pop %v2466
    %v2468 = vmul.f32 %v2465, 1.442695
    %v2469 = vpow.pop %v2468
    %v2470 = vadd.f32 %v2467, 1.0
    %v2471 = vadd.f32 %v2469, 1.0
    %v2472 = vrcp.pop %v2470
    %v2473 = vmul.f32 1.0, %v2472
    %v2474 = vrcp.pop %v2471
    %v2475 = vmul.f32 1.0, %v2474
    %v2476 = vadd.f32 %v2454, %v276
    %v2478 = vrot.slane %v2476, 1
    %v2479 = vrot.slane %v2476, 2
    %2480 = vrot.lane.b32.xlu0 %v2478, 64
    %v2481 = vpop.permute.xlu0 %2480
    %2482 = vrot.lane.b32.xlu0 %v2479, 64
    %v2483 = vpop.permute.xlu0 %2482
    %v2486 = vmul.f32 %v2473, %v2481
    %v2487 = vmul.f32 %v2475, %v2483
    %2490 = vrot.lane.b32.xlu0 %v2486, 64
    %v2491 = vpop.permute.xlu0 %2490
    %2492 = vrot.lane.b32.xlu0 %v2487, 64
    %v2493 = vpop.permute.xlu0 %2492
    %v2496 = vadd.f32 %v155, %v2491
    %v2497 = vadd.f32 %v160, %v2493
    %v2498 = vtanh.pop %v2496
    %v2499 = vtanh.pop %v2497
    %v2500 = vsub.f32 1.0, %v2473
    %v2501 = vsub.f32 1.0, %v2475
    %2504 = vrot.lane.b32.xlu0 %v2498, 96
    %v2505 = vpop.permute.xlu0 %2504
    %2506 = vrot.lane.b32.xlu0 %v2499, 96
    %v2507 = vpop.permute.xlu0 %2506
    %v2510 = vmul.f32 %v2500, %v2505
    %v2511 = vmul.f32 %v2501, %v2507
    %v2512 = vrot.slane %v2204, 7
    %v2513 = vrot.slane %v2205, 7
    %v2516 = vmul.f32 %v2473, %v2512
    %v2517 = vmul.f32 %v2475, %v2513
    %v2518 = vadd.f32 %v2510, %v2516
    %v2519 = vadd.f32 %v2511, %v2517
    %v2522 = vrot.slane %v2518, 7
    %v2523 = vrot.slane %v2519, 6
    %v2524 = vsel %vm326, %v2523, %v2522
    %2525 = vrot.lane.b32.xlu0 %v2524, 96
    %v2526 = vpop.permute.xlu0 %2525
    %v2527 = vsel %vm178, %v2526, 0
    %2529 = vmatprep.subr.mxu0 0.0
    %2530 = vmatpush1.msra.mxu0 %v167
    %2531 = vmatprep.subr.mxu0 0.0
    %2532 = vmatpush1.msra.mxu0 %v168
    %2533 = vmatprep.subr.mxu0 0.0
    %2534 = vmatpush1.msra.mxu0 %v169
    %2535 = vmatprep.subr.mxu0 0.0
    %2536 = vmatpush1.msra.mxu0 %v170
    %2537 = vmatprep.subr.mxu0 0.0
    %2538 = vmatpush1.msra.mxu0 0.0
    %2539 = vmatprep.subr.mxu0 0.0
    %2540 = vmatpush1.msra.mxu0 0.0
    %2541 = vmatprep.subr.mxu0 0.0
    %2542 = vmatpush1.msra.mxu0 0.0
    %2543 = vmatprep.subr.mxu0 0.0
    %2544 = vmatpush1.msra.mxu0 0.0
    %2545 = vmatprep.subr.mxu0 0.0
    %2546 = vmatpush1.msra.mxu0 0.0
    %2547 = vmatprep.subr.mxu0 0.0
    %2548 = vmatpush1.msra.mxu0 0.0
    %2549 = vmatprep.subr.mxu0 0.0
    %2550 = vmatpush1.msra.mxu0 0.0
    %2551 = vmatprep.subr.mxu0 0.0
    %2552 = vmatpush1.msra.mxu0 0.0
    %2553 = vmatprep.subr.mxu0 0.0
    %2554 = vmatpush1.msra.mxu0 0.0
    %2555 = vmatprep.subr.mxu0 0.0
    %2556 = vmatpush1.msra.mxu0 0.0
    %2557 = vmatprep.subr.mxu0 0.0
    %2558 = vmatpush1.msra.mxu0 0.0
    %2559 = vmatprep.subr.mxu0 0.0
    %2560 = vmatpush1.msra.mxu0 0.0
    %2561 = vmatprep.subr.mxu0 0.0
    %2562 = vmatpush1.msra.mxu0 0.0
    %2563 = vmatprep.subr.mxu0 0.0
    %2564 = vmatpush1.msra.mxu0 0.0
    %2565 = vmatprep.subr.mxu0 0.0
    %2566 = vmatpush1.msra.mxu0 0.0
    %2567 = vmatprep.subr.mxu0 0.0
    %2568 = vmatpush1.msra.mxu0 0.0
    %2569 = vmatprep.subr.mxu0 0.0
    %2570 = vmatpush1.msra.mxu0 0.0
    %2571 = vmatprep.subr.mxu0 0.0
    %2572 = vmatpush1.msra.mxu0 0.0
    %2573 = vmatprep.subr.mxu0 0.0
    %2574 = vmatpush1.msra.mxu0 0.0
    %2575 = vmatprep.subr.mxu0 0.0
    %2576 = vmatpush1.msra.mxu0 0.0
    %2577 = vmatprep.subr.mxu0 0.0
    %2578 = vmatpush1.msra.mxu0 0.0
    %2579 = vmatprep.subr.mxu0 0.0
    %2580 = vmatpush1.msra.mxu0 0.0
    %2581 = vmatprep.subr.mxu0 0.0
    %2582 = vmatpush1.msra.mxu0 0.0
    %2583 = vmatprep.subr.mxu0 0.0
    %2584 = vmatpush1.msra.mxu0 0.0
    %2585 = vmatprep.subr.mxu0 0.0
    %2586 = vmatpush1.msra.mxu0 0.0
    %2587 = vmatprep.subr.mxu0 0.0
    %2588 = vmatpush1.msra.mxu0 0.0
    %2589 = vmatprep.subr.mxu0 0.0
    %2590 = vmatpush1.msra.mxu0 0.0
    %2591 = vmatprep.subr.mxu0 0.0
    %2592 = vmatpush1.msra.mxu0 0.0
    %2593 = vmatprep.mubr.f32.mxu0 0.0
    %2594 = vmatmul.mubr.f32.gmra.mrb[0].mxu0 %v2527
    %v2595 = vpop.f32.mrb[0].mxu0
    %v2596 = vadd.f32 %v321, %v2595
    %v2597 = vpop.f32.mrb[0].mxu0
    %2598 = vdwg.mxu0
    %2600 = vrot.lane.b32.xlu0 %v2386, 96
    %v2601 = vpop.permute.xlu0 %2600
    %v2602 = vsel %vm178, %v2601, 0
    %2604 = vmatprep.subr.mxu0 0.0
    %2605 = vmatpush1.msra.mxu0 %v171
    %2606 = vmatprep.subr.mxu0 0.0
    %2607 = vmatpush1.msra.mxu0 %v172
    %2608 = vmatprep.subr.mxu0 0.0
    %2609 = vmatpush1.msra.mxu0 %v173
    %2610 = vmatprep.subr.mxu0 0.0
    %2611 = vmatpush1.msra.mxu0 %v174
    %2612 = vmatprep.subr.mxu0 0.0
    %2613 = vmatpush1.msra.mxu0 0.0
    %2614 = vmatprep.subr.mxu0 0.0
    %2615 = vmatpush1.msra.mxu0 0.0
    %2616 = vmatprep.subr.mxu0 0.0
    %2617 = vmatpush1.msra.mxu0 0.0
    %2618 = vmatprep.subr.mxu0 0.0
    %2619 = vmatpush1.msra.mxu0 0.0
    %2620 = vmatprep.subr.mxu0 0.0
    %2621 = vmatpush1.msra.mxu0 0.0
    %2622 = vmatprep.subr.mxu0 0.0
    %2623 = vmatpush1.msra.mxu0 0.0
    %2624 = vmatprep.subr.mxu0 0.0
    %2625 = vmatpush1.msra.mxu0 0.0
    %2626 = vmatprep.subr.mxu0 0.0
    %2627 = vmatpush1.msra.mxu0 0.0
    %2628 = vmatprep.subr.mxu0 0.0
    %2629 = vmatpush1.msra.mxu0 0.0
    %2630 = vmatprep.subr.mxu0 0.0
    %2631 = vmatpush1.msra.mxu0 0.0
    %2632 = vmatprep.subr.mxu0 0.0
    %2633 = vmatpush1.msra.mxu0 0.0
    %2634 = vmatprep.subr.mxu0 0.0
    %2635 = vmatpush1.msra.mxu0 0.0
    %2636 = vmatprep.subr.mxu0 0.0
    %2637 = vmatpush1.msra.mxu0 0.0
    %2638 = vmatprep.subr.mxu0 0.0
    %2639 = vmatpush1.msra.mxu0 0.0
    %2640 = vmatprep.subr.mxu0 0.0
    %2641 = vmatpush1.msra.mxu0 0.0
    %2642 = vmatprep.subr.mxu0 0.0
    %2643 = vmatpush1.msra.mxu0 0.0
    %2644 = vmatprep.subr.mxu0 0.0
    %2645 = vmatpush1.msra.mxu0 0.0
    %2646 = vmatprep.subr.mxu0 0.0
    %2647 = vmatpush1.msra.mxu0 0.0
    %2648 = vmatprep.subr.mxu0 0.0
    %2649 = vmatpush1.msra.mxu0 0.0
    %2650 = vmatprep.subr.mxu0 0.0
    %2651 = vmatpush1.msra.mxu0 0.0
    %2652 = vmatprep.subr.mxu0 0.0
    %2653 = vmatpush1.msra.mxu0 0.0
    %2654 = vmatprep.subr.mxu0 0.0
    %2655 = vmatpush1.msra.mxu0 0.0
    %2656 = vmatprep.subr.mxu0 0.0
    %2657 = vmatpush1.msra.mxu0 0.0
    %2658 = vmatprep.subr.mxu0 0.0
    %2659 = vmatpush1.msra.mxu0 0.0
    %2660 = vmatprep.subr.mxu0 0.0
    %2661 = vmatpush1.msra.mxu0 0.0
    %2662 = vmatprep.subr.mxu0 0.0
    %2663 = vmatpush1.msra.mxu0 0.0
    %2664 = vmatprep.subr.mxu0 0.0
    %2665 = vmatpush1.msra.mxu0 0.0
    %2666 = vmatprep.subr.mxu0 0.0
    %2667 = vmatpush1.msra.mxu0 0.0
    %2668 = vmatprep.mubr.f32.mxu0 0.0
    %2669 = vmatmul.mubr.f32.gmra.mrb[0].mxu0 %v2602
    %v2670 = vpop.f32.mrb[0].mxu0
    %v2671 = vadd.f32 0.0, %v2670
    %v2672 = vpop.f32.mrb[0].mxu0
    %2673 = vdwg.mxu0
    %v2674 = vadd.f32 %v2596, %v2671
    %v2675 = vxor.u32 %v2674, 2147483648
    %v2676 = vmul.f32 %v2675, 1.442695
    %v2677 = vpow.pop %v2676
    %v2678 = vadd.f32 %v2677, 1.0
    %v2679 = vrcp.pop %v2678
    %v2680 = vmul.f32 1.0, %v2679
    %v2681 = vadd.f32 %v2671, %v485
    %2683 = vrot.lane.b32.xlu0 %v2681, 64
    %v2684 = vpop.permute.xlu0 %2683
    %v2686 = vmul.f32 %v2680, %v2684
    %2688 = vrot.lane.b32.xlu0 %v2686, 64
    %v2689 = vpop.permute.xlu0 %2688
    %v2691 = vadd.f32 %v2596, %v2689
    %v2692 = vtanh.pop %v2691
    %v2693 = vsub.f32 1.0, %v2680
    %2695 = vrot.lane.b32.xlu0 %v2692, 96
    %v2696 = vpop.permute.xlu0 %2695
    %v2698 = vmul.f32 %v2693, %v2696
    %v2699 = vmul.f32 %v2680, %v2386
    %v2700 = vadd.f32 %v2698, %v2699
    %2702 = vrot.lane.b32.xlu0 %v1130, 32
    %v2703 = vpop.permute.xlu0 %2702
    %2705 = vrot.lane.b32.xlu0 %v1444, 64
    %v2706 = vpop.permute.xlu0 %2705
    %2709 = vrot.lane.b32.xlu0 %v2386, 32
    %v2710 = vpop.permute.xlu0 %2709
    %2713 = vrot.lane.b32.xlu0 %v2700, 64
    %v2714 = vpop.permute.xlu0 %2713
    %v2716 = vsel %vm178, %v717, %v816
    %vm2717 = vcmask 523264
    %v2718 = vsel %vm2717, %v2716, %v2703
    %vm2719 = vcmask 785408
    %v2720 = vsel %vm2719, %v2718, %v2706
    %v2721 = vsel %vm178, %v1973, %v2072
    %v2722 = vsel %vm2717, %v2721, %v2710
    %v2723 = vsel %vm2719, %v2722, %v2714
    %v2726 = vcombine.low %v2720, %v2723
    %v2728 = vunpack.c.l.s4 1983009808
    %v2729 = vunpack.c.0.s8 %v2728
    %v2730 = vlaneseq
    %v2731 = vshrl.u32 %v2730, 7
    %v2732 = vsub.s32 %v2729, %v2731
    %v2733 = vrot.slane %v2726, %v2732
    %2735 = vst [vmem:[%s11] sm:$0xf] %v2733
    %v2736 = vld [vmem:[%s9] sm:$0xff]
    %v2737 = vld [vmem:[%s9 + $0x8] sm:$0xff]
    %v2738 = vld [vmem:[%s9 + $0x10] sm:$0xff]
    %v2739 = vld [vmem:[%s9 + $0x18] sm:$0xff]
    %v2740 = vld [vmem:[%s10] sm:$0x1]
    %v2742 = vlaneseq
    %v2743 = vshrl.u32 %v2742, 7
    %v2744 = vsub.s32 0, %v2743
    %v2745 = vrot.slane %v2740, %v2744
    %2747 = vrot.lane.b32.xlu0 %v2700, 96
    %v2748 = vpop.permute.xlu0 %2747
    %v2749 = vsel %vm178, %v2748, 0
    %2751 = vmatprep.subr.mxu0 0.0
    %2752 = vmatpush1.msra.mxu0 %v2736
    %2753 = vmatprep.subr.mxu0 0.0
    %2754 = vmatpush1.msra.mxu0 %v2737
    %2755 = vmatprep.subr.mxu0 0.0
    %2756 = vmatpush1.msra.mxu0 %v2738
    %2757 = vmatprep.subr.mxu0 0.0
    %2758 = vmatpush1.msra.mxu0 %v2739
    %2759 = vmatprep.subr.mxu0 0.0
    %2760 = vmatpush1.msra.mxu0 0.0
    %2761 = vmatprep.subr.mxu0 0.0
    %2762 = vmatpush1.msra.mxu0 0.0
    %2763 = vmatprep.subr.mxu0 0.0
    %2764 = vmatpush1.msra.mxu0 0.0
    %2765 = vmatprep.subr.mxu0 0.0
    %2766 = vmatpush1.msra.mxu0 0.0
    %2767 = vmatprep.subr.mxu0 0.0
    %2768 = vmatpush1.msra.mxu0 0.0
    %2769 = vmatprep.subr.mxu0 0.0
    %2770 = vmatpush1.msra.mxu0 0.0
    %2771 = vmatprep.subr.mxu0 0.0
    %2772 = vmatpush1.msra.mxu0 0.0
    %2773 = vmatprep.subr.mxu0 0.0
    %2774 = vmatpush1.msra.mxu0 0.0
    %2775 = vmatprep.subr.mxu0 0.0
    %2776 = vmatpush1.msra.mxu0 0.0
    %2777 = vmatprep.subr.mxu0 0.0
    %2778 = vmatpush1.msra.mxu0 0.0
    %2779 = vmatprep.subr.mxu0 0.0
    %2780 = vmatpush1.msra.mxu0 0.0
    %2781 = vmatprep.subr.mxu0 0.0
    %2782 = vmatpush1.msra.mxu0 0.0
    %2783 = vmatprep.subr.mxu0 0.0
    %2784 = vmatpush1.msra.mxu0 0.0
    %2785 = vmatprep.subr.mxu0 0.0
    %2786 = vmatpush1.msra.mxu0 0.0
    %2787 = vmatprep.subr.mxu0 0.0
    %2788 = vmatpush1.msra.mxu0 0.0
    %2789 = vmatprep.subr.mxu0 0.0
    %2790 = vmatpush1.msra.mxu0 0.0
    %2791 = vmatprep.subr.mxu0 0.0
    %2792 = vmatpush1.msra.mxu0 0.0
    %2793 = vmatprep.subr.mxu0 0.0
    %2794 = vmatpush1.msra.mxu0 0.0
    %2795 = vmatprep.subr.mxu0 0.0
    %2796 = vmatpush1.msra.mxu0 0.0
    %2797 = vmatprep.subr.mxu0 0.0
    %2798 = vmatpush1.msra.mxu0 0.0
    %2799 = vmatprep.subr.mxu0 0.0
    %2800 = vmatpush1.msra.mxu0 0.0
    %2801 = vmatprep.subr.mxu0 0.0
    %2802 = vmatpush1.msra.mxu0 0.0
    %2803 = vmatprep.subr.mxu0 0.0
    %2804 = vmatpush1.msra.mxu0 0.0
    %2805 = vmatprep.subr.mxu0 0.0
    %2806 = vmatpush1.msra.mxu0 0.0
    %2807 = vmatprep.subr.mxu0 0.0
    %2808 = vmatpush1.msra.mxu0 0.0
    %2809 = vmatprep.subr.mxu0 0.0
    %2810 = vmatpush1.msra.mxu0 0.0
    %2811 = vmatprep.subr.mxu0 0.0
    %2812 = vmatpush1.msra.mxu0 0.0
    %2813 = vmatprep.subr.mxu0 0.0
    %2814 = vmatpush1.msra.mxu0 0.0
    %2815 = vmatprep.mubr.f32.mxu0 0.0
    %2816 = vmatmul.mubr.f32.gmra.mrb[0].mxu0 %v2749
    %v2817 = vpop.f32.mrb[0].mxu0
    %v2818 = vadd.f32 %v2745, %v2817
    %v2819 = vpop.f32.mrb[0].mxu0
    %2820 = vdwg.mxu0
    %vm2821 = vcmask 33792
    %2822 = vst.msk [vmem:[#allocation7] sm:$0x3] %vm2821, %v2818
    // Predicated region
    $region54: #{activity_gru_forward.1} parent=1 // pred_check
      _
    $region55: #{activity_gru_forward.1} parent=1 // pred_check_branch
      %2824 = sbr.rel (0) target = $region57
    $region56: #{activity_gru_forward.1} parent=1 // pred_region
      _
    $region57: #{activity_gru_forward.1} parent=1 // pred_fallthru
      _
    // Predicated region
    $region58: #{activity_gru_forward.1} parent=1 // pred_check
      _
    $region59: #{activity_gru_forward.1} parent=1 // pred_check_branch
      %2826 = sbr.rel (0) target = $region61
    $region60: #{activity_gru_forward.1} parent=1 // pred_region
      %s2828 = ssub.s32 32, 32
      %2829 = vsyncadd [#allocation4], %s2828
      %s2831 = sshll.u32 [#allocation7], 4
      %s2832 = int_to_ptr.vmem [resolvable:$true] %s2831
      %2834 = dma.vmem_to_hbm [thread:$0]  %s2832, 32, %s12, [#allocation4]
    $region61: #{activity_gru_forward.1} parent=1 // pred_fallthru
      _
    // Predicated region
    $region62: #{activity_gru_forward.1} parent=1 // pred_check
      _
    $region63: #{activity_gru_forward.1} parent=1 // pred_check_branch
      %2836 = sbr.rel (0) target = $region65
    $region64: #{activity_gru_forward.1} parent=1 // pred_region
      _
    $region65: #{activity_gru_forward.1} parent=1 // pred_fallthru
      _
    // Predicated region
    $region66: #{activity_gru_forward.1} parent=1 // pred_check
      _
    $region67: #{activity_gru_forward.1} parent=1 // pred_check_branch
      %2838 = sbr.rel (0) target = $region69
    $region68: #{activity_gru_forward.1} parent=1 // pred_region
      %2839 = dma.done [#allocation4], 32
    $region69: #{activity_gru_forward.1} parent=1 // pred_fallthru
      _
    %2840 = vsyncpa [#allocation3], 1
    %2841 = vsyncpa [#allocation6], 1
    %2842 = vsyncpa [#allocation4], 1

</llo_original>
